<compile_context>
chip_gen: v7x
topology: tpu7x:2x2x1
jax: 0.10.0
libtpu: 0.0.40
codegen_flags: <defaults>
</compile_context>

<pallas_src>
import jax
import jax.numpy as jnp
from jax.experimental import pallas as pl
from jax.experimental.pallas import tpu as pltpu


def _ceil8(n):
    return ((n + 7) // 8) * 8


def _layout(C0, G, L):
    """col row layout: 9 input taps (C0p rows each); per dense feature j < L-1,
    9 taps of Gp rows each; the last feature contributes only its own Gp rows
    (no later conv reads its shifted taps)."""
    C0p, Gp = _ceil8(C0), _ceil8(G)
    in_rows = 9 * C0p
    base = [in_rows + 9 * Gp * j for j in range(L)]   # feature-group bases
    Ks = list(base)                                   # conv-i contraction == base[i]
    Kcol = base[L - 1] + Gp                           # total col rows
    return C0p, Gp, Ks, base, Kcol


def _make_kernel(L, C0p, Gp, H, W, NB, Ks, Kcol, eps=1e-5, neg_slope=0.2):
    HW = H * W
    NHW = NB * HW
    inv_hw = 1.0 / HW

    def kernel(x_ref, *args):
        # x_ref    : (1, C0p, NHW)  NB images side-by-side on the lane axis
        # args[:L] : per-layer packed conv weights, layer i is (Gp, Ks[i])
        # args[L]  : (C0p, Kcol)    packed transition weight (selects center taps)
        # args[L+1]: (C0p, 1)       transition bias (pad rows zero)
        # args[L+2]: (9, NHW)       0/1 border masks, replicated per image
        # args[L+3]: (1, C0p, NHW)  output
        # args[L+4]: (Kcol, NHW)    im2col scratch (VMEM)
        w_refs = args[:L]
        wt_ref, bt_ref, mask_ref = args[L:L + 3]
        o_ref = args[L + 3]
        col_ref = args[L + 4]

        x2d = x_ref[0]                                          # (C0p, NHW)

        def write_taps(feat, crows, b0):
            # Append the 9 shifted copies of `feat` to col: row b0 + k*crows + c.
            for k in range(9):
                if k == 4:
                    # Center tap: shift 0, mask all ones -> plain aligned copy.
                    col_ref[b0 + 4 * crows: b0 + 5 * crows, :] = feat
                else:
                    dh, dw = k // 3, k % 3
                    shift = ((1 - dh) * W + (1 - dw)) % NHW
                    rolled = pltpu.roll(feat, shift=shift, axis=1)
                    col_ref[b0 + k * crows: b0 + (k + 1) * crows, :] = (
                        rolled * mask_ref[k:k + 1, :])

        # im2col of the block input -- built once, reused by every dense layer.
        write_taps(x2d, C0p, 0)

        def inorm_lrelu(acc):
            # Per-image InstanceNorm2d (affine=False, biased variance) +
            # LeakyReLU(0.2).  Images occupy lane-tile-aligned slices (HW%128==0),
            # so the slices / concat are layout no-ops.
            parts = []
            for b in range(NB):
                a = acc[:, b * HW:(b + 1) * HW]
                m = jnp.sum(a, axis=1, keepdims=True) * inv_hw
                q = jnp.sum(a * a, axis=1, keepdims=True) * inv_hw
                v = jnp.maximum(q - m * m, 0.0)        # clamp one-pass variance
                yb = (a - m) * jax.lax.rsqrt(v + eps)
                parts.append(jnp.maximum(yb, neg_slope * yb))
            return parts[0] if NB == 1 else jnp.concatenate(parts, axis=1)

        for i in range(L):
            # Conv2d(C0+G*i -> G, 3x3, pad=1) as ONE (Gp, Ks[i]) x (Ks[i], NHW)
            # matmul (per-layer K; Gp-G padded output rows have zero weights and
            # therefore come out exactly zero).  Conv bias omitted on purpose:
            # it cancels under affine-free InstanceNorm.
            acc = jnp.dot(w_refs[i][...], col_ref[:Ks[i], :],
                          preferred_element_type=jnp.float32)   # (Gp, NHW)
            y = inorm_lrelu(acc)
            if i < L - 1:
                write_taps(y, Gp, Ks[i])     # append taps for later dense layers
            else:
                col_ref[Ks[i]:Ks[i] + Gp, :] = y   # last feature: value only

        # Transition 1x1 conv over [x, y_0, ..., y_{L-1}] as ONE matmul: the
        # packed weight is nonzero only at the center-tap rows of col (which hold
        # exactly x2d and each normalized y), then bias + residual add.
        out = jnp.dot(wt_ref[...], col_ref[...],
                      preferred_element_type=jnp.float32)        # (C0p, NHW)
        out = out + bt_ref[...] + x2d
        o_ref[0] = out.astype(o_ref.dtype)

    return kernel


def res_dense_block(x_nchw, w_list, wt_p, bt_p, *, nb=None, vmem_budget=8 << 20):
    """ResDenseBlock forward (is_down=True, is_IN=True).

    x_nchw : (N, C0, H, W) float32 -- PyTorch NCHW layout.
    w_list : list of L packed dense conv weights, w_list[i]: (Gp, K_i).
    wt_p   : (C0p, Kcol) packed transition weight; bt_p: (C0p, 1) transition bias.
    Returns (N, C0, H, W) float32.
    """
    N, C0, H, W = x_nchw.shape
    L = len(w_list)
    Gp = int(w_list[0].shape[0])
    C0p = int(wt_p.shape[0])
    Ks = [int(w.shape[1]) for w in w_list]
    Kcol = int(wt_p.shape[1])
    HW = H * W

    # Pick NB: largest divisor of N that keeps >=2 grid steps (two v7x TCs) and
    # fits the col scratch in a conservative VMEM budget.
    if nb is None:
        nb = 1
        for cand in range(1, N + 1):
            if N % cand:
                continue
            if N >= 2 and N // cand < 2:
                continue
            if Kcol * cand * HW * 4 > vmem_budget:
                continue
            nb = cand
    NHW = nb * HW
    nblk = N // nb

    # Layout plumbing (outside the kernel): channel pad to a sublane multiple and
    # place NB images side-by-side on the lane axis.
    x3 = x_nchw.reshape(N, C0, HW).astype(jnp.float32)
    if C0p > C0:
        x3 = jnp.pad(x3, ((0, 0), (0, C0p - C0), (0, 0)))
    xb = x3.reshape(nblk, nb, C0p, HW).transpose(0, 2, 1, 3).reshape(nblk, C0p, NHW)

    # 0/1 masks for the 9 taps of a SAME-padded 3x3 conv on the flattened spatial
    # axis, replicated per image (cross-image wrapped rolls are exactly these zeros).
    hh = jnp.arange(HW, dtype=jnp.int32) // W
    ww = jnp.arange(HW, dtype=jnp.int32) % W
    taps = []
    for k in range(9):
        dh, dw = k // 3, k % 3
        valid = ((hh + dh - 1 >= 0) & (hh + dh - 1 < H) &
                 (ww + dw - 1 >= 0) & (ww + dw - 1 < W))
        taps.append(valid.astype(jnp.float32))
    mask = jnp.tile(jnp.stack(taps, axis=0), (1, nb))            # (9, NHW)

    kernel = _make_kernel(L, C0p, Gp, H, W, nb, Ks, Kcol)

    conv_macs = sum(Gp * k for k in Ks) * NHW
    flops = 2 * nblk * (conv_macs + C0p * Kcol * NHW) + 12 * nblk * L * Gp * NHW
    bytes_accessed = 4 * (2 * N * C0p * HW + sum(int(w.size) for w in w_list)
                          + int(wt_p.size) + int(bt_p.size) + int(mask.size))

    in_specs = [pl.BlockSpec((1, C0p, NHW), lambda n: (n, 0, 0))]
    in_specs += [pl.BlockSpec(tuple(w.shape), lambda n: (0, 0)) for w in w_list]
    in_specs += [pl.BlockSpec(tuple(wt_p.shape), lambda n: (0, 0)),
                 pl.BlockSpec(tuple(bt_p.shape), lambda n: (0, 0)),
                 pl.BlockSpec(tuple(mask.shape), lambda n: (0, 0))]

    out = pl.pallas_call(
        kernel,
        out_shape=jax.ShapeDtypeStruct((nblk, C0p, NHW), x_nchw.dtype),
        grid_spec=pltpu.PrefetchScalarGridSpec(
            num_scalar_prefetch=0,
            grid=(nblk,),                      # one NB-image block per program
            in_specs=in_specs,
            out_specs=pl.BlockSpec((1, C0p, NHW), lambda n: (n, 0, 0)),
            scratch_shapes=[pltpu.VMEM((Kcol, NHW), jnp.float32)]),
        compiler_params=pltpu.CompilerParams(
            dimension_semantics=("parallel",),
            vmem_limit_bytes=32 * 1024 * 1024),
        cost_estimate=pl.CostEstimate(
            flops=flops, transcendentals=N * L * Gp,
            bytes_accessed=bytes_accessed),
    )(xb, *w_list, wt_p, bt_p, mask)

    out = out.reshape(nblk, C0p, nb, HW).transpose(0, 2, 1, 3).reshape(N, C0p, HW)
    return out[:, :C0, :].reshape(N, C0, H, W)


def pack_params(w_full, wt_full, bt, C0, G):
    """Pack module weights into the kernel's fused, sublane-aligned layout.

    w_full[i]: (3, 3, C0 + G*i, G) HWIO dense conv weights (biases dropped: they
               cancel under affine-free InstanceNorm).
    wt_full  : (C0 + G*L, C0) transition 1x1 weight; bt: (C0,) transition bias.
    """
    L = len(w_full)
    C0p, Gp, Ks, base, Kcol = _layout(C0, G, L)
    w_list = []
    for i, w in enumerate(w_full):
        wp = jnp.zeros((Gp, Ks[i]), jnp.float32)
        for k in range(9):
            dh, dw = k // 3, k % 3
            wp = wp.at[:G, k * C0p: k * C0p + C0].set(w[dh, dw, :C0, :].T)
            for j in range(i):
                c0 = base[j] + k * Gp
                wp = wp.at[:G, c0: c0 + G].set(
                    w[dh, dw, C0 + G * j: C0 + G * (j + 1), :].T)
        w_list.append(wp)
    # Transition weight selects the center-tap rows of col (x at tap 4 of the
    # input region, y_j at tap 4 of group j, the last feature at its own rows).
    wt_p = jnp.zeros((C0p, Kcol), jnp.float32)
    wt_p = wt_p.at[:C0, 4 * C0p: 4 * C0p + C0].set(wt_full[:C0, :].T)
    for j in range(L):
        c0 = base[j] + (4 * Gp if j < L - 1 else 0)
        wt_p = wt_p.at[:C0, c0: c0 + G].set(
            wt_full[C0 + G * j: C0 + G * (j + 1), :].T)
    bt_p = jnp.zeros((C0p, 1), jnp.float32).at[:C0, 0].set(bt)
    return w_list, wt_p, bt_p


def res_dense_block_ref(x_nhwc, w_full, b, wt_full, bt, neg_slope=0.2, eps=1e-5):
    """Pure-JAX reference (NHWC), including the (cancelled) dense conv bias."""
    L = len(w_full)
    feat = x_nhwc
    for i in range(L):
        y = jax.lax.conv_general_dilated(
            feat, w_full[i], (1, 1), 'SAME',
            dimension_numbers=('NHWC', 'HWIO', 'NHWC'))
        y = y + b[i]
        mean = jnp.mean(y, axis=(1, 2), keepdims=True)
        var = jnp.mean((y - mean) ** 2, axis=(1, 2), keepdims=True)
        y = (y - mean) * jax.lax.rsqrt(var + eps)
        y = jnp.where(y > 0, y, neg_slope * y)
        feat = jnp.concatenate([feat, y], axis=-1)
    out = jnp.einsum('nhwc,co->nhwo', feat, wt_full) + bt
    return out + x_nhwc


if __name__ == "__main__":
    # Shapes consistent with the module:
    #   num_layers=3, input_channels=output_channels=8, growth_ratio=4
    #   x (PyTorch NCHW): (4, 8, 16, 16)  -> NB=2 images per grid step, grid=(2,)
    N, H, W = 4, 16, 16
    C0, G, L = 8, 4, 3

    key = jax.random.PRNGKey(0)
    keys = jax.random.split(key, 2 * L + 4)

    x_nchw = jax.random.normal(keys[0], (N, C0, H, W), dtype=jnp.float32)

    # Per-layer dense conv weights in HWIO layout (3, 3, C0 + G*i, G) + biases.
    w_full = [0.2 * jax.random.normal(keys[1 + i], (3, 3, C0 + G * i, G),
                                      dtype=jnp.float32) for i in range(L)]
    b = 0.1 * jax.random.normal(keys[1 + L], (L, G), dtype=jnp.float32)

    # Transition 1x1 conv: (C_total, C0) weight + (C0,) bias.
    c_total = C0 + G * L
    wt_full = 0.2 * jax.random.normal(keys[2 + L], (c_total, C0), jnp.float32)
    bt = 0.1 * jax.random.normal(keys[3 + L], (C0,), jnp.float32)

    w_list, wt_p, bt_p = pack_params(w_full, wt_full, bt, C0, G)

    out = jax.block_until_ready(res_dense_block(x_nchw, w_list, wt_p, bt_p))

    x_nhwc = jnp.transpose(x_nchw, (0, 2, 3, 1))
    ref_nhwc = jax.block_until_ready(
        res_dense_block_ref(x_nhwc, w_full, b, wt_full, bt))
    ref = jnp.transpose(ref_nhwc, (0, 3, 1, 2))

    assert out.shape == (N, C0, H, W)
    assert jnp.allclose(out, ref, rtol=2e-3, atol=2e-3), (
        float(jnp.max(jnp.abs(out - ref))))

    print("KERNEL_OK")
</pallas_src>

<mosaic_0001>
module attributes {stable_mosaic.version = 11 : i64} {
  func.func @kernel(%arg0: i32, %arg1: memref<1x8x512xf32, #tpu.memory_space<vmem>>, %arg2: memref<8x72xf32, #tpu.memory_space<vmem>>, %arg3: memref<8x144xf32, #tpu.memory_space<vmem>>, %arg4: memref<8x216xf32, #tpu.memory_space<vmem>>, %arg5: memref<8x224xf32, #tpu.memory_space<vmem>>, %arg6: memref<8x1xf32, #tpu.memory_space<vmem>>, %arg7: memref<9x512xf32, #tpu.memory_space<vmem>>, %arg8: memref<1x8x512xf32, #tpu.memory_space<vmem>>, %arg9: memref<224x512xf32, #tpu.memory_space<vmem>>) attributes {dimension_semantics = [#tpu.dimension_semantics<parallel>], iteration_bounds = array<i64: 2>, scalar_prefetch = 0 : i64, scratch_operands = 1 : i64, tpu.core_type = #tpu.core_type<tc>, window_params = [{transform_indices = @transform_0, window_bounds = array<i64: 1, 8, 512>}, {pipeline_mode = #tpu.pipeline_mode<synchronous>, transform_indices = @transform_1, window_bounds = array<i64: 8, 72>}, {pipeline_mode = #tpu.pipeline_mode<synchronous>, transform_indices = @transform_2, window_bounds = array<i64: 8, 144>}, {pipeline_mode = #tpu.pipeline_mode<synchronous>, transform_indices = @transform_3, window_bounds = array<i64: 8, 216>}, {pipeline_mode = #tpu.pipeline_mode<synchronous>, transform_indices = @transform_4, window_bounds = array<i64: 8, 224>}, {pipeline_mode = #tpu.pipeline_mode<synchronous>, transform_indices = @transform_5, window_bounds = array<i64: 8, 1>}, {pipeline_mode = #tpu.pipeline_mode<synchronous>, transform_indices = @transform_6, window_bounds = array<i64: 9, 512>}, {transform_indices = @transform_7, window_bounds = array<i64: 1, 8, 512>}]} {
    %c0 = arith.constant 0 : index
    %c0_0 = arith.constant 0 : index
    %c0_1 = arith.constant 0 : index
    %0 = vector.load %arg1[%c0, %c0_0, %c0_1] : memref<1x8x512xf32, #tpu.memory_space<vmem>>, vector<1x8x512xf32>
    %1 = vector.shape_cast %0 : vector<1x8x512xf32> to vector<8x512xf32>
    %c17_i32 = arith.constant 17 : i32
    %2 = tpu.dynamic_rotate %1 by %c17_i32 dim 1 : vector<8x512xf32>, i32 -> vector<8x512xf32>
    %c0_2 = arith.constant 0 : index
    %c0_3 = arith.constant 0 : index
    %3 = vector.load %arg7[%c0_2, %c0_3] : memref<9x512xf32, #tpu.memory_space<vmem>>, vector<1x512xf32>
    %4 = vector.broadcast %3 : vector<1x512xf32> to vector<8x512xf32>
    %5 = arith.mulf %2, %4 : vector<8x512xf32>
    %c0_4 = arith.constant 0 : index
    %c0_5 = arith.constant 0 : index
    %6 = vector.load %arg9[%c0_4, %c0_5] : memref<224x512xf32, #tpu.memory_space<vmem>>, vector<8x512xf32>
    tpu.vector_store %arg9[%c0_4, %c0_5], %5 {strides = array<i32>} : memref<224x512xf32, #tpu.memory_space<vmem>>, vector<8x512xf32>,
    %c16_i32 = arith.constant 16 : i32
    %7 = tpu.dynamic_rotate %1 by %c16_i32 dim 1 : vector<8x512xf32>, i32 -> vector<8x512xf32>
    %c1 = arith.constant 1 : index
    %c0_6 = arith.constant 0 : index
    %8 = vector.load %arg7[%c1, %c0_6] : memref<9x512xf32, #tpu.memory_space<vmem>>, vector<1x512xf32>
    %9 = vector.broadcast %8 : vector<1x512xf32> to vector<8x512xf32>
    %10 = arith.mulf %7, %9 : vector<8x512xf32>
    %c8 = arith.constant 8 : index
    %c0_7 = arith.constant 0 : index
    %11 = vector.load %arg9[%c8, %c0_7] : memref<224x512xf32, #tpu.memory_space<vmem>>, vector<8x512xf32>
    tpu.vector_store %arg9[%c8, %c0_7], %10 {strides = array<i32>} : memref<224x512xf32, #tpu.memory_space<vmem>>, vector<8x512xf32>,
    %c15_i32 = arith.constant 15 : i32
    %12 = tpu.dynamic_rotate %1 by %c15_i32 dim 1 : vector<8x512xf32>, i32 -> vector<8x512xf32>
    %c2 = arith.constant 2 : index
    %c0_8 = arith.constant 0 : index
    %13 = vector.load %arg7[%c2, %c0_8] : memref<9x512xf32, #tpu.memory_space<vmem>>, vector<1x512xf32>
    %14 = vector.broadcast %13 : vector<1x512xf32> to vector<8x512xf32>
    %15 = arith.mulf %12, %14 : vector<8x512xf32>
    %c16 = arith.constant 16 : index
    %c0_9 = arith.constant 0 : index
    %16 = vector.load %arg9[%c16, %c0_9] : memref<224x512xf32, #tpu.memory_space<vmem>>, vector<8x512xf32>
    tpu.vector_store %arg9[%c16, %c0_9], %15 {strides = array<i32>} : memref<224x512xf32, #tpu.memory_space<vmem>>, vector<8x512xf32>,
    %c1_i32 = arith.constant 1 : i32
    %17 = tpu.dynamic_rotate %1 by %c1_i32 dim 1 : vector<8x512xf32>, i32 -> vector<8x512xf32>
    %c3 = arith.constant 3 : index
    %c0_10 = arith.constant 0 : index
    %18 = vector.load %arg7[%c3, %c0_10] : memref<9x512xf32, #tpu.memory_space<vmem>>, vector<1x512xf32>
    %19 = vector.broadcast %18 : vector<1x512xf32> to vector<8x512xf32>
    %20 = arith.mulf %17, %19 : vector<8x512xf32>
    %c24 = arith.constant 24 : index
    %c0_11 = arith.constant 0 : index
    %21 = vector.load %arg9[%c24, %c0_11] : memref<224x512xf32, #tpu.memory_space<vmem>>, vector<8x512xf32>
    tpu.vector_store %arg9[%c24, %c0_11], %20 {strides = array<i32>} : memref<224x512xf32, #tpu.memory_space<vmem>>, vector<8x512xf32>,
    %c32 = arith.constant 32 : index
    %c0_12 = arith.constant 0 : index
    %22 = vector.load %arg9[%c32, %c0_12] : memref<224x512xf32, #tpu.memory_space<vmem>>, vector<8x512xf32>
    tpu.vector_store %arg9[%c32, %c0_12], %1 {strides = array<i32>} : memref<224x512xf32, #tpu.memory_space<vmem>>, vector<8x512xf32>,
    %c511_i32 = arith.constant 511 : i32
    %23 = tpu.dynamic_rotate %1 by %c511_i32 dim 1 : vector<8x512xf32>, i32 -> vector<8x512xf32>
    %c5 = arith.constant 5 : index
    %c0_13 = arith.constant 0 : index
    %24 = vector.load %arg7[%c5, %c0_13] : memref<9x512xf32, #tpu.memory_space<vmem>>, vector<1x512xf32>
    %25 = vector.broadcast %24 : vector<1x512xf32> to vector<8x512xf32>
    %26 = arith.mulf %23, %25 : vector<8x512xf32>
    %c40 = arith.constant 40 : index
    %c0_14 = arith.constant 0 : index
    %27 = vector.load %arg9[%c40, %c0_14] : memref<224x512xf32, #tpu.memory_space<vmem>>, vector<8x512xf32>
    tpu.vector_store %arg9[%c40, %c0_14], %26 {strides = array<i32>} : memref<224x512xf32, #tpu.memory_space<vmem>>, vector<8x512xf32>,
    %c497_i32 = arith.constant 497 : i32
    %28 = tpu.dynamic_rotate %1 by %c497_i32 dim 1 : vector<8x512xf32>, i32 -> vector<8x512xf32>
    %c6 = arith.constant 6 : index
    %c0_15 = arith.constant 0 : index
    %29 = vector.load %arg7[%c6, %c0_15] : memref<9x512xf32, #tpu.memory_space<vmem>>, vector<1x512xf32>
    %30 = vector.broadcast %29 : vector<1x512xf32> to vector<8x512xf32>
    %31 = arith.mulf %28, %30 : vector<8x512xf32>
    %c48 = arith.constant 48 : index
    %c0_16 = arith.constant 0 : index
    %32 = vector.load %arg9[%c48, %c0_16] : memref<224x512xf32, #tpu.memory_space<vmem>>, vector<8x512xf32>
    tpu.vector_store %arg9[%c48, %c0_16], %31 {strides = array<i32>} : memref<224x512xf32, #tpu.memory_space<vmem>>, vector<8x512xf32>,
    %c496_i32 = arith.constant 496 : i32
    %33 = tpu.dynamic_rotate %1 by %c496_i32 dim 1 : vector<8x512xf32>, i32 -> vector<8x512xf32>
    %c7 = arith.constant 7 : index
    %c0_17 = arith.constant 0 : index
    %34 = vector.load %arg7[%c7, %c0_17] : memref<9x512xf32, #tpu.memory_space<vmem>>, vector<1x512xf32>
    %35 = vector.broadcast %34 : vector<1x512xf32> to vector<8x512xf32>
    %36 = arith.mulf %33, %35 : vector<8x512xf32>
    %c56 = arith.constant 56 : index
    %c0_18 = arith.constant 0 : index
    %37 = vector.load %arg9[%c56, %c0_18] : memref<224x512xf32, #tpu.memory_space<vmem>>, vector<8x512xf32>
    tpu.vector_store %arg9[%c56, %c0_18], %36 {strides = array<i32>} : memref<224x512xf32, #tpu.memory_space<vmem>>, vector<8x512xf32>,
    %c495_i32 = arith.constant 495 : i32
    %38 = tpu.dynamic_rotate %1 by %c495_i32 dim 1 : vector<8x512xf32>, i32 -> vector<8x512xf32>
    %c8_19 = arith.constant 8 : index
    %c0_20 = arith.constant 0 : index
    %39 = vector.load %arg7[%c8_19, %c0_20] : memref<9x512xf32, #tpu.memory_space<vmem>>, vector<1x512xf32>
    %40 = vector.broadcast %39 : vector<1x512xf32> to vector<8x512xf32>
    %41 = arith.mulf %38, %40 : vector<8x512xf32>
    %c64 = arith.constant 64 : index
    %c0_21 = arith.constant 0 : index
    %42 = vector.load %arg9[%c64, %c0_21] : memref<224x512xf32, #tpu.memory_space<vmem>>, vector<8x512xf32>
    tpu.vector_store %arg9[%c64, %c0_21], %41 {strides = array<i32>} : memref<224x512xf32, #tpu.memory_space<vmem>>, vector<8x512xf32>,
    %c0_22 = arith.constant 0 : index
    %c0_23 = arith.constant 0 : index
    %43 = vector.load %arg2[%c0_22, %c0_23] : memref<8x72xf32, #tpu.memory_space<vmem>>, vector<8x72xf32>
    %c0_24 = arith.constant 0 : index
    %c0_25 = arith.constant 0 : index
    %44 = vector.load %arg9[%c0_24, %c0_25] : memref<224x512xf32, #tpu.memory_space<vmem>>, vector<72x512xf32>
    %cst = arith.constant dense<0.000000e+00> : vector<8x512xf32>
    %45 = tpu.matmul %43, %44, %cst {dimension_numbers = #tpu.dot_dimension_numbers<[1], [0], [0], [1], [0, 0, 1, 1], [], []>} : vector<8x72xf32>, vector<72x512xf32>, vector<8x512xf32> -> vector<8x512xf32>
    %46 = vector.extract_strided_slice %45 {offsets = [0, 0], sizes = [8, 256], strides = [1, 1]} : vector<8x512xf32> to vector<8x256xf32>
    %cst_26 = arith.constant dense<0.000000e+00> : vector<8xf32>
    %47 = vector.multi_reduction <add>, %46, %cst_26 [1] : vector<8x256xf32> to vector<8xf32>
    %48 = vector.shape_cast %47 : vector<8xf32> to vector<8x1xf32>
    %cst_27 = arith.constant 3.906250e-03 : f32
    %49 = vector.broadcast %cst_27 : f32 to vector<8x1xf32>
    %50 = arith.mulf %48, %49 : vector<8x1xf32>
    %51 = arith.mulf %46, %46 : vector<8x256xf32>
    %cst_28 = arith.constant dense<0.000000e+00> : vector<8xf32>
    %52 = vector.multi_reduction <add>, %51, %cst_28 [1] : vector<8x256xf32> to vector<8xf32>
    %53 = vector.shape_cast %52 : vector<8xf32> to vector<8x1xf32>
    %cst_29 = arith.constant 3.906250e-03 : f32
    %54 = vector.broadcast %cst_29 : f32 to vector<8x1xf32>
    %55 = arith.mulf %53, %54 : vector<8x1xf32>
    %56 = arith.mulf %50, %50 : vector<8x1xf32>
    %57 = arith.subf %55, %56 : vector<8x1xf32>
    %cst_30 = arith.constant 0.000000e+00 : f32
    %58 = vector.broadcast %cst_30 : f32 to vector<8x1xf32>
    %59 = arith.maximumf %57, %58 : vector<8x1xf32>
    %60 = vector.broadcast %50 : vector<8x1xf32> to vector<8x256xf32>
    %61 = arith.subf %46, %60 : vector<8x256xf32>
    %cst_31 = arith.constant 9.99999974E-6 : f32
    %62 = vector.broadcast %cst_31 : f32 to vector<8x1xf32>
    %63 = arith.addf %59, %62 : vector<8x1xf32>
    %64 = math.rsqrt %63 : vector<8x1xf32>
    %65 = vector.broadcast %64 : vector<8x1xf32> to vector<8x256xf32>
    %66 = arith.mulf %61, %65 : vector<8x256xf32>
    %cst_32 = arith.constant 2.000000e-01 : f32
    %67 = vector.broadcast %cst_32 : f32 to vector<8x256xf32>
    %68 = arith.mulf %67, %66 : vector<8x256xf32>
    %69 = arith.maximumf %66, %68 : vector<8x256xf32>
    %70 = vector.extract_strided_slice %45 {offsets = [0, 256], sizes = [8, 256], strides = [1, 1]} : vector<8x512xf32> to vector<8x256xf32>
    %cst_33 = arith.constant dense<0.000000e+00> : vector<8xf32>
    %71 = vector.multi_reduction <add>, %70, %cst_33 [1] : vector<8x256xf32> to vector<8xf32>
    %72 = vector.shape_cast %71 : vector<8xf32> to vector<8x1xf32>
    %cst_34 = arith.constant 3.906250e-03 : f32
    %73 = vector.broadcast %cst_34 : f32 to vector<8x1xf32>
    %74 = arith.mulf %72, %73 : vector<8x1xf32>
    %75 = arith.mulf %70, %70 : vector<8x256xf32>
    %cst_35 = arith.constant dense<0.000000e+00> : vector<8xf32>
    %76 = vector.multi_reduction <add>, %75, %cst_35 [1] : vector<8x256xf32> to vector<8xf32>
    %77 = vector.shape_cast %76 : vector<8xf32> to vector<8x1xf32>
    %cst_36 = arith.constant 3.906250e-03 : f32
    %78 = vector.broadcast %cst_36 : f32 to vector<8x1xf32>
    %79 = arith.mulf %77, %78 : vector<8x1xf32>
    %80 = arith.mulf %74, %74 : vector<8x1xf32>
    %81 = arith.subf %79, %80 : vector<8x1xf32>
    %cst_37 = arith.constant 0.000000e+00 : f32
    %82 = vector.broadcast %cst_37 : f32 to vector<8x1xf32>
    %83 = arith.maximumf %81, %82 : vector<8x1xf32>
    %84 = vector.broadcast %74 : vector<8x1xf32> to vector<8x256xf32>
    %85 = arith.subf %70, %84 : vector<8x256xf32>
    %cst_38 = arith.constant 9.99999974E-6 : f32
    %86 = vector.broadcast %cst_38 : f32 to vector<8x1xf32>
    %87 = arith.addf %83, %86 : vector<8x1xf32>
    %88 = math.rsqrt %87 : vector<8x1xf32>
    %89 = vector.broadcast %88 : vector<8x1xf32> to vector<8x256xf32>
    %90 = arith.mulf %85, %89 : vector<8x256xf32>
    %cst_39 = arith.constant 2.000000e-01 : f32
    %91 = vector.broadcast %cst_39 : f32 to vector<8x256xf32>
    %92 = arith.mulf %91, %90 : vector<8x256xf32>
    %93 = arith.maximumf %90, %92 : vector<8x256xf32>
    %94 = tpu.concatenate %69, %93 in 1 : vector<8x256xf32>, vector<8x256xf32> -> vector<8x512xf32>
    %c17_i32_40 = arith.constant 17 : i32
    %95 = tpu.dynamic_rotate %94 by %c17_i32_40 dim 1 : vector<8x512xf32>, i32 -> vector<8x512xf32>
    %c0_41 = arith.constant 0 : index
    %c0_42 = arith.constant 0 : index
    %96 = vector.load %arg7[%c0_41, %c0_42] : memref<9x512xf32, #tpu.memory_space<vmem>>, vector<1x512xf32>
    %97 = vector.broadcast %96 : vector<1x512xf32> to vector<8x512xf32>
    %98 = arith.mulf %95, %97 : vector<8x512xf32>
    %c72 = arith.constant 72 : index
    %c0_43 = arith.constant 0 : index
    %99 = vector.load %arg9[%c72, %c0_43] : memref<224x512xf32, #tpu.memory_space<vmem>>, vector<8x512xf32>
    tpu.vector_store %arg9[%c72, %c0_43], %98 {strides = array<i32>} : memref<224x512xf32, #tpu.memory_space<vmem>>, vector<8x512xf32>,
    %c16_i32_44 = arith.constant 16 : i32
    %100 = tpu.dynamic_rotate %94 by %c16_i32_44 dim 1 : vector<8x512xf32>, i32 -> vector<8x512xf32>
    %c1_45 = arith.constant 1 : index
    %c0_46 = arith.constant 0 : index
    %101 = vector.load %arg7[%c1_45, %c0_46] : memref<9x512xf32, #tpu.memory_space<vmem>>, vector<1x512xf32>
    %102 = vector.broadcast %101 : vector<1x512xf32> to vector<8x512xf32>
    %103 = arith.mulf %100, %102 : vector<8x512xf32>
    %c80 = arith.constant 80 : index
    %c0_47 = arith.constant 0 : index
    %104 = vector.load %arg9[%c80, %c0_47] : memref<224x512xf32, #tpu.memory_space<vmem>>, vector<8x512xf32>
    tpu.vector_store %arg9[%c80, %c0_47], %103 {strides = array<i32>} : memref<224x512xf32, #tpu.memory_space<vmem>>, vector<8x512xf32>,
    %c15_i32_48 = arith.constant 15 : i32
    %105 = tpu.dynamic_rotate %94 by %c15_i32_48 dim 1 : vector<8x512xf32>, i32 -> vector<8x512xf32>
    %c2_49 = arith.constant 2 : index
    %c0_50 = arith.constant 0 : index
    %106 = vector.load %arg7[%c2_49, %c0_50] : memref<9x512xf32, #tpu.memory_space<vmem>>, vector<1x512xf32>
    %107 = vector.broadcast %106 : vector<1x512xf32> to vector<8x512xf32>
    %108 = arith.mulf %105, %107 : vector<8x512xf32>
    %c88 = arith.constant 88 : index
    %c0_51 = arith.constant 0 : index
    %109 = vector.load %arg9[%c88, %c0_51] : memref<224x512xf32, #tpu.memory_space<vmem>>, vector<8x512xf32>
    tpu.vector_store %arg9[%c88, %c0_51], %108 {strides = array<i32>} : memref<224x512xf32, #tpu.memory_space<vmem>>, vector<8x512xf32>,
    %c1_i32_52 = arith.constant 1 : i32
    %110 = tpu.dynamic_rotate %94 by %c1_i32_52 dim 1 : vector<8x512xf32>, i32 -> vector<8x512xf32>
    %c3_53 = arith.constant 3 : index
    %c0_54 = arith.constant 0 : index
    %111 = vector.load %arg7[%c3_53, %c0_54] : memref<9x512xf32, #tpu.memory_space<vmem>>, vector<1x512xf32>
    %112 = vector.broadcast %111 : vector<1x512xf32> to vector<8x512xf32>
    %113 = arith.mulf %110, %112 : vector<8x512xf32>
    %c96 = arith.constant 96 : index
    %c0_55 = arith.constant 0 : index
    %114 = vector.load %arg9[%c96, %c0_55] : memref<224x512xf32, #tpu.memory_space<vmem>>, vector<8x512xf32>
    tpu.vector_store %arg9[%c96, %c0_55], %113 {strides = array<i32>} : memref<224x512xf32, #tpu.memory_space<vmem>>, vector<8x512xf32>,
    %c104 = arith.constant 104 : index
    %c0_56 = arith.constant 0 : index
    %115 = vector.load %arg9[%c104, %c0_56] : memref<224x512xf32, #tpu.memory_space<vmem>>, vector<8x512xf32>
    tpu.vector_store %arg9[%c104, %c0_56], %94 {strides = array<i32>} : memref<224x512xf32, #tpu.memory_space<vmem>>, vector<8x512xf32>,
    %c511_i32_57 = arith.constant 511 : i32
    %116 = tpu.dynamic_rotate %94 by %c511_i32_57 dim 1 : vector<8x512xf32>, i32 -> vector<8x512xf32>
    %c5_58 = arith.constant 5 : index
    %c0_59 = arith.constant 0 : index
    %117 = vector.load %arg7[%c5_58, %c0_59] : memref<9x512xf32, #tpu.memory_space<vmem>>, vector<1x512xf32>
    %118 = vector.broadcast %117 : vector<1x512xf32> to vector<8x512xf32>
    %119 = arith.mulf %116, %118 : vector<8x512xf32>
    %c112 = arith.constant 112 : index
    %c0_60 = arith.constant 0 : index
    %120 = vector.load %arg9[%c112, %c0_60] : memref<224x512xf32, #tpu.memory_space<vmem>>, vector<8x512xf32>
    tpu.vector_store %arg9[%c112, %c0_60], %119 {strides = array<i32>} : memref<224x512xf32, #tpu.memory_space<vmem>>, vector<8x512xf32>,
    %c497_i32_61 = arith.constant 497 : i32
    %121 = tpu.dynamic_rotate %94 by %c497_i32_61 dim 1 : vector<8x512xf32>, i32 -> vector<8x512xf32>
    %c6_62 = arith.constant 6 : index
    %c0_63 = arith.constant 0 : index
    %122 = vector.load %arg7[%c6_62, %c0_63] : memref<9x512xf32, #tpu.memory_space<vmem>>, vector<1x512xf32>
    %123 = vector.broadcast %122 : vector<1x512xf32> to vector<8x512xf32>
    %124 = arith.mulf %121, %123 : vector<8x512xf32>
    %c120 = arith.constant 120 : index
    %c0_64 = arith.constant 0 : index
    %125 = vector.load %arg9[%c120, %c0_64] : memref<224x512xf32, #tpu.memory_space<vmem>>, vector<8x512xf32>
    tpu.vector_store %arg9[%c120, %c0_64], %124 {strides = array<i32>} : memref<224x512xf32, #tpu.memory_space<vmem>>, vector<8x512xf32>,
    %c496_i32_65 = arith.constant 496 : i32
    %126 = tpu.dynamic_rotate %94 by %c496_i32_65 dim 1 : vector<8x512xf32>, i32 -> vector<8x512xf32>
    %c7_66 = arith.constant 7 : index
    %c0_67 = arith.constant 0 : index
    %127 = vector.load %arg7[%c7_66, %c0_67] : memref<9x512xf32, #tpu.memory_space<vmem>>, vector<1x512xf32>
    %128 = vector.broadcast %127 : vector<1x512xf32> to vector<8x512xf32>
    %129 = arith.mulf %126, %128 : vector<8x512xf32>
    %c128 = arith.constant 128 : index
    %c0_68 = arith.constant 0 : index
    %130 = vector.load %arg9[%c128, %c0_68] : memref<224x512xf32, #tpu.memory_space<vmem>>, vector<8x512xf32>
    tpu.vector_store %arg9[%c128, %c0_68], %129 {strides = array<i32>} : memref<224x512xf32, #tpu.memory_space<vmem>>, vector<8x512xf32>,
    %c495_i32_69 = arith.constant 495 : i32
    %131 = tpu.dynamic_rotate %94 by %c495_i32_69 dim 1 : vector<8x512xf32>, i32 -> vector<8x512xf32>
    %c8_70 = arith.constant 8 : index
    %c0_71 = arith.constant 0 : index
    %132 = vector.load %arg7[%c8_70, %c0_71] : memref<9x512xf32, #tpu.memory_space<vmem>>, vector<1x512xf32>
    %133 = vector.broadcast %132 : vector<1x512xf32> to vector<8x512xf32>
    %134 = arith.mulf %131, %133 : vector<8x512xf32>
    %c136 = arith.constant 136 : index
    %c0_72 = arith.constant 0 : index
    %135 = vector.load %arg9[%c136, %c0_72] : memref<224x512xf32, #tpu.memory_space<vmem>>, vector<8x512xf32>
    tpu.vector_store %arg9[%c136, %c0_72], %134 {strides = array<i32>} : memref<224x512xf32, #tpu.memory_space<vmem>>, vector<8x512xf32>,
    %c0_73 = arith.constant 0 : index
    %c0_74 = arith.constant 0 : index
    %136 = vector.load %arg3[%c0_73, %c0_74] : memref<8x144xf32, #tpu.memory_space<vmem>>, vector<8x144xf32>
    %c0_75 = arith.constant 0 : index
    %c0_76 = arith.constant 0 : index
    %137 = vector.load %arg9[%c0_75, %c0_76] : memref<224x512xf32, #tpu.memory_space<vmem>>, vector<144x512xf32>
    %cst_77 = arith.constant dense<0.000000e+00> : vector<8x512xf32>
    %138 = tpu.matmul %136, %137, %cst_77 {dimension_numbers = #tpu.dot_dimension_numbers<[1], [0], [0], [1], [0, 0, 1, 1], [], []>} : vector<8x144xf32>, vector<144x512xf32>, vector<8x512xf32> -> vector<8x512xf32>
    %139 = vector.extract_strided_slice %138 {offsets = [0, 0], sizes = [8, 256], strides = [1, 1]} : vector<8x512xf32> to vector<8x256xf32>
    %cst_78 = arith.constant dense<0.000000e+00> : vector<8xf32>
    %140 = vector.multi_reduction <add>, %139, %cst_78 [1] : vector<8x256xf32> to vector<8xf32>
    %141 = vector.shape_cast %140 : vector<8xf32> to vector<8x1xf32>
    %cst_79 = arith.constant 3.906250e-03 : f32
    %142 = vector.broadcast %cst_79 : f32 to vector<8x1xf32>
    %143 = arith.mulf %141, %142 : vector<8x1xf32>
    %144 = arith.mulf %139, %139 : vector<8x256xf32>
    %cst_80 = arith.constant dense<0.000000e+00> : vector<8xf32>
    %145 = vector.multi_reduction <add>, %144, %cst_80 [1] : vector<8x256xf32> to vector<8xf32>
    %146 = vector.shape_cast %145 : vector<8xf32> to vector<8x1xf32>
    %cst_81 = arith.constant 3.906250e-03 : f32
    %147 = vector.broadcast %cst_81 : f32 to vector<8x1xf32>
    %148 = arith.mulf %146, %147 : vector<8x1xf32>
    %149 = arith.mulf %143, %143 : vector<8x1xf32>
    %150 = arith.subf %148, %149 : vector<8x1xf32>
    %cst_82 = arith.constant 0.000000e+00 : f32
    %151 = vector.broadcast %cst_82 : f32 to vector<8x1xf32>
    %152 = arith.maximumf %150, %151 : vector<8x1xf32>
    %153 = vector.broadcast %143 : vector<8x1xf32> to vector<8x256xf32>
    %154 = arith.subf %139, %153 : vector<8x256xf32>
    %cst_83 = arith.constant 9.99999974E-6 : f32
    %155 = vector.broadcast %cst_83 : f32 to vector<8x1xf32>
    %156 = arith.addf %152, %155 : vector<8x1xf32>
    %157 = math.rsqrt %156 : vector<8x1xf32>
    %158 = vector.broadcast %157 : vector<8x1xf32> to vector<8x256xf32>
    %159 = arith.mulf %154, %158 : vector<8x256xf32>
    %cst_84 = arith.constant 2.000000e-01 : f32
    %160 = vector.broadcast %cst_84 : f32 to vector<8x256xf32>
    %161 = arith.mulf %160, %159 : vector<8x256xf32>
    %162 = arith.maximumf %159, %161 : vector<8x256xf32>
    %163 = vector.extract_strided_slice %138 {offsets = [0, 256], sizes = [8, 256], strides = [1, 1]} : vector<8x512xf32> to vector<8x256xf32>
    %cst_85 = arith.constant dense<0.000000e+00> : vector<8xf32>
    %164 = vector.multi_reduction <add>, %163, %cst_85 [1] : vector<8x256xf32> to vector<8xf32>
    %165 = vector.shape_cast %164 : vector<8xf32> to vector<8x1xf32>
    %cst_86 = arith.constant 3.906250e-03 : f32
    %166 = vector.broadcast %cst_86 : f32 to vector<8x1xf32>
    %167 = arith.mulf %165, %166 : vector<8x1xf32>
    %168 = arith.mulf %163, %163 : vector<8x256xf32>
    %cst_87 = arith.constant dense<0.000000e+00> : vector<8xf32>
    %169 = vector.multi_reduction <add>, %168, %cst_87 [1] : vector<8x256xf32> to vector<8xf32>
    %170 = vector.shape_cast %169 : vector<8xf32> to vector<8x1xf32>
    %cst_88 = arith.constant 3.906250e-03 : f32
    %171 = vector.broadcast %cst_88 : f32 to vector<8x1xf32>
    %172 = arith.mulf %170, %171 : vector<8x1xf32>
    %173 = arith.mulf %167, %167 : vector<8x1xf32>
    %174 = arith.subf %172, %173 : vector<8x1xf32>
    %cst_89 = arith.constant 0.000000e+00 : f32
    %175 = vector.broadcast %cst_89 : f32 to vector<8x1xf32>
    %176 = arith.maximumf %174, %175 : vector<8x1xf32>
    %177 = vector.broadcast %167 : vector<8x1xf32> to vector<8x256xf32>
    %178 = arith.subf %163, %177 : vector<8x256xf32>
    %cst_90 = arith.constant 9.99999974E-6 : f32
    %179 = vector.broadcast %cst_90 : f32 to vector<8x1xf32>
    %180 = arith.addf %176, %179 : vector<8x1xf32>
    %181 = math.rsqrt %180 : vector<8x1xf32>
    %182 = vector.broadcast %181 : vector<8x1xf32> to vector<8x256xf32>
    %183 = arith.mulf %178, %182 : vector<8x256xf32>
    %cst_91 = arith.constant 2.000000e-01 : f32
    %184 = vector.broadcast %cst_91 : f32 to vector<8x256xf32>
    %185 = arith.mulf %184, %183 : vector<8x256xf32>
    %186 = arith.maximumf %183, %185 : vector<8x256xf32>
    %187 = tpu.concatenate %162, %186 in 1 : vector<8x256xf32>, vector<8x256xf32> -> vector<8x512xf32>
    %c17_i32_92 = arith.constant 17 : i32
    %188 = tpu.dynamic_rotate %187 by %c17_i32_92 dim 1 : vector<8x512xf32>, i32 -> vector<8x512xf32>
    %c0_93 = arith.constant 0 : index
    %c0_94 = arith.constant 0 : index
    %189 = vector.load %arg7[%c0_93, %c0_94] : memref<9x512xf32, #tpu.memory_space<vmem>>, vector<1x512xf32>
    %190 = vector.broadcast %189 : vector<1x512xf32> to vector<8x512xf32>
    %191 = arith.mulf %188, %190 : vector<8x512xf32>
    %c144 = arith.constant 144 : index
    %c0_95 = arith.constant 0 : index
    %192 = vector.load %arg9[%c144, %c0_95] : memref<224x512xf32, #tpu.memory_space<vmem>>, vector<8x512xf32>
    tpu.vector_store %arg9[%c144, %c0_95], %191 {strides = array<i32>} : memref<224x512xf32, #tpu.memory_space<vmem>>, vector<8x512xf32>,
    %c16_i32_96 = arith.constant 16 : i32
    %193 = tpu.dynamic_rotate %187 by %c16_i32_96 dim 1 : vector<8x512xf32>, i32 -> vector<8x512xf32>
    %c1_97 = arith.constant 1 : index
    %c0_98 = arith.constant 0 : index
    %194 = vector.load %arg7[%c1_97, %c0_98] : memref<9x512xf32, #tpu.memory_space<vmem>>, vector<1x512xf32>
    %195 = vector.broadcast %194 : vector<1x512xf32> to vector<8x512xf32>
    %196 = arith.mulf %193, %195 : vector<8x512xf32>
    %c152 = arith.constant 152 : index
    %c0_99 = arith.constant 0 : index
    %197 = vector.load %arg9[%c152, %c0_99] : memref<224x512xf32, #tpu.memory_space<vmem>>, vector<8x512xf32>
    tpu.vector_store %arg9[%c152, %c0_99], %196 {strides = array<i32>} : memref<224x512xf32, #tpu.memory_space<vmem>>, vector<8x512xf32>,
    %c15_i32_100 = arith.constant 15 : i32
    %198 = tpu.dynamic_rotate %187 by %c15_i32_100 dim 1 : vector<8x512xf32>, i32 -> vector<8x512xf32>
    %c2_101 = arith.constant 2 : index
    %c0_102 = arith.constant 0 : index
    %199 = vector.load %arg7[%c2_101, %c0_102] : memref<9x512xf32, #tpu.memory_space<vmem>>, vector<1x512xf32>
    %200 = vector.broadcast %199 : vector<1x512xf32> to vector<8x512xf32>
    %201 = arith.mulf %198, %200 : vector<8x512xf32>
    %c160 = arith.constant 160 : index
    %c0_103 = arith.constant 0 : index
    %202 = vector.load %arg9[%c160, %c0_103] : memref<224x512xf32, #tpu.memory_space<vmem>>, vector<8x512xf32>
    tpu.vector_store %arg9[%c160, %c0_103], %201 {strides = array<i32>} : memref<224x512xf32, #tpu.memory_space<vmem>>, vector<8x512xf32>,
    %c1_i32_104 = arith.constant 1 : i32
    %203 = tpu.dynamic_rotate %187 by %c1_i32_104 dim 1 : vector<8x512xf32>, i32 -> vector<8x512xf32>
    %c3_105 = arith.constant 3 : index
    %c0_106 = arith.constant 0 : index
    %204 = vector.load %arg7[%c3_105, %c0_106] : memref<9x512xf32, #tpu.memory_space<vmem>>, vector<1x512xf32>
    %205 = vector.broadcast %204 : vector<1x512xf32> to vector<8x512xf32>
    %206 = arith.mulf %203, %205 : vector<8x512xf32>
    %c168 = arith.constant 168 : index
    %c0_107 = arith.constant 0 : index
    %207 = vector.load %arg9[%c168, %c0_107] : memref<224x512xf32, #tpu.memory_space<vmem>>, vector<8x512xf32>
    tpu.vector_store %arg9[%c168, %c0_107], %206 {strides = array<i32>} : memref<224x512xf32, #tpu.memory_space<vmem>>, vector<8x512xf32>,
    %c176 = arith.constant 176 : index
    %c0_108 = arith.constant 0 : index
    %208 = vector.load %arg9[%c176, %c0_108] : memref<224x512xf32, #tpu.memory_space<vmem>>, vector<8x512xf32>
    tpu.vector_store %arg9[%c176, %c0_108], %187 {strides = array<i32>} : memref<224x512xf32, #tpu.memory_space<vmem>>, vector<8x512xf32>,
    %c511_i32_109 = arith.constant 511 : i32
    %209 = tpu.dynamic_rotate %187 by %c511_i32_109 dim 1 : vector<8x512xf32>, i32 -> vector<8x512xf32>
    %c5_110 = arith.constant 5 : index
    %c0_111 = arith.constant 0 : index
    %210 = vector.load %arg7[%c5_110, %c0_111] : memref<9x512xf32, #tpu.memory_space<vmem>>, vector<1x512xf32>
    %211 = vector.broadcast %210 : vector<1x512xf32> to vector<8x512xf32>
    %212 = arith.mulf %209, %211 : vector<8x512xf32>
    %c184 = arith.constant 184 : index
    %c0_112 = arith.constant 0 : index
    %213 = vector.load %arg9[%c184, %c0_112] : memref<224x512xf32, #tpu.memory_space<vmem>>, vector<8x512xf32>
    tpu.vector_store %arg9[%c184, %c0_112], %212 {strides = array<i32>} : memref<224x512xf32, #tpu.memory_space<vmem>>, vector<8x512xf32>,
    %c497_i32_113 = arith.constant 497 : i32
    %214 = tpu.dynamic_rotate %187 by %c497_i32_113 dim 1 : vector<8x512xf32>, i32 -> vector<8x512xf32>
    %c6_114 = arith.constant 6 : index
    %c0_115 = arith.constant 0 : index
    %215 = vector.load %arg7[%c6_114, %c0_115] : memref<9x512xf32, #tpu.memory_space<vmem>>, vector<1x512xf32>
    %216 = vector.broadcast %215 : vector<1x512xf32> to vector<8x512xf32>
    %217 = arith.mulf %214, %216 : vector<8x512xf32>
    %c192 = arith.constant 192 : index
    %c0_116 = arith.constant 0 : index
    %218 = vector.load %arg9[%c192, %c0_116] : memref<224x512xf32, #tpu.memory_space<vmem>>, vector<8x512xf32>
    tpu.vector_store %arg9[%c192, %c0_116], %217 {strides = array<i32>} : memref<224x512xf32, #tpu.memory_space<vmem>>, vector<8x512xf32>,
    %c496_i32_117 = arith.constant 496 : i32
    %219 = tpu.dynamic_rotate %187 by %c496_i32_117 dim 1 : vector<8x512xf32>, i32 -> vector<8x512xf32>
    %c7_118 = arith.constant 7 : index
    %c0_119 = arith.constant 0 : index
    %220 = vector.load %arg7[%c7_118, %c0_119] : memref<9x512xf32, #tpu.memory_space<vmem>>, vector<1x512xf32>
    %221 = vector.broadcast %220 : vector<1x512xf32> to vector<8x512xf32>
    %222 = arith.mulf %219, %221 : vector<8x512xf32>
    %c200 = arith.constant 200 : index
    %c0_120 = arith.constant 0 : index
    %223 = vector.load %arg9[%c200, %c0_120] : memref<224x512xf32, #tpu.memory_space<vmem>>, vector<8x512xf32>
    tpu.vector_store %arg9[%c200, %c0_120], %222 {strides = array<i32>} : memref<224x512xf32, #tpu.memory_space<vmem>>, vector<8x512xf32>,
    %c495_i32_121 = arith.constant 495 : i32
    %224 = tpu.dynamic_rotate %187 by %c495_i32_121 dim 1 : vector<8x512xf32>, i32 -> vector<8x512xf32>
    %c8_122 = arith.constant 8 : index
    %c0_123 = arith.constant 0 : index
    %225 = vector.load %arg7[%c8_122, %c0_123] : memref<9x512xf32, #tpu.memory_space<vmem>>, vector<1x512xf32>
    %226 = vector.broadcast %225 : vector<1x512xf32> to vector<8x512xf32>
    %227 = arith.mulf %224, %226 : vector<8x512xf32>
    %c208 = arith.constant 208 : index
    %c0_124 = arith.constant 0 : index
    %228 = vector.load %arg9[%c208, %c0_124] : memref<224x512xf32, #tpu.memory_space<vmem>>, vector<8x512xf32>
    tpu.vector_store %arg9[%c208, %c0_124], %227 {strides = array<i32>} : memref<224x512xf32, #tpu.memory_space<vmem>>, vector<8x512xf32>,
    %c0_125 = arith.constant 0 : index
    %c0_126 = arith.constant 0 : index
    %229 = vector.load %arg4[%c0_125, %c0_126] : memref<8x216xf32, #tpu.memory_space<vmem>>, vector<8x216xf32>
    %c0_127 = arith.constant 0 : index
    %c0_128 = arith.constant 0 : index
    %230 = vector.load %arg9[%c0_127, %c0_128] : memref<224x512xf32, #tpu.memory_space<vmem>>, vector<216x512xf32>
    %cst_129 = arith.constant dense<0.000000e+00> : vector<8x512xf32>
    %231 = tpu.matmul %229, %230, %cst_129 {dimension_numbers = #tpu.dot_dimension_numbers<[1], [0], [0], [1], [0, 0, 1, 1], [], []>} : vector<8x216xf32>, vector<216x512xf32>, vector<8x512xf32> -> vector<8x512xf32>
    %232 = vector.extract_strided_slice %231 {offsets = [0, 0], sizes = [8, 256], strides = [1, 1]} : vector<8x512xf32> to vector<8x256xf32>
    %cst_130 = arith.constant dense<0.000000e+00> : vector<8xf32>
    %233 = vector.multi_reduction <add>, %232, %cst_130 [1] : vector<8x256xf32> to vector<8xf32>
    %234 = vector.shape_cast %233 : vector<8xf32> to vector<8x1xf32>
    %cst_131 = arith.constant 3.906250e-03 : f32
    %235 = vector.broadcast %cst_131 : f32 to vector<8x1xf32>
    %236 = arith.mulf %234, %235 : vector<8x1xf32>
    %237 = arith.mulf %232, %232 : vector<8x256xf32>
    %cst_132 = arith.constant dense<0.000000e+00> : vector<8xf32>
    %238 = vector.multi_reduction <add>, %237, %cst_132 [1] : vector<8x256xf32> to vector<8xf32>
    %239 = vector.shape_cast %238 : vector<8xf32> to vector<8x1xf32>
    %cst_133 = arith.constant 3.906250e-03 : f32
    %240 = vector.broadcast %cst_133 : f32 to vector<8x1xf32>
    %241 = arith.mulf %239, %240 : vector<8x1xf32>
    %242 = arith.mulf %236, %236 : vector<8x1xf32>
    %243 = arith.subf %241, %242 : vector<8x1xf32>
    %cst_134 = arith.constant 0.000000e+00 : f32
    %244 = vector.broadcast %cst_134 : f32 to vector<8x1xf32>
    %245 = arith.maximumf %243, %244 : vector<8x1xf32>
    %246 = vector.broadcast %236 : vector<8x1xf32> to vector<8x256xf32>
    %247 = arith.subf %232, %246 : vector<8x256xf32>
    %cst_135 = arith.constant 9.99999974E-6 : f32
    %248 = vector.broadcast %cst_135 : f32 to vector<8x1xf32>
    %249 = arith.addf %245, %248 : vector<8x1xf32>
    %250 = math.rsqrt %249 : vector<8x1xf32>
    %251 = vector.broadcast %250 : vector<8x1xf32> to vector<8x256xf32>
    %252 = arith.mulf %247, %251 : vector<8x256xf32>
    %cst_136 = arith.constant 2.000000e-01 : f32
    %253 = vector.broadcast %cst_136 : f32 to vector<8x256xf32>
    %254 = arith.mulf %253, %252 : vector<8x256xf32>
    %255 = arith.maximumf %252, %254 : vector<8x256xf32>
    %256 = vector.extract_strided_slice %231 {offsets = [0, 256], sizes = [8, 256], strides = [1, 1]} : vector<8x512xf32> to vector<8x256xf32>
    %cst_137 = arith.constant dense<0.000000e+00> : vector<8xf32>
    %257 = vector.multi_reduction <add>, %256, %cst_137 [1] : vector<8x256xf32> to vector<8xf32>
    %258 = vector.shape_cast %257 : vector<8xf32> to vector<8x1xf32>
    %cst_138 = arith.constant 3.906250e-03 : f32
    %259 = vector.broadcast %cst_138 : f32 to vector<8x1xf32>
    %260 = arith.mulf %258, %259 : vector<8x1xf32>
    %261 = arith.mulf %256, %256 : vector<8x256xf32>
    %cst_139 = arith.constant dense<0.000000e+00> : vector<8xf32>
    %262 = vector.multi_reduction <add>, %261, %cst_139 [1] : vector<8x256xf32> to vector<8xf32>
    %263 = vector.shape_cast %262 : vector<8xf32> to vector<8x1xf32>
    %cst_140 = arith.constant 3.906250e-03 : f32
    %264 = vector.broadcast %cst_140 : f32 to vector<8x1xf32>
    %265 = arith.mulf %263, %264 : vector<8x1xf32>
    %266 = arith.mulf %260, %260 : vector<8x1xf32>
    %267 = arith.subf %265, %266 : vector<8x1xf32>
    %cst_141 = arith.constant 0.000000e+00 : f32
    %268 = vector.broadcast %cst_141 : f32 to vector<8x1xf32>
    %269 = arith.maximumf %267, %268 : vector<8x1xf32>
    %270 = vector.broadcast %260 : vector<8x1xf32> to vector<8x256xf32>
    %271 = arith.subf %256, %270 : vector<8x256xf32>
    %cst_142 = arith.constant 9.99999974E-6 : f32
    %272 = vector.broadcast %cst_142 : f32 to vector<8x1xf32>
    %273 = arith.addf %269, %272 : vector<8x1xf32>
    %274 = math.rsqrt %273 : vector<8x1xf32>
    %275 = vector.broadcast %274 : vector<8x1xf32> to vector<8x256xf32>
    %276 = arith.mulf %271, %275 : vector<8x256xf32>
    %cst_143 = arith.constant 2.000000e-01 : f32
    %277 = vector.broadcast %cst_143 : f32 to vector<8x256xf32>
    %278 = arith.mulf %277, %276 : vector<8x256xf32>
    %279 = arith.maximumf %276, %278 : vector<8x256xf32>
    %280 = tpu.concatenate %255, %279 in 1 : vector<8x256xf32>, vector<8x256xf32> -> vector<8x512xf32>
    %c216 = arith.constant 216 : index
    %c0_144 = arith.constant 0 : index
    %281 = vector.load %arg9[%c216, %c0_144] : memref<224x512xf32, #tpu.memory_space<vmem>>, vector<8x512xf32>
    tpu.vector_store %arg9[%c216, %c0_144], %280 {strides = array<i32>} : memref<224x512xf32, #tpu.memory_space<vmem>>, vector<8x512xf32>,
    %c0_145 = arith.constant 0 : index
    %c0_146 = arith.constant 0 : index
    %282 = vector.load %arg5[%c0_145, %c0_146] : memref<8x224xf32, #tpu.memory_space<vmem>>, vector<8x224xf32>
    %c0_147 = arith.constant 0 : index
    %c0_148 = arith.constant 0 : index
    %283 = vector.load %arg9[%c0_147, %c0_148] : memref<224x512xf32, #tpu.memory_space<vmem>>, vector<224x512xf32>
    %cst_149 = arith.constant dense<0.000000e+00> : vector<8x512xf32>
    %284 = tpu.matmul %282, %283, %cst_149 {dimension_numbers = #tpu.dot_dimension_numbers<[1], [0], [0], [1], [0, 0, 1, 1], [], []>} : vector<8x224xf32>, vector<224x512xf32>, vector<8x512xf32> -> vector<8x512xf32>
    %c0_150 = arith.constant 0 : index
    %c0_151 = arith.constant 0 : index
    %285 = vector.load %arg6[%c0_150, %c0_151] : memref<8x1xf32, #tpu.memory_space<vmem>>, vector<8x1xf32>
    %286 = vector.broadcast %285 : vector<8x1xf32> to vector<8x512xf32>
    %287 = arith.addf %284, %286 : vector<8x512xf32>
    %288 = arith.addf %287, %1 : vector<8x512xf32>
    %c0_152 = arith.constant 0 : index
    %c0_153 = arith.constant 0 : index
    %c0_154 = arith.constant 0 : index
    %289 = vector.load %arg8[%c0_152, %c0_153, %c0_154] : memref<1x8x512xf32, #tpu.memory_space<vmem>>, vector<1x8x512xf32>
    %290 = vector.shape_cast %289 : vector<1x8x512xf32> to vector<8x512xf32>
    %291 = vector.shape_cast %288 : vector<8x512xf32> to vector<1x8x512xf32>
    tpu.vector_store %arg8[%c0_152, %c0_153, %c0_154], %291 {strides = array<i32>} : memref<1x8x512xf32, #tpu.memory_space<vmem>>, vector<1x8x512xf32>,
    return
  }
  func.func @transform_0(%arg0: i32) -> (i32, i32, i32) {
    %c0_i32 = arith.constant 0 : i32
    %c0_i32_0 = arith.constant 0 : i32
    %c0_i32_1 = arith.constant 0 : i32
    return %arg0, %c0_i32, %c0_i32_0 : i32, i32, i32
  }
  func.func @transform_1(%arg0: i32) -> (i32, i32) {
    %c0_i32 = arith.constant 0 : i32
    %c0_i32_0 = arith.constant 0 : i32
    %c0_i32_1 = arith.constant 0 : i32
    return %c0_i32, %c0_i32_0 : i32, i32
  }
  func.func @transform_2(%arg0: i32) -> (i32, i32) {
    %c0_i32 = arith.constant 0 : i32
    %c0_i32_0 = arith.constant 0 : i32
    %c0_i32_1 = arith.constant 0 : i32
    return %c0_i32, %c0_i32_0 : i32, i32
  }
  func.func @transform_3(%arg0: i32) -> (i32, i32) {
    %c0_i32 = arith.constant 0 : i32
    %c0_i32_0 = arith.constant 0 : i32
    %c0_i32_1 = arith.constant 0 : i32
    return %c0_i32, %c0_i32_0 : i32, i32
  }
  func.func @transform_4(%arg0: i32) -> (i32, i32) {
    %c0_i32 = arith.constant 0 : i32
    %c0_i32_0 = arith.constant 0 : i32
    %c0_i32_1 = arith.constant 0 : i32
    return %c0_i32, %c0_i32_0 : i32, i32
  }
  func.func @transform_5(%arg0: i32) -> (i32, i32) {
    %c0_i32 = arith.constant 0 : i32
    %c0_i32_0 = arith.constant 0 : i32
    %c0_i32_1 = arith.constant 0 : i32
    return %c0_i32, %c0_i32_0 : i32, i32
  }
  func.func @transform_6(%arg0: i32) -> (i32, i32) {
    %c0_i32 = arith.constant 0 : i32
    %c0_i32_0 = arith.constant 0 : i32
    %c0_i32_1 = arith.constant 0 : i32
    return %c0_i32, %c0_i32_0 : i32, i32
  }
  func.func @transform_7(%arg0: i32) -> (i32, i32, i32) {
    %c0_i32 = arith.constant 0 : i32
    %c0_i32_0 = arith.constant 0 : i32
    %c0_i32_1 = arith.constant 0 : i32
    return %arg0, %c0_i32, %c0_i32_0 : i32, i32, i32
  }
}

</mosaic_0001>

<llo_original>
// kernel: tpu_custom_call.1
$region0: #{tpu_custom_call.1}
  #allocation0 [shape = 'u32[]', space=smem, size = 0x4, offset = 0x4, fixed_abs, tag = 'smem constant byte address 0x4 - core index']
  #allocation1 [shape = 'u32[144,128]{1,0:T(1,128)}', space=vmem, size = 0x12000, scoped, tag = 'internal scratch']
  #allocation2 [shape = 'f32[224,512]{1,0:T(8,128)}', space=vmem, size = 0x70000, scoped, tag = 'scratch operand']
  %s0 = inlined_call_operand.hbm [shape: f32[2,8,512], index: 0, kind: input, shape index: {}]
  %s1 = inlined_call_operand.hbm [shape: f32[8,72], index: 1, kind: input, shape index: {}]
  %s2 = inlined_call_operand.vmem [shape: f32[8,144], index: 2, kind: input, shape index: {}]
  %s3 = inlined_call_operand.hbm [shape: f32[8,216], index: 3, kind: input, shape index: {}]
  %s4 = inlined_call_operand.hbm [shape: f32[8,224], index: 4, kind: input, shape index: {}]
  %s5 = inlined_call_operand.vmem [shape: f32[8,1], index: 5, kind: input, shape index: {}]
  %s6 = inlined_call_operand.hbm [shape: f32[9,512], index: 6, kind: input, shape index: {}]
  %s7 = inlined_call_operand.hbm [shape: f32[2,8,512], index: 7, kind: output, shape index: {}]
  %s8 = sld [smem:[#allocation0]]
  $region81: #{tpu_custom_call.1} parent=0
    _
  %s10 = ssub.s32 1, %s8
  %s11 = scalar_select 0, %s10, %s8
  $region1: #{tpu_custom_call.1} parent=0
    #allocation3 [shape = 'u8[32768]{0}', space=vmem, size = 0x8000, scoped, tag = 'input window, operand 0']
    #allocation4 [shape = 's32[2]{0}', space=sflag, size = 0x8, scoped, tag = 'scoped memory for tpu_custom_call.1']
    #allocation5 [shape = 's32[2]{0}', space=sflag, size = 0x8, scoped, tag = 'scoped memory for tpu_custom_call.1']
    #allocation6 [shape = 'u8[4096]{0}', space=vmem, size = 0x1000, scoped, tag = 'input window, operand 1, single buffered']
    #allocation7 [shape = 's32[1]{0}', space=sflag, size = 0x4, scoped, tag = 'scoped memory for tpu_custom_call.1']
    #allocation8 [shape = 'u8[8192]{0}', space=vmem, size = 0x2000, scoped, tag = 'input window, operand 3, single buffered']
    #allocation9 [shape = 'u8[8192]{0}', space=vmem, size = 0x2000, scoped, tag = 'input window, operand 4, single buffered']
    #allocation10 [shape = 's32[1]{0}', space=sflag, size = 0x4, scoped, tag = 'scoped memory for tpu_custom_call.1']
    #allocation11 [shape = 'u8[32768]{0}', space=vmem, size = 0x8000, scoped, tag = 'input window, operand 6, single buffered']
    #allocation12 [shape = 'u8[32768]{0}', space=vmem, size = 0x8000, scoped, tag = 'output window, operand 0']
    %12 = vsyncpa [#allocation4], 0
    %s13 = scalar_lea.sflag [#allocation4], 1
    %14 = vsyncpa %s13, 0
    %15 = vsyncpa [#allocation7], 0
    %16 = vsyncpa [#allocation10], 0
    %17 = vsyncpa [#allocation5], 0
    %s18 = scalar_lea.sflag [#allocation5], 1
    %19 = vsyncpa %s18, 0
    loop: start=0, step=1, limit=4
    $region2: #{tpu_custom_call.1} parent=1 // loop_pre_header
      _
    $region3: #{tpu_custom_call.1} parent=1 // loop_header
      %s21 = sphi 0, %s25
      %p22 = scmp.ge.s32.totalorder %s21, 4
      %s31 = sphi 0, %s33
      %s34 = sphi 0, %s31
      %s35 = sphi 0, %s34
      %s51 = sphi 0, %s35
      %s55 = sphi 0, %s55
      %s57 = sphi 0, %s55
      %s58 = sphi 0, %s57
      %s72 = sphi 0, %s58
      %s76 = sphi 0, %s76
      %s78 = sphi 0, %s76
      %s79 = sphi 0, %s78
      %s93 = sphi 0, %s79
      %s97 = sphi 0, %s97
      %s99 = sphi 0, %s97
      %s100 = sphi 0, %s99
      %s114 = sphi 0, %s100
      %s118 = sphi 0, %s118
      %s120 = sphi 0, %s118
      %s121 = sphi 0, %s120
      %s135 = sphi 0, %s121
      %s139 = sphi 0, %s139
      %s141 = sphi 0, %s139
      %s142 = sphi 0, %s141
      %s156 = sphi 0, %s142
      %s160 = sphi 0, %s160
      %s162 = sphi 0, %s160
      %s163 = sphi 0, %s162
      %s177 = sphi 0, %s163
      %s183 = sphi 0, %s185
      %s186 = sphi 0, %s183
      %s187 = sphi 0, %s186
      %s203 = sphi 0, %s187
    $region4: #{tpu_custom_call.1} parent=1 // loop_header_branch
      %24 = sbr.rel (%p22) target = $region8
    $region5: #{tpu_custom_call.1} parent=1 // loop_body
      %s26 = ssub.s32 %s21, 1
      %s27 = ssub.s32 %s21, 2
      %s28 = sadd.s32 %s21, 1
      %s29 = ssub.s32 %s21, %s28
      %p30 = scmp.eq.s32.totalorder %s29, 0
      %s32 = sadd.s32 %s31, 1
      %s33 = scalar_select %p30, %s31, %s32
      %p36 = pneg %p30
      %p37 = scmp.eq.s32.totalorder %s21, 1
      %p38 = por %p36, %p37
      %p39 = scmp.ne.s32.totalorder %s31, %s34
      %p40 = scmp.eq.s32.totalorder %s21, 0
      %p41 = por %p39, %p40
      %p42 = scmp.ne.s32.totalorder %s31, %s34
      %p43 = scmp.eq.s32.totalorder %s26, 1
      %p44 = por %p42, %p43
      %p45 = scmp.ne.s32.totalorder %s34, %s35
      %p46 = scmp.eq.s32.totalorder %s26, 0
      %p47 = por %p45, %p46
      %p48 = scmp.ne.s32.totalorder %s34, %s35
      %p49 = scmp.eq.s32.totalorder %s27, 1
      %p50 = por %p48, %p49
      %p52 = scmp.ne.s32.totalorder %s35, %s51
      %p53 = scmp.eq.s32.totalorder %s27, 0
      %p54 = por %p52, %p53
      %s56 = sadd.s32 %s55, 1
      %p59 = scmp.eq.s32.totalorder %s21, 1
      %p60 = scmp.ne.s32.totalorder %s55, %s57
      %p61 = scmp.eq.s32.totalorder %s21, 0
      %p62 = por %p60, %p61
      %p63 = scmp.ne.s32.totalorder %s55, %s57
      %p64 = scmp.eq.s32.totalorder %s26, 1
      %p65 = por %p63, %p64
      %p66 = scmp.ne.s32.totalorder %s57, %s58
      %p67 = scmp.eq.s32.totalorder %s26, 0
      %p68 = por %p66, %p67
      %p69 = scmp.ne.s32.totalorder %s57, %s58
      %p70 = scmp.eq.s32.totalorder %s27, 1
      %p71 = por %p69, %p70
      %p73 = scmp.ne.s32.totalorder %s58, %s72
      %p74 = scmp.eq.s32.totalorder %s27, 0
      %p75 = por %p73, %p74
      %s77 = sadd.s32 %s76, 1
      %p80 = scmp.eq.s32.totalorder %s21, 1
      %p81 = scmp.ne.s32.totalorder %s76, %s78
      %p82 = scmp.eq.s32.totalorder %s21, 0
      %p83 = por %p81, %p82
      %p84 = scmp.ne.s32.totalorder %s76, %s78
      %p85 = scmp.eq.s32.totalorder %s26, 1
      %p86 = por %p84, %p85
      %p87 = scmp.ne.s32.totalorder %s78, %s79
      %p88 = scmp.eq.s32.totalorder %s26, 0
      %p89 = por %p87, %p88
      %p90 = scmp.ne.s32.totalorder %s78, %s79
      %p91 = scmp.eq.s32.totalorder %s27, 1
      %p92 = por %p90, %p91
      %p94 = scmp.ne.s32.totalorder %s79, %s93
      %p95 = scmp.eq.s32.totalorder %s27, 0
      %p96 = por %p94, %p95
      %s98 = sadd.s32 %s97, 1
      %p101 = scmp.eq.s32.totalorder %s21, 1
      %p102 = scmp.ne.s32.totalorder %s97, %s99
      %p103 = scmp.eq.s32.totalorder %s21, 0
      %p104 = por %p102, %p103
      %p105 = scmp.ne.s32.totalorder %s97, %s99
      %p106 = scmp.eq.s32.totalorder %s26, 1
      %p107 = por %p105, %p106
      %p108 = scmp.ne.s32.totalorder %s99, %s100
      %p109 = scmp.eq.s32.totalorder %s26, 0
      %p110 = por %p108, %p109
      %p111 = scmp.ne.s32.totalorder %s99, %s100
      %p112 = scmp.eq.s32.totalorder %s27, 1
      %p113 = por %p111, %p112
      %p115 = scmp.ne.s32.totalorder %s100, %s114
      %p116 = scmp.eq.s32.totalorder %s27, 0
      %p117 = por %p115, %p116
      %s119 = sadd.s32 %s118, 1
      %p122 = scmp.eq.s32.totalorder %s21, 1
      %p123 = scmp.ne.s32.totalorder %s118, %s120
      %p124 = scmp.eq.s32.totalorder %s21, 0
      %p125 = por %p123, %p124
      %p126 = scmp.ne.s32.totalorder %s118, %s120
      %p127 = scmp.eq.s32.totalorder %s26, 1
      %p128 = por %p126, %p127
      %p129 = scmp.ne.s32.totalorder %s120, %s121
      %p130 = scmp.eq.s32.totalorder %s26, 0
      %p131 = por %p129, %p130
      %p132 = scmp.ne.s32.totalorder %s120, %s121
      %p133 = scmp.eq.s32.totalorder %s27, 1
      %p134 = por %p132, %p133
      %p136 = scmp.ne.s32.totalorder %s121, %s135
      %p137 = scmp.eq.s32.totalorder %s27, 0
      %p138 = por %p136, %p137
      %s140 = sadd.s32 %s139, 1
      %p143 = scmp.eq.s32.totalorder %s21, 1
      %p144 = scmp.ne.s32.totalorder %s139, %s141
      %p145 = scmp.eq.s32.totalorder %s21, 0
      %p146 = por %p144, %p145
      %p147 = scmp.ne.s32.totalorder %s139, %s141
      %p148 = scmp.eq.s32.totalorder %s26, 1
      %p149 = por %p147, %p148
      %p150 = scmp.ne.s32.totalorder %s141, %s142
      %p151 = scmp.eq.s32.totalorder %s26, 0
      %p152 = por %p150, %p151
      %p153 = scmp.ne.s32.totalorder %s141, %s142
      %p154 = scmp.eq.s32.totalorder %s27, 1
      %p155 = por %p153, %p154
      %p157 = scmp.ne.s32.totalorder %s142, %s156
      %p158 = scmp.eq.s32.totalorder %s27, 0
      %p159 = por %p157, %p158
      %s161 = sadd.s32 %s160, 1
      %p164 = scmp.eq.s32.totalorder %s21, 1
      %p165 = scmp.ne.s32.totalorder %s160, %s162
      %p166 = scmp.eq.s32.totalorder %s21, 0
      %p167 = por %p165, %p166
      %p168 = scmp.ne.s32.totalorder %s160, %s162
      %p169 = scmp.eq.s32.totalorder %s26, 1
      %p170 = por %p168, %p169
      %p171 = scmp.ne.s32.totalorder %s162, %s163
      %p172 = scmp.eq.s32.totalorder %s26, 0
      %p173 = por %p171, %p172
      %p174 = scmp.ne.s32.totalorder %s162, %s163
      %p175 = scmp.eq.s32.totalorder %s27, 1
      %p176 = por %p174, %p175
      %p178 = scmp.ne.s32.totalorder %s163, %s177
      %p179 = scmp.eq.s32.totalorder %s27, 0
      %p180 = por %p178, %p179
      %s181 = ssub.s32 %s21, %s28
      %p182 = scmp.eq.s32.totalorder %s181, 0
      %s184 = sadd.s32 %s183, 1
      %s185 = scalar_select %p182, %s183, %s184
      %p188 = pneg %p182
      %p189 = scmp.eq.s32.totalorder %s21, 1
      %p190 = por %p188, %p189
      %p191 = scmp.ne.s32.totalorder %s183, %s186
      %p192 = scmp.eq.s32.totalorder %s21, 0
      %p193 = por %p191, %p192
      %p194 = scmp.ne.s32.totalorder %s183, %s186
      %p195 = scmp.eq.s32.totalorder %s26, 1
      %p196 = por %p194, %p195
      %p197 = scmp.ne.s32.totalorder %s186, %s187
      %p198 = scmp.eq.s32.totalorder %s26, 0
      %p199 = por %p197, %p198
      %p200 = scmp.ne.s32.totalorder %s186, %s187
      %p201 = scmp.eq.s32.totalorder %s27, 1
      %p202 = por %p200, %p201
      %p204 = scmp.ne.s32.totalorder %s187, %s203
      %p205 = scmp.eq.s32.totalorder %s27, 0
      %p206 = por %p204, %p205
      %p207 = scmp.le.s32.totalorder 1, %s21
      %p208 = scmp.lt.s32.totalorder %s21, 3
      %p209 = pnand %p207, %p208
      %p210 = pneg %p209
      // Predicated region
      $region9: #{tpu_custom_call.1} parent=5 // pred_check
        _
      $region10: #{tpu_custom_call.1} parent=5 // pred_check_branch
        %212 = sbr.rel (%p209) target = $region12
      $region11: #{tpu_custom_call.1} parent=5 // pred_region
        %s213 = ssub.s32 %s21, 1
        // Predicated region
        $region13: #{tpu_custom_call.1} parent=11 // pred_check
          %p214 = pneg %p68
        $region14: #{tpu_custom_call.1} parent=11 // pred_check_branch
          %216 = sbr.rel (%p214) target = $region16
        $region15: #{tpu_custom_call.1} parent=11 // pred_region
          %s218 = ssub.s32 128, 128
          %219 = vsyncadd [#allocation7], %s218
          %s221 = sshll.u32 [#allocation6], 4
          %s222 = int_to_ptr.vmem [resolvable:$true] %s221
          %224 = dma.hbm_to_vmem [thread:$0]  %s1, 128, %s222, [#allocation7]
        $region16: #{tpu_custom_call.1} parent=11 // pred_fallthru
          _
        // Predicated region
        $region17: #{tpu_custom_call.1} parent=11 // pred_check
          %p225 = pneg %p89
        $region18: #{tpu_custom_call.1} parent=11 // pred_check_branch
          %227 = sbr.rel (%p225) target = $region20
        $region19: #{tpu_custom_call.1} parent=11 // pred_region
          _
        $region20: #{tpu_custom_call.1} parent=11 // pred_fallthru
          _
        // Predicated region
        $region21: #{tpu_custom_call.1} parent=11 // pred_check
          %p228 = pneg %p110
        $region22: #{tpu_custom_call.1} parent=11 // pred_check_branch
          %230 = sbr.rel (%p228) target = $region24
        $region23: #{tpu_custom_call.1} parent=11 // pred_region
          %s232 = ssub.s32 256, 256
          %233 = vsyncadd [#allocation7], %s232
          %s235 = sshll.u32 [#allocation8], 4
          %s236 = int_to_ptr.vmem [resolvable:$true] %s235
          %238 = dma.hbm_to_vmem [thread:$0]  %s3, 256, %s236, [#allocation7]
        $region24: #{tpu_custom_call.1} parent=11 // pred_fallthru
          _
        // Predicated region
        $region25: #{tpu_custom_call.1} parent=11 // pred_check
          %p239 = pneg %p131
        $region26: #{tpu_custom_call.1} parent=11 // pred_check_branch
          %241 = sbr.rel (%p239) target = $region28
        $region27: #{tpu_custom_call.1} parent=11 // pred_region
          %s243 = ssub.s32 256, 256
          %244 = vsyncadd [#allocation10], %s243
          %s246 = sshll.u32 [#allocation9], 4
          %s247 = int_to_ptr.vmem [resolvable:$true] %s246
          %249 = dma.hbm_to_vmem [thread:$0]  %s4, 256, %s247, [#allocation10]
        $region28: #{tpu_custom_call.1} parent=11 // pred_fallthru
          _
        // Predicated region
        $region29: #{tpu_custom_call.1} parent=11 // pred_check
          %p250 = pneg %p152
        $region30: #{tpu_custom_call.1} parent=11 // pred_check_branch
          %252 = sbr.rel (%p250) target = $region32
        $region31: #{tpu_custom_call.1} parent=11 // pred_region
          _
        $region32: #{tpu_custom_call.1} parent=11 // pred_fallthru
          _
        // Predicated region
        $region33: #{tpu_custom_call.1} parent=11 // pred_check
          %p253 = pneg %p173
        $region34: #{tpu_custom_call.1} parent=11 // pred_check_branch
          %255 = sbr.rel (%p253) target = $region36
        $region35: #{tpu_custom_call.1} parent=11 // pred_region
          %s257 = ssub.s32 1024, 1024
          %258 = vsyncadd [#allocation10], %s257
          %s259 = sshll.u32 [#allocation11], 4
          %s260 = int_to_ptr.vmem [resolvable:$true] %s259
          %265 = dma.hbm_to_vmem [thread:$0]  %s6, 1024, %s260, [#allocation10], 512, 512, 32
        $region36: #{tpu_custom_call.1} parent=11 // pred_fallthru
          _
      $region12: #{tpu_custom_call.1} parent=5 // pred_fallthru
        _
      %p266 = scmp.lt.s32.totalorder %s21, 2
      // Predicated region
      $region37: #{tpu_custom_call.1} parent=5 // pred_check
        %p267 = pneg %p266
      $region38: #{tpu_custom_call.1} parent=5 // pred_check_branch
        %269 = sbr.rel (%p267) target = $region40
      $region39: #{tpu_custom_call.1} parent=5 // pred_region
        // Predicated region
        $region41: #{tpu_custom_call.1} parent=39 // pred_check
          %p270 = pneg %p41
        $region42: #{tpu_custom_call.1} parent=39 // pred_check_branch
          %272 = sbr.rel (%p270) target = $region44
        $region43: #{tpu_custom_call.1} parent=39 // pred_region
          %s273 = sand.u32 %s31, 1
          %s274 = scalar_lea.sflag [#allocation4], %s273
          %s275 = sand.u32 %s31, 1
          %s276 = smul.addr %s275, 32
          %s277 = scalar_lea.vmem [#allocation3], %s276
          %s279 = ssub.s32 512, 512
          %280 = vsyncadd %s274, %s279
          %s281 = smul.addr %s21, 4
          %s282 = smul.addr %s281, 128
          %s283 = scalar_lea.hbm %s0, %s282
          %s285 = sshll.u32 %s277, 4
          %s286 = int_to_ptr.vmem [resolvable:$true] %s285
          %288 = dma.hbm_to_vmem [thread:$0]  %s283, 512, %s286, %s274
        $region44: #{tpu_custom_call.1} parent=39 // pred_fallthru
          _
      $region40: #{tpu_custom_call.1} parent=5 // pred_fallthru
        _
      %p289 = scmp.le.s32.totalorder 1, %s21
      %p290 = scmp.lt.s32.totalorder %s21, 3
      %p291 = pnand %p289, %p290
      %p292 = pneg %p291
      // Predicated region
      $region45: #{tpu_custom_call.1} parent=5 // pred_check
        _
      $region46: #{tpu_custom_call.1} parent=5 // pred_check_branch
        %294 = sbr.rel (%p291) target = $region48
      $region47: #{tpu_custom_call.1} parent=5 // pred_region
        %s295 = ssub.s32 %s21, 1
        %s296 = sand.u32 %s34, 1
        %s297 = scalar_lea.sflag [#allocation4], %s296
        %s298 = sand.u32 %s34, 1
        %s299 = smul.addr %s298, 32
        %s300 = scalar_lea.vmem [#allocation3], %s299
        // Predicated region
        $region49: #{tpu_custom_call.1} parent=47 // pred_check
          %p301 = pneg %p47
        $region50: #{tpu_custom_call.1} parent=47 // pred_check_branch
          %303 = sbr.rel (%p301) target = $region52
        $region51: #{tpu_custom_call.1} parent=47 // pred_region
          %304 = dma.done %s297, 512
        $region52: #{tpu_custom_call.1} parent=47 // pred_fallthru
          _
        // Predicated region
        $region53: #{tpu_custom_call.1} parent=47 // pred_check
          %p305 = pneg %p68
        $region54: #{tpu_custom_call.1} parent=47 // pred_check_branch
          %307 = sbr.rel (%p305) target = $region56
        $region55: #{tpu_custom_call.1} parent=47 // pred_region
          %308 = dma.done [#allocation7], 128
        $region56: #{tpu_custom_call.1} parent=47 // pred_fallthru
          _
        // Predicated region
        $region57: #{tpu_custom_call.1} parent=47 // pred_check
          %p309 = pneg %p110
        $region58: #{tpu_custom_call.1} parent=47 // pred_check_branch
          %311 = sbr.rel (%p309) target = $region60
        $region59: #{tpu_custom_call.1} parent=47 // pred_region
          %312 = dma.done [#allocation7], 256
        $region60: #{tpu_custom_call.1} parent=47 // pred_fallthru
          _
        // Predicated region
        $region61: #{tpu_custom_call.1} parent=47 // pred_check
          %p313 = pneg %p131
        $region62: #{tpu_custom_call.1} parent=47 // pred_check_branch
          %315 = sbr.rel (%p313) target = $region64
        $region63: #{tpu_custom_call.1} parent=47 // pred_region
          %316 = dma.done [#allocation10], 256
        $region64: #{tpu_custom_call.1} parent=47 // pred_fallthru
          _
        // Predicated region
        $region65: #{tpu_custom_call.1} parent=47 // pred_check
          %p317 = pneg %p173
        $region66: #{tpu_custom_call.1} parent=47 // pred_check_branch
          %319 = sbr.rel (%p317) target = $region68
        $region67: #{tpu_custom_call.1} parent=47 // pred_region
          %320 = dma.done [#allocation10], 1024
        $region68: #{tpu_custom_call.1} parent=47 // pred_fallthru
          _
        %s321 = sand.u32 %s34, 1
        %s322 = scalar_lea.sflag [#allocation4], %s321
        %s323 = sand.u32 %s34, 1
        %s324 = smul.addr %s323, 32
        %s325 = scalar_lea.vmem [#allocation3], %s324
        %p326 = pneg %p47
        %p327 = pneg %p44
        %p328 = pneg %p68
        %p329 = pneg %p65
        %p330 = pneg %p89
        %p331 = pneg %p86
        %p332 = pneg %p110
        %p333 = pneg %p107
        %p334 = pneg %p131
        %p335 = pneg %p128
        %p336 = pneg %p152
        %p337 = pneg %p149
        %p338 = pneg %p173
        %p339 = pneg %p170
        %p340 = pneg %p199
        %p341 = pneg %p196
        %s342 = sand.u32 %s186, 1
        %s343 = scalar_lea.sflag [#allocation5], %s342
        %s344 = sand.u32 %s186, 1
        %s345 = smul.addr %s344, 32
        %s346 = scalar_lea.vmem [#allocation12], %s345
        %v347 = vld [vmem:[%s300] sm:$0xff]
        %v348 = vld [vmem:[%s300 + $0x8] sm:$0xff]
        %v349 = vld [vmem:[%s300 + $0x10] sm:$0xff]
        %v350 = vld [vmem:[%s300 + $0x18] sm:$0xff]
        %351 = vrot.lane.b32.xlu0 %v347, 17
        %v352 = vpop.permute.xlu0 %351
        %353 = vrot.lane.b32.xlu0 %v348, 17
        %v354 = vpop.permute.xlu0 %353
        %355 = vrot.lane.b32.xlu0 %v349, 17
        %v356 = vpop.permute.xlu0 %355
        %357 = vrot.lane.b32.xlu0 %v350, 17
        %v358 = vpop.permute.xlu0 %357
        %v359 = vlaneseq
        %v360 = vand.u32 %v359, 127
        %vm361 = vcmp.lt.s32.totalorder %v360, 17
        %v362 = vsel %vm361, %v356, %v358
        %v363 = vsel %vm361, %v354, %v356
        %v364 = vsel %vm361, %v352, %v354
        %v365 = vsel %vm361, %v358, %v352
        %v366 = vld [vmem:[#allocation11] ss:$8 sm:$0xf]
        %v368 = vlaneseq
        %v369 = vshrl.u32 %v368, 7
        %v370 = vsub.s32 0, %v369
        %v371 = vrot.slane %v366, %v370
        %v372 = vlaneseq
        %v373 = vshrl.u32 %v372, 7
        %v374 = vsub.s32 1, %v373
        %v375 = vrot.slane %v366, %v374
        %v376 = vlaneseq
        %v377 = vshrl.u32 %v376, 7
        %v378 = vsub.s32 2, %v377
        %v379 = vrot.slane %v366, %v378
        %v380 = vlaneseq
        %v381 = vshrl.u32 %v380, 7
        %v382 = vsub.s32 3, %v381
        %v383 = vrot.slane %v366, %v382
        %v388 = vmul.f32 %v365, %v371
        %v389 = vmul.f32 %v364, %v375
        %v390 = vmul.f32 %v363, %v379
        %v391 = vmul.f32 %v362, %v383
        %392 = vst [vmem:[#allocation2] sm:$0xff] %v388
        %393 = vst [vmem:[#allocation2 + $0x8] sm:$0xff] %v389
        %394 = vst [vmem:[#allocation2 + $0x10] sm:$0xff] %v390
        %395 = vst [vmem:[#allocation2 + $0x18] sm:$0xff] %v391
        %396 = vrot.lane.b32.xlu0 %v347, 16
        %v397 = vpop.permute.xlu0 %396
        %398 = vrot.lane.b32.xlu0 %v348, 16
        %v399 = vpop.permute.xlu0 %398
        %400 = vrot.lane.b32.xlu0 %v349, 16
        %v401 = vpop.permute.xlu0 %400
        %402 = vrot.lane.b32.xlu0 %v350, 16
        %v403 = vpop.permute.xlu0 %402
        %vm404 = vcmp.lt.s32.totalorder %v360, 16
        %v405 = vsel %vm404, %v401, %v403
        %v406 = vsel %vm404, %v399, %v401
        %v407 = vsel %vm404, %v397, %v399
        %v408 = vsel %vm404, %v403, %v397
        %s409 = scalar_lea.vmem [#allocation11], 1
        %v410 = vld [vmem:[%s409] ss:$8 sm:$0xf]
        %v412 = vlaneseq
        %v413 = vshrl.u32 %v412, 7
        %v414 = vsub.s32 0, %v413
        %v415 = vrot.slane %v410, %v414
        %v416 = vlaneseq
        %v417 = vshrl.u32 %v416, 7
        %v418 = vsub.s32 1, %v417
        %v419 = vrot.slane %v410, %v418
        %v420 = vlaneseq
        %v421 = vshrl.u32 %v420, 7
        %v422 = vsub.s32 2, %v421
        %v423 = vrot.slane %v410, %v422
        %v424 = vlaneseq
        %v425 = vshrl.u32 %v424, 7
        %v426 = vsub.s32 3, %v425
        %v427 = vrot.slane %v410, %v426
        %v432 = vmul.f32 %v408, %v415
        %v433 = vmul.f32 %v407, %v419
        %v434 = vmul.f32 %v406, %v423
        %v435 = vmul.f32 %v405, %v427
        %436 = vst [vmem:[#allocation2 + $0x20] sm:$0xff] %v432
        %437 = vst [vmem:[#allocation2 + $0x28] sm:$0xff] %v433
        %438 = vst [vmem:[#allocation2 + $0x30] sm:$0xff] %v434
        %439 = vst [vmem:[#allocation2 + $0x38] sm:$0xff] %v435
        %440 = vrot.lane.b32.xlu0 %v347, 15
        %v441 = vpop.permute.xlu0 %440
        %442 = vrot.lane.b32.xlu0 %v348, 15
        %v443 = vpop.permute.xlu0 %442
        %444 = vrot.lane.b32.xlu0 %v349, 15
        %v445 = vpop.permute.xlu0 %444
        %446 = vrot.lane.b32.xlu0 %v350, 15
        %v447 = vpop.permute.xlu0 %446
        %vm448 = vcmp.lt.s32.totalorder %v360, 15
        %v449 = vsel %vm448, %v445, %v447
        %v450 = vsel %vm448, %v443, %v445
        %v451 = vsel %vm448, %v441, %v443
        %v452 = vsel %vm448, %v447, %v441
        %s453 = scalar_lea.vmem [#allocation11], 2
        %v454 = vld [vmem:[%s453] ss:$8 sm:$0xf]
        %v456 = vlaneseq
        %v457 = vshrl.u32 %v456, 7
        %v458 = vsub.s32 0, %v457
        %v459 = vrot.slane %v454, %v458
        %v460 = vlaneseq
        %v461 = vshrl.u32 %v460, 7
        %v462 = vsub.s32 1, %v461
        %v463 = vrot.slane %v454, %v462
        %v464 = vlaneseq
        %v465 = vshrl.u32 %v464, 7
        %v466 = vsub.s32 2, %v465
        %v467 = vrot.slane %v454, %v466
        %v468 = vlaneseq
        %v469 = vshrl.u32 %v468, 7
        %v470 = vsub.s32 3, %v469
        %v471 = vrot.slane %v454, %v470
        %v476 = vmul.f32 %v452, %v459
        %v477 = vmul.f32 %v451, %v463
        %v478 = vmul.f32 %v450, %v467
        %v479 = vmul.f32 %v449, %v471
        %480 = vst [vmem:[#allocation2 + $0x40] sm:$0xff] %v476
        %481 = vst [vmem:[#allocation2 + $0x48] sm:$0xff] %v477
        %482 = vst [vmem:[#allocation2 + $0x50] sm:$0xff] %v478
        %483 = vst [vmem:[#allocation2 + $0x58] sm:$0xff] %v479
        %484 = vrot.lane.b32.xlu0 %v347, 1
        %v485 = vpop.permute.xlu0 %484
        %486 = vrot.lane.b32.xlu0 %v348, 1
        %v487 = vpop.permute.xlu0 %486
        %488 = vrot.lane.b32.xlu0 %v349, 1
        %v489 = vpop.permute.xlu0 %488
        %490 = vrot.lane.b32.xlu0 %v350, 1
        %v491 = vpop.permute.xlu0 %490
        %vm492 = vcmp.lt.s32.totalorder %v360, 1
        %v493 = vsel %vm492, %v489, %v491
        %v494 = vsel %vm492, %v487, %v489
        %v495 = vsel %vm492, %v485, %v487
        %v496 = vsel %vm492, %v491, %v485
        %s497 = scalar_lea.vmem [#allocation11], 3
        %v498 = vld [vmem:[%s497] ss:$8 sm:$0xf]
        %v500 = vlaneseq
        %v501 = vshrl.u32 %v500, 7
        %v502 = vsub.s32 0, %v501
        %v503 = vrot.slane %v498, %v502
        %v504 = vlaneseq
        %v505 = vshrl.u32 %v504, 7
        %v506 = vsub.s32 1, %v505
        %v507 = vrot.slane %v498, %v506
        %v508 = vlaneseq
        %v509 = vshrl.u32 %v508, 7
        %v510 = vsub.s32 2, %v509
        %v511 = vrot.slane %v498, %v510
        %v512 = vlaneseq
        %v513 = vshrl.u32 %v512, 7
        %v514 = vsub.s32 3, %v513
        %v515 = vrot.slane %v498, %v514
        %v520 = vmul.f32 %v496, %v503
        %v521 = vmul.f32 %v495, %v507
        %v522 = vmul.f32 %v494, %v511
        %v523 = vmul.f32 %v493, %v515
        %524 = vst [vmem:[#allocation2 + $0x60] sm:$0xff] %v520
        %525 = vst [vmem:[#allocation2 + $0x68] sm:$0xff] %v521
        %526 = vst [vmem:[#allocation2 + $0x70] sm:$0xff] %v522
        %527 = vst [vmem:[#allocation2 + $0x78] sm:$0xff] %v523
        %528 = vst [vmem:[#allocation2 + $0x80] sm:$0xff] %v347
        %529 = vst [vmem:[#allocation2 + $0x88] sm:$0xff] %v348
        %530 = vst [vmem:[#allocation2 + $0x90] sm:$0xff] %v349
        %531 = vst [vmem:[#allocation2 + $0x98] sm:$0xff] %v350
        %532 = vrot.lane.b32.xlu0 %v347, 127
        %v533 = vpop.permute.xlu0 %532
        %534 = vrot.lane.b32.xlu0 %v348, 127
        %v535 = vpop.permute.xlu0 %534
        %536 = vrot.lane.b32.xlu0 %v349, 127
        %v537 = vpop.permute.xlu0 %536
        %538 = vrot.lane.b32.xlu0 %v350, 127
        %v539 = vpop.permute.xlu0 %538
        %vm540 = vcmp.lt.s32.totalorder %v360, 127
        %v541 = vsel %vm540, %v537, %v539
        %v542 = vsel %vm540, %v535, %v537
        %v543 = vsel %vm540, %v533, %v535
        %v544 = vsel %vm540, %v539, %v533
        %s545 = scalar_lea.vmem [#allocation11], 5
        %v546 = vld [vmem:[%s545] ss:$8 sm:$0xf]
        %v548 = vlaneseq
        %v549 = vshrl.u32 %v548, 7
        %v550 = vsub.s32 0, %v549
        %v551 = vrot.slane %v546, %v550
        %v552 = vlaneseq
        %v553 = vshrl.u32 %v552, 7
        %v554 = vsub.s32 1, %v553
        %v555 = vrot.slane %v546, %v554
        %v556 = vlaneseq
        %v557 = vshrl.u32 %v556, 7
        %v558 = vsub.s32 2, %v557
        %v559 = vrot.slane %v546, %v558
        %v560 = vlaneseq
        %v561 = vshrl.u32 %v560, 7
        %v562 = vsub.s32 3, %v561
        %v563 = vrot.slane %v546, %v562
        %v568 = vmul.f32 %v543, %v551
        %v569 = vmul.f32 %v542, %v555
        %v570 = vmul.f32 %v541, %v559
        %v571 = vmul.f32 %v544, %v563
        %572 = vst [vmem:[#allocation2 + $0xa0] sm:$0xff] %v568
        %573 = vst [vmem:[#allocation2 + $0xa8] sm:$0xff] %v569
        %574 = vst [vmem:[#allocation2 + $0xb0] sm:$0xff] %v570
        %575 = vst [vmem:[#allocation2 + $0xb8] sm:$0xff] %v571
        %576 = vrot.lane.b32.xlu0 %v347, 113
        %v577 = vpop.permute.xlu0 %576
        %578 = vrot.lane.b32.xlu0 %v348, 113
        %v579 = vpop.permute.xlu0 %578
        %580 = vrot.lane.b32.xlu0 %v349, 113
        %v581 = vpop.permute.xlu0 %580
        %582 = vrot.lane.b32.xlu0 %v350, 113
        %v583 = vpop.permute.xlu0 %582
        %vm584 = vcmp.lt.s32.totalorder %v360, 113
        %v585 = vsel %vm584, %v581, %v583
        %v586 = vsel %vm584, %v579, %v581
        %v587 = vsel %vm584, %v577, %v579
        %v588 = vsel %vm584, %v583, %v577
        %s589 = scalar_lea.vmem [#allocation11], 6
        %v590 = vld [vmem:[%s589] ss:$8 sm:$0xf]
        %v592 = vlaneseq
        %v593 = vshrl.u32 %v592, 7
        %v594 = vsub.s32 0, %v593
        %v595 = vrot.slane %v590, %v594
        %v596 = vlaneseq
        %v597 = vshrl.u32 %v596, 7
        %v598 = vsub.s32 1, %v597
        %v599 = vrot.slane %v590, %v598
        %v600 = vlaneseq
        %v601 = vshrl.u32 %v600, 7
        %v602 = vsub.s32 2, %v601
        %v603 = vrot.slane %v590, %v602
        %v604 = vlaneseq
        %v605 = vshrl.u32 %v604, 7
        %v606 = vsub.s32 3, %v605
        %v607 = vrot.slane %v590, %v606
        %v612 = vmul.f32 %v587, %v595
        %v613 = vmul.f32 %v586, %v599
        %v614 = vmul.f32 %v585, %v603
        %v615 = vmul.f32 %v588, %v607
        %616 = vst [vmem:[#allocation2 + $0xc0] sm:$0xff] %v612
        %617 = vst [vmem:[#allocation2 + $0xc8] sm:$0xff] %v613
        %618 = vst [vmem:[#allocation2 + $0xd0] sm:$0xff] %v614
        %619 = vst [vmem:[#allocation2 + $0xd8] sm:$0xff] %v615
        %620 = vrot.lane.b32.xlu0 %v347, 112
        %v621 = vpop.permute.xlu0 %620
        %622 = vrot.lane.b32.xlu0 %v348, 112
        %v623 = vpop.permute.xlu0 %622
        %624 = vrot.lane.b32.xlu0 %v349, 112
        %v625 = vpop.permute.xlu0 %624
        %626 = vrot.lane.b32.xlu0 %v350, 112
        %v627 = vpop.permute.xlu0 %626
        %vm628 = vcmp.lt.s32.totalorder %v360, 112
        %v629 = vsel %vm628, %v625, %v627
        %v630 = vsel %vm628, %v623, %v625
        %v631 = vsel %vm628, %v621, %v623
        %v632 = vsel %vm628, %v627, %v621
        %s633 = scalar_lea.vmem [#allocation11], 7
        %v634 = vld [vmem:[%s633] ss:$8 sm:$0xf]
        %v636 = vlaneseq
        %v637 = vshrl.u32 %v636, 7
        %v638 = vsub.s32 0, %v637
        %v639 = vrot.slane %v634, %v638
        %v640 = vlaneseq
        %v641 = vshrl.u32 %v640, 7
        %v642 = vsub.s32 1, %v641
        %v643 = vrot.slane %v634, %v642
        %v644 = vlaneseq
        %v645 = vshrl.u32 %v644, 7
        %v646 = vsub.s32 2, %v645
        %v647 = vrot.slane %v634, %v646
        %v648 = vlaneseq
        %v649 = vshrl.u32 %v648, 7
        %v650 = vsub.s32 3, %v649
        %v651 = vrot.slane %v634, %v650
        %v656 = vmul.f32 %v631, %v639
        %v657 = vmul.f32 %v630, %v643
        %v658 = vmul.f32 %v629, %v647
        %v659 = vmul.f32 %v632, %v651
        %660 = vst [vmem:[#allocation2 + $0xe0] sm:$0xff] %v656
        %661 = vst [vmem:[#allocation2 + $0xe8] sm:$0xff] %v657
        %662 = vst [vmem:[#allocation2 + $0xf0] sm:$0xff] %v658
        %663 = vst [vmem:[#allocation2 + $0xf8] sm:$0xff] %v659
        %664 = vrot.lane.b32.xlu0 %v347, 111
        %v665 = vpop.permute.xlu0 %664
        %666 = vrot.lane.b32.xlu0 %v348, 111
        %v667 = vpop.permute.xlu0 %666
        %668 = vrot.lane.b32.xlu0 %v349, 111
        %v669 = vpop.permute.xlu0 %668
        %670 = vrot.lane.b32.xlu0 %v350, 111
        %v671 = vpop.permute.xlu0 %670
        %vm672 = vcmp.lt.s32.totalorder %v360, 111
        %v673 = vsel %vm672, %v669, %v671
        %v674 = vsel %vm672, %v667, %v669
        %v675 = vsel %vm672, %v665, %v667
        %v676 = vsel %vm672, %v671, %v665
        %s677 = scalar_lea.vmem [#allocation11], 32
        %v678 = vld [vmem:[%s677] ss:$8 sm:$0xf]
        %v680 = vlaneseq
        %v681 = vshrl.u32 %v680, 7
        %v682 = vsub.s32 0, %v681
        %v683 = vrot.slane %v678, %v682
        %v684 = vlaneseq
        %v685 = vshrl.u32 %v684, 7
        %v686 = vsub.s32 1, %v685
        %v687 = vrot.slane %v678, %v686
        %v688 = vlaneseq
        %v689 = vshrl.u32 %v688, 7
        %v690 = vsub.s32 2, %v689
        %v691 = vrot.slane %v678, %v690
        %v692 = vlaneseq
        %v693 = vshrl.u32 %v692, 7
        %v694 = vsub.s32 3, %v693
        %v695 = vrot.slane %v678, %v694
        %v700 = vmul.f32 %v675, %v683
        %v701 = vmul.f32 %v674, %v687
        %v702 = vmul.f32 %v673, %v691
        %v703 = vmul.f32 %v676, %v695
        %704 = vst [vmem:[#allocation2 + $0x100] sm:$0xff] %v700
        %705 = vst [vmem:[#allocation2 + $0x108] sm:$0xff] %v701
        %706 = vst [vmem:[#allocation2 + $0x110] sm:$0xff] %v702
        %707 = vst [vmem:[#allocation2 + $0x118] sm:$0xff] %v703
        %v708 = vld [vmem:[#allocation6] sm:$0xff]
        %v709 = vld [vmem:[#allocation2] sm:$0xff]
        %v710 = vld [vmem:[#allocation2 + $0x8] sm:$0xff]
        %v711 = vld [vmem:[#allocation2 + $0x10] sm:$0xff]
        %v712 = vld [vmem:[#allocation2 + $0x18] sm:$0xff]
        %v713 = vld [vmem:[#allocation2 + $0x20] sm:$0xff]
        %v714 = vld [vmem:[#allocation2 + $0x28] sm:$0xff]
        %v715 = vld [vmem:[#allocation2 + $0x30] sm:$0xff]
        %v716 = vld [vmem:[#allocation2 + $0x38] sm:$0xff]
        %v717 = vld [vmem:[#allocation2 + $0x40] sm:$0xff]
        %v718 = vld [vmem:[#allocation2 + $0x48] sm:$0xff]
        %v719 = vld [vmem:[#allocation2 + $0x50] sm:$0xff]
        %v720 = vld [vmem:[#allocation2 + $0x58] sm:$0xff]
        %v721 = vld [vmem:[#allocation2 + $0x60] sm:$0xff]
        %v722 = vld [vmem:[#allocation2 + $0x68] sm:$0xff]
        %v723 = vld [vmem:[#allocation2 + $0x70] sm:$0xff]
        %v724 = vld [vmem:[#allocation2 + $0x78] sm:$0xff]
        %v725 = vld [vmem:[#allocation2 + $0x80] sm:$0xff]
        %v726 = vld [vmem:[#allocation2 + $0x88] sm:$0xff]
        %v727 = vld [vmem:[#allocation2 + $0x90] sm:$0xff]
        %v728 = vld [vmem:[#allocation2 + $0x98] sm:$0xff]
        %v729 = vld [vmem:[#allocation2 + $0xa0] sm:$0xff]
        %v730 = vld [vmem:[#allocation2 + $0xa8] sm:$0xff]
        %v731 = vld [vmem:[#allocation2 + $0xb0] sm:$0xff]
        %v732 = vld [vmem:[#allocation2 + $0xb8] sm:$0xff]
        %v733 = vld [vmem:[#allocation2 + $0xc0] sm:$0xff]
        %v734 = vld [vmem:[#allocation2 + $0xc8] sm:$0xff]
        %v735 = vld [vmem:[#allocation2 + $0xd0] sm:$0xff]
        %v736 = vld [vmem:[#allocation2 + $0xd8] sm:$0xff]
        %v737 = vld [vmem:[#allocation2 + $0xe0] sm:$0xff]
        %v738 = vld [vmem:[#allocation2 + $0xe8] sm:$0xff]
        %v739 = vld [vmem:[#allocation2 + $0xf0] sm:$0xff]
        %v740 = vld [vmem:[#allocation2 + $0xf8] sm:$0xff]
        %v741 = vld [vmem:[#allocation2 + $0x100] sm:$0xff]
        %v742 = vld [vmem:[#allocation2 + $0x108] sm:$0xff]
        %v743 = vld [vmem:[#allocation2 + $0x110] sm:$0xff]
        %v744 = vld [vmem:[#allocation2 + $0x118] sm:$0xff]
        %vm745 = vcmask 588800
        %v747 = vsel %vm745, %v708, 0
        %749 = vmatprep.subr.mxu0 %v710
        %750 = vmatpush1.msra.mxu0 %v709
        %751 = vmatprep.subr.mxu0 %v714
        %752 = vmatpush1.msra.mxu0 %v713
        %753 = vmatprep.subr.mxu0 %v718
        %754 = vmatpush1.msra.mxu0 %v717
        %755 = vmatprep.subr.mxu0 %v722
        %756 = vmatpush1.msra.mxu0 %v721
        %757 = vmatprep.subr.mxu0 %v726
        %758 = vmatpush1.msra.mxu0 %v725
        %759 = vmatprep.subr.mxu0 %v730
        %760 = vmatpush1.msra.mxu0 %v729
        %761 = vmatprep.subr.mxu0 %v734
        %762 = vmatpush1.msra.mxu0 %v733
        %763 = vmatprep.subr.mxu0 %v738
        %764 = vmatpush1.msra.mxu0 %v737
        %765 = vmatprep.subr.mxu0 %v742
        %766 = vmatpush1.msra.mxu0 %v741
        %767 = vmatprep.subr.mxu0 0.0
        %768 = vmatpush1.msra.mxu0 0.0
        %769 = vmatprep.subr.mxu0 0.0
        %770 = vmatpush1.msra.mxu0 0.0
        %771 = vmatprep.subr.mxu0 0.0
        %772 = vmatpush1.msra.mxu0 0.0
        %773 = vmatprep.subr.mxu0 0.0
        %774 = vmatpush1.msra.mxu0 0.0
        %775 = vmatprep.subr.mxu0 0.0
        %776 = vmatpush1.msra.mxu0 0.0
        %777 = vmatprep.subr.mxu0 0.0
        %778 = vmatpush1.msra.mxu0 0.0
        %779 = vmatprep.subr.mxu0 0.0
        %780 = vmatpush1.msra.mxu0 0.0
        %781 = vmatprep.subr.mxu0 0.0
        %782 = vmatpush1.msra.mxu0 0.0
        %783 = vmatprep.subr.mxu0 0.0
        %784 = vmatpush1.msra.mxu0 0.0
        %785 = vmatprep.subr.mxu0 0.0
        %786 = vmatpush1.msra.mxu0 0.0
        %787 = vmatprep.subr.mxu0 0.0
        %788 = vmatpush1.msra.mxu0 0.0
        %789 = vmatprep.subr.mxu0 0.0
        %790 = vmatpush1.msra.mxu0 0.0
        %791 = vmatprep.subr.mxu0 0.0
        %792 = vmatpush1.msra.mxu0 0.0
        %793 = vmatprep.subr.mxu0 0.0
        %794 = vmatpush1.msra.mxu0 0.0
        %795 = vmatprep.subr.mxu0 0.0
        %796 = vmatpush1.msra.mxu0 0.0
        %797 = vmatprep.subr.mxu0 0.0
        %798 = vmatpush1.msra.mxu0 0.0
        %799 = vmatprep.subr.mxu0 0.0
        %800 = vmatpush1.msra.mxu0 0.0
        %801 = vmatprep.subr.mxu0 0.0
        %802 = vmatpush1.msra.mxu0 0.0
        %803 = vmatprep.subr.mxu0 0.0
        %804 = vmatpush1.msra.mxu0 0.0
        %805 = vmatprep.subr.mxu0 0.0
        %806 = vmatpush1.msra.mxu0 0.0
        %807 = vmatprep.subr.mxu0 0.0
        %808 = vmatpush1.msra.mxu0 0.0
        %809 = vmatprep.subr.mxu0 0.0
        %810 = vmatpush1.msra.mxu0 0.0
        %811 = vmatprep.subr.mxu0 0.0
        %812 = vmatpush1.msra.mxu0 0.0
        %813 = vmatprep.mubr.f32.mxu0 0.0
        %814 = vmatmul.mubr.f32.gmra.mrb[0].mxu0 %v747
        %v815 = vpop.f32.mrb[0].mxu0
        %v816 = vadd.f32 0.0, %v815
        %v817 = vpop.f32.mrb[0].mxu0
        %v818 = vadd.f32 0.0, %v817
        %819 = vdwg.mxu0
        %820 = vmatprep.subr.mxu0 %v712
        %821 = vmatpush1.msra.mxu0 %v711
        %822 = vmatprep.subr.mxu0 %v716
        %823 = vmatpush1.msra.mxu0 %v715
        %824 = vmatprep.subr.mxu0 %v720
        %825 = vmatpush1.msra.mxu0 %v719
        %826 = vmatprep.subr.mxu0 %v724
        %827 = vmatpush1.msra.mxu0 %v723
        %828 = vmatprep.subr.mxu0 %v728
        %829 = vmatpush1.msra.mxu0 %v727
        %830 = vmatprep.subr.mxu0 %v732
        %831 = vmatpush1.msra.mxu0 %v731
        %832 = vmatprep.subr.mxu0 %v736
        %833 = vmatpush1.msra.mxu0 %v735
        %834 = vmatprep.subr.mxu0 %v740
        %835 = vmatpush1.msra.mxu0 %v739
        %836 = vmatprep.subr.mxu0 %v744
        %837 = vmatpush1.msra.mxu0 %v743
        %838 = vmatprep.subr.mxu0 0.0
        %839 = vmatpush1.msra.mxu0 0.0
        %840 = vmatprep.subr.mxu0 0.0
        %841 = vmatpush1.msra.mxu0 0.0
        %842 = vmatprep.subr.mxu0 0.0
        %843 = vmatpush1.msra.mxu0 0.0
        %844 = vmatprep.subr.mxu0 0.0
        %845 = vmatpush1.msra.mxu0 0.0
        %846 = vmatprep.subr.mxu0 0.0
        %847 = vmatpush1.msra.mxu0 0.0
        %848 = vmatprep.subr.mxu0 0.0
        %849 = vmatpush1.msra.mxu0 0.0
        %850 = vmatprep.subr.mxu0 0.0
        %851 = vmatpush1.msra.mxu0 0.0
        %852 = vmatprep.subr.mxu0 0.0
        %853 = vmatpush1.msra.mxu0 0.0
        %854 = vmatprep.subr.mxu0 0.0
        %855 = vmatpush1.msra.mxu0 0.0
        %856 = vmatprep.subr.mxu0 0.0
        %857 = vmatpush1.msra.mxu0 0.0
        %858 = vmatprep.subr.mxu0 0.0
        %859 = vmatpush1.msra.mxu0 0.0
        %860 = vmatprep.subr.mxu0 0.0
        %861 = vmatpush1.msra.mxu0 0.0
        %862 = vmatprep.subr.mxu0 0.0
        %863 = vmatpush1.msra.mxu0 0.0
        %864 = vmatprep.subr.mxu0 0.0
        %865 = vmatpush1.msra.mxu0 0.0
        %866 = vmatprep.subr.mxu0 0.0
        %867 = vmatpush1.msra.mxu0 0.0
        %868 = vmatprep.subr.mxu0 0.0
        %869 = vmatpush1.msra.mxu0 0.0
        %870 = vmatprep.subr.mxu0 0.0
        %871 = vmatpush1.msra.mxu0 0.0
        %872 = vmatprep.subr.mxu0 0.0
        %873 = vmatpush1.msra.mxu0 0.0
        %874 = vmatprep.subr.mxu0 0.0
        %875 = vmatpush1.msra.mxu0 0.0
        %876 = vmatprep.subr.mxu0 0.0
        %877 = vmatpush1.msra.mxu0 0.0
        %878 = vmatprep.subr.mxu0 0.0
        %879 = vmatpush1.msra.mxu0 0.0
        %880 = vmatprep.subr.mxu0 0.0
        %881 = vmatpush1.msra.mxu0 0.0
        %882 = vmatprep.subr.mxu0 0.0
        %883 = vmatpush1.msra.mxu0 0.0
        %884 = vmatprep.mubr.f32.mxu0 0.0
        %885 = vmatmul.mubr.f32.gmra.mrb[0].mxu0 %v747
        %v886 = vpop.f32.mrb[0].mxu0
        %v887 = vadd.f32 0.0, %v886
        %v888 = vpop.f32.mrb[0].mxu0
        %v889 = vadd.f32 0.0, %v888
        %890 = vdwg.mxu0
        %v891 = vadd.f32 %v816, %v818
        %892 = vadd.xlane.f32.xlu0 %v891
        %v893 = vpop.xlane.xlu0 %892
        %v894 = vmul.f32 %v893, 0.00390625
        %v895 = vmul.f32 %v816, %v816
        %v896 = vmul.f32 %v818, %v818
        %v897 = vadd.f32 %v895, %v896
        %898 = vadd.xlane.f32.xlu0 %v897
        %v899 = vpop.xlane.xlu0 %898
        %v900 = vmul.f32 %v899, 0.00390625
        %v901 = vmul.f32 %v894, %v894
        %v902 = vsub.f32 %v900, %v901
        %v903 = vmax.f32 %v902, 0.0
        %v904 = vsub.f32 %v816, %v894
        %v905 = vsub.f32 %v818, %v894
        %v906 = vadd.f32 %v903, 1e-05
        %v907 = vrsqrt.pop %v906
        %v908 = vmul.f32 %v904, %v907
        %v909 = vmul.f32 %v905, %v907
        %v910 = vmul.f32 %v908, 0.2
        %v911 = vmul.f32 %v909, 0.2
        %v912 = vmax.f32 %v908, %v910
        %v913 = vmax.f32 %v909, %v911
        %v914 = vadd.f32 %v887, %v889
        %915 = vadd.xlane.f32.xlu0 %v914
        %v916 = vpop.xlane.xlu0 %915
        %v917 = vmul.f32 %v916, 0.00390625
        %v918 = vmul.f32 %v887, %v887
        %v919 = vmul.f32 %v889, %v889
        %v920 = vadd.f32 %v918, %v919
        %921 = vadd.xlane.f32.xlu0 %v920
        %v922 = vpop.xlane.xlu0 %921
        %v923 = vmul.f32 %v922, 0.00390625
        %v924 = vmul.f32 %v917, %v917
        %v925 = vsub.f32 %v923, %v924
        %v926 = vmax.f32 %v925, 0.0
        %v927 = vsub.f32 %v887, %v917
        %v928 = vsub.f32 %v889, %v917
        %v929 = vadd.f32 %v926, 1e-05
        %v930 = vrsqrt.pop %v929
        %v931 = vmul.f32 %v927, %v930
        %v932 = vmul.f32 %v928, %v930
        %v933 = vmul.f32 %v931, 0.2
        %v934 = vmul.f32 %v932, 0.2
        %v935 = vmax.f32 %v931, %v933
        %v936 = vmax.f32 %v932, %v934
        %937 = vrot.lane.b32.xlu0 %v912, 17
        %v938 = vpop.permute.xlu0 %937
        %939 = vrot.lane.b32.xlu0 %v913, 17
        %v940 = vpop.permute.xlu0 %939
        %941 = vrot.lane.b32.xlu0 %v935, 17
        %v942 = vpop.permute.xlu0 %941
        %943 = vrot.lane.b32.xlu0 %v936, 17
        %v944 = vpop.permute.xlu0 %943
        %v945 = vsel %vm361, %v942, %v944
        %v946 = vsel %vm361, %v940, %v942
        %v947 = vsel %vm361, %v938, %v940
        %v948 = vsel %vm361, %v944, %v938
        %v949 = vld [vmem:[#allocation11] ss:$8 sm:$0xf]
        %v951 = vlaneseq
        %v952 = vshrl.u32 %v951, 7
        %v953 = vsub.s32 0, %v952
        %v954 = vrot.slane %v949, %v953
        %v955 = vlaneseq
        %v956 = vshrl.u32 %v955, 7
        %v957 = vsub.s32 1, %v956
        %v958 = vrot.slane %v949, %v957
        %v959 = vlaneseq
        %v960 = vshrl.u32 %v959, 7
        %v961 = vsub.s32 2, %v960
        %v962 = vrot.slane %v949, %v961
        %v963 = vlaneseq
        %v964 = vshrl.u32 %v963, 7
        %v965 = vsub.s32 3, %v964
        %v966 = vrot.slane %v949, %v965
        %v971 = vmul.f32 %v948, %v954
        %v972 = vmul.f32 %v947, %v958
        %v973 = vmul.f32 %v946, %v962
        %v974 = vmul.f32 %v945, %v966
        %975 = vst [vmem:[#allocation2 + $0x120] sm:$0xff] %v971
        %976 = vst [vmem:[#allocation2 + $0x128] sm:$0xff] %v972
        %977 = vst [vmem:[#allocation2 + $0x130] sm:$0xff] %v973
        %978 = vst [vmem:[#allocation2 + $0x138] sm:$0xff] %v974
        %979 = vrot.lane.b32.xlu0 %v912, 16
        %v980 = vpop.permute.xlu0 %979
        %981 = vrot.lane.b32.xlu0 %v913, 16
        %v982 = vpop.permute.xlu0 %981
        %983 = vrot.lane.b32.xlu0 %v935, 16
        %v984 = vpop.permute.xlu0 %983
        %985 = vrot.lane.b32.xlu0 %v936, 16
        %v986 = vpop.permute.xlu0 %985
        %v987 = vsel %vm404, %v984, %v986
        %v988 = vsel %vm404, %v982, %v984
        %v989 = vsel %vm404, %v980, %v982
        %v990 = vsel %vm404, %v986, %v980
        %v991 = vld [vmem:[%s409] ss:$8 sm:$0xf]
        %v993 = vlaneseq
        %v994 = vshrl.u32 %v993, 7
        %v995 = vsub.s32 0, %v994
        %v996 = vrot.slane %v991, %v995
        %v997 = vlaneseq
        %v998 = vshrl.u32 %v997, 7
        %v999 = vsub.s32 1, %v998
        %v1000 = vrot.slane %v991, %v999
        %v1001 = vlaneseq
        %v1002 = vshrl.u32 %v1001, 7
        %v1003 = vsub.s32 2, %v1002
        %v1004 = vrot.slane %v991, %v1003
        %v1005 = vlaneseq
        %v1006 = vshrl.u32 %v1005, 7
        %v1007 = vsub.s32 3, %v1006
        %v1008 = vrot.slane %v991, %v1007
        %v1013 = vmul.f32 %v990, %v996
        %v1014 = vmul.f32 %v989, %v1000
        %v1015 = vmul.f32 %v988, %v1004
        %v1016 = vmul.f32 %v987, %v1008
        %1017 = vst [vmem:[#allocation2 + $0x140] sm:$0xff] %v1013
        %1018 = vst [vmem:[#allocation2 + $0x148] sm:$0xff] %v1014
        %1019 = vst [vmem:[#allocation2 + $0x150] sm:$0xff] %v1015
        %1020 = vst [vmem:[#allocation2 + $0x158] sm:$0xff] %v1016
        %1021 = vrot.lane.b32.xlu0 %v912, 15
        %v1022 = vpop.permute.xlu0 %1021
        %1023 = vrot.lane.b32.xlu0 %v913, 15
        %v1024 = vpop.permute.xlu0 %1023
        %1025 = vrot.lane.b32.xlu0 %v935, 15
        %v1026 = vpop.permute.xlu0 %1025
        %1027 = vrot.lane.b32.xlu0 %v936, 15
        %v1028 = vpop.permute.xlu0 %1027
        %v1029 = vsel %vm448, %v1026, %v1028
        %v1030 = vsel %vm448, %v1024, %v1026
        %v1031 = vsel %vm448, %v1022, %v1024
        %v1032 = vsel %vm448, %v1028, %v1022
        %v1033 = vld [vmem:[%s453] ss:$8 sm:$0xf]
        %v1035 = vlaneseq
        %v1036 = vshrl.u32 %v1035, 7
        %v1037 = vsub.s32 0, %v1036
        %v1038 = vrot.slane %v1033, %v1037
        %v1039 = vlaneseq
        %v1040 = vshrl.u32 %v1039, 7
        %v1041 = vsub.s32 1, %v1040
        %v1042 = vrot.slane %v1033, %v1041
        %v1043 = vlaneseq
        %v1044 = vshrl.u32 %v1043, 7
        %v1045 = vsub.s32 2, %v1044
        %v1046 = vrot.slane %v1033, %v1045
        %v1047 = vlaneseq
        %v1048 = vshrl.u32 %v1047, 7
        %v1049 = vsub.s32 3, %v1048
        %v1050 = vrot.slane %v1033, %v1049
        %v1055 = vmul.f32 %v1032, %v1038
        %v1056 = vmul.f32 %v1031, %v1042
        %v1057 = vmul.f32 %v1030, %v1046
        %v1058 = vmul.f32 %v1029, %v1050
        %1059 = vst [vmem:[#allocation2 + $0x160] sm:$0xff] %v1055
        %1060 = vst [vmem:[#allocation2 + $0x168] sm:$0xff] %v1056
        %1061 = vst [vmem:[#allocation2 + $0x170] sm:$0xff] %v1057
        %1062 = vst [vmem:[#allocation2 + $0x178] sm:$0xff] %v1058
        %1063 = vrot.lane.b32.xlu0 %v912, 1
        %v1064 = vpop.permute.xlu0 %1063
        %1065 = vrot.lane.b32.xlu0 %v913, 1
        %v1066 = vpop.permute.xlu0 %1065
        %1067 = vrot.lane.b32.xlu0 %v935, 1
        %v1068 = vpop.permute.xlu0 %1067
        %1069 = vrot.lane.b32.xlu0 %v936, 1
        %v1070 = vpop.permute.xlu0 %1069
        %v1071 = vsel %vm492, %v1068, %v1070
        %v1072 = vsel %vm492, %v1066, %v1068
        %v1073 = vsel %vm492, %v1064, %v1066
        %v1074 = vsel %vm492, %v1070, %v1064
        %v1075 = vld [vmem:[%s497] ss:$8 sm:$0xf]
        %v1077 = vlaneseq
        %v1078 = vshrl.u32 %v1077, 7
        %v1079 = vsub.s32 0, %v1078
        %v1080 = vrot.slane %v1075, %v1079
        %v1081 = vlaneseq
        %v1082 = vshrl.u32 %v1081, 7
        %v1083 = vsub.s32 1, %v1082
        %v1084 = vrot.slane %v1075, %v1083
        %v1085 = vlaneseq
        %v1086 = vshrl.u32 %v1085, 7
        %v1087 = vsub.s32 2, %v1086
        %v1088 = vrot.slane %v1075, %v1087
        %v1089 = vlaneseq
        %v1090 = vshrl.u32 %v1089, 7
        %v1091 = vsub.s32 3, %v1090
        %v1092 = vrot.slane %v1075, %v1091
        %v1097 = vmul.f32 %v1074, %v1080
        %v1098 = vmul.f32 %v1073, %v1084
        %v1099 = vmul.f32 %v1072, %v1088
        %v1100 = vmul.f32 %v1071, %v1092
        %1101 = vst [vmem:[#allocation2 + $0x180] sm:$0xff] %v1097
        %1102 = vst [vmem:[#allocation2 + $0x188] sm:$0xff] %v1098
        %1103 = vst [vmem:[#allocation2 + $0x190] sm:$0xff] %v1099
        %1104 = vst [vmem:[#allocation2 + $0x198] sm:$0xff] %v1100
        %1105 = vst [vmem:[#allocation2 + $0x1a0] sm:$0xff] %v912
        %1106 = vst [vmem:[#allocation2 + $0x1a8] sm:$0xff] %v913
        %1107 = vst [vmem:[#allocation2 + $0x1b0] sm:$0xff] %v935
        %1108 = vst [vmem:[#allocation2 + $0x1b8] sm:$0xff] %v936
        %1109 = vrot.lane.b32.xlu0 %v912, 127
        %v1110 = vpop.permute.xlu0 %1109
        %1111 = vrot.lane.b32.xlu0 %v913, 127
        %v1112 = vpop.permute.xlu0 %1111
        %1113 = vrot.lane.b32.xlu0 %v935, 127
        %v1114 = vpop.permute.xlu0 %1113
        %1115 = vrot.lane.b32.xlu0 %v936, 127
        %v1116 = vpop.permute.xlu0 %1115
        %v1117 = vsel %vm540, %v1114, %v1116
        %v1118 = vsel %vm540, %v1112, %v1114
        %v1119 = vsel %vm540, %v1110, %v1112
        %v1120 = vsel %vm540, %v1116, %v1110
        %v1121 = vld [vmem:[%s545] ss:$8 sm:$0xf]
        %v1123 = vlaneseq
        %v1124 = vshrl.u32 %v1123, 7
        %v1125 = vsub.s32 0, %v1124
        %v1126 = vrot.slane %v1121, %v1125
        %v1127 = vlaneseq
        %v1128 = vshrl.u32 %v1127, 7
        %v1129 = vsub.s32 1, %v1128
        %v1130 = vrot.slane %v1121, %v1129
        %v1131 = vlaneseq
        %v1132 = vshrl.u32 %v1131, 7
        %v1133 = vsub.s32 2, %v1132
        %v1134 = vrot.slane %v1121, %v1133
        %v1135 = vlaneseq
        %v1136 = vshrl.u32 %v1135, 7
        %v1137 = vsub.s32 3, %v1136
        %v1138 = vrot.slane %v1121, %v1137
        %v1143 = vmul.f32 %v1119, %v1126
        %v1144 = vmul.f32 %v1118, %v1130
        %v1145 = vmul.f32 %v1117, %v1134
        %v1146 = vmul.f32 %v1120, %v1138
        %1147 = vst [vmem:[#allocation2 + $0x1c0] sm:$0xff] %v1143
        %1148 = vst [vmem:[#allocation2 + $0x1c8] sm:$0xff] %v1144
        %1149 = vst [vmem:[#allocation2 + $0x1d0] sm:$0xff] %v1145
        %1150 = vst [vmem:[#allocation2 + $0x1d8] sm:$0xff] %v1146
        %1151 = vrot.lane.b32.xlu0 %v912, 113
        %v1152 = vpop.permute.xlu0 %1151
        %1153 = vrot.lane.b32.xlu0 %v913, 113
        %v1154 = vpop.permute.xlu0 %1153
        %1155 = vrot.lane.b32.xlu0 %v935, 113
        %v1156 = vpop.permute.xlu0 %1155
        %1157 = vrot.lane.b32.xlu0 %v936, 113
        %v1158 = vpop.permute.xlu0 %1157
        %v1159 = vsel %vm584, %v1156, %v1158
        %v1160 = vsel %vm584, %v1154, %v1156
        %v1161 = vsel %vm584, %v1152, %v1154
        %v1162 = vsel %vm584, %v1158, %v1152
        %v1163 = vld [vmem:[%s589] ss:$8 sm:$0xf]
        %v1165 = vlaneseq
        %v1166 = vshrl.u32 %v1165, 7
        %v1167 = vsub.s32 0, %v1166
        %v1168 = vrot.slane %v1163, %v1167
        %v1169 = vlaneseq
        %v1170 = vshrl.u32 %v1169, 7
        %v1171 = vsub.s32 1, %v1170
        %v1172 = vrot.slane %v1163, %v1171
        %v1173 = vlaneseq
        %v1174 = vshrl.u32 %v1173, 7
        %v1175 = vsub.s32 2, %v1174
        %v1176 = vrot.slane %v1163, %v1175
        %v1177 = vlaneseq
        %v1178 = vshrl.u32 %v1177, 7
        %v1179 = vsub.s32 3, %v1178
        %v1180 = vrot.slane %v1163, %v1179
        %v1185 = vmul.f32 %v1161, %v1168
        %v1186 = vmul.f32 %v1160, %v1172
        %v1187 = vmul.f32 %v1159, %v1176
        %v1188 = vmul.f32 %v1162, %v1180
        %1189 = vst [vmem:[#allocation2 + $0x1e0] sm:$0xff] %v1185
        %1190 = vst [vmem:[#allocation2 + $0x1e8] sm:$0xff] %v1186
        %1191 = vst [vmem:[#allocation2 + $0x1f0] sm:$0xff] %v1187
        %1192 = vst [vmem:[#allocation2 + $0x1f8] sm:$0xff] %v1188
        %1193 = vrot.lane.b32.xlu0 %v912, 112
        %v1194 = vpop.permute.xlu0 %1193
        %1195 = vrot.lane.b32.xlu0 %v913, 112
        %v1196 = vpop.permute.xlu0 %1195
        %1197 = vrot.lane.b32.xlu0 %v935, 112
        %v1198 = vpop.permute.xlu0 %1197
        %1199 = vrot.lane.b32.xlu0 %v936, 112
        %v1200 = vpop.permute.xlu0 %1199
        %v1201 = vsel %vm628, %v1198, %v1200
        %v1202 = vsel %vm628, %v1196, %v1198
        %v1203 = vsel %vm628, %v1194, %v1196
        %v1204 = vsel %vm628, %v1200, %v1194
        %v1205 = vld [vmem:[%s633] ss:$8 sm:$0xf]
        %v1207 = vlaneseq
        %v1208 = vshrl.u32 %v1207, 7
        %v1209 = vsub.s32 0, %v1208
        %v1210 = vrot.slane %v1205, %v1209
        %v1211 = vlaneseq
        %v1212 = vshrl.u32 %v1211, 7
        %v1213 = vsub.s32 1, %v1212
        %v1214 = vrot.slane %v1205, %v1213
        %v1215 = vlaneseq
        %v1216 = vshrl.u32 %v1215, 7
        %v1217 = vsub.s32 2, %v1216
        %v1218 = vrot.slane %v1205, %v1217
        %v1219 = vlaneseq
        %v1220 = vshrl.u32 %v1219, 7
        %v1221 = vsub.s32 3, %v1220
        %v1222 = vrot.slane %v1205, %v1221
        %v1227 = vmul.f32 %v1203, %v1210
        %v1228 = vmul.f32 %v1202, %v1214
        %v1229 = vmul.f32 %v1201, %v1218
        %v1230 = vmul.f32 %v1204, %v1222
        %1231 = vst [vmem:[#allocation2 + $0x200] sm:$0xff] %v1227
        %1232 = vst [vmem:[#allocation2 + $0x208] sm:$0xff] %v1228
        %1233 = vst [vmem:[#allocation2 + $0x210] sm:$0xff] %v1229
        %1234 = vst [vmem:[#allocation2 + $0x218] sm:$0xff] %v1230
        %1235 = vrot.lane.b32.xlu0 %v912, 111
        %v1236 = vpop.permute.xlu0 %1235
        %1237 = vrot.lane.b32.xlu0 %v913, 111
        %v1238 = vpop.permute.xlu0 %1237
        %1239 = vrot.lane.b32.xlu0 %v935, 111
        %v1240 = vpop.permute.xlu0 %1239
        %1241 = vrot.lane.b32.xlu0 %v936, 111
        %v1242 = vpop.permute.xlu0 %1241
        %v1243 = vsel %vm672, %v1240, %v1242
        %v1244 = vsel %vm672, %v1238, %v1240
        %v1245 = vsel %vm672, %v1236, %v1238
        %v1246 = vsel %vm672, %v1242, %v1236
        %v1247 = vld [vmem:[%s677] ss:$8 sm:$0xf]
        %v1249 = vlaneseq
        %v1250 = vshrl.u32 %v1249, 7
        %v1251 = vsub.s32 0, %v1250
        %v1252 = vrot.slane %v1247, %v1251
        %v1253 = vlaneseq
        %v1254 = vshrl.u32 %v1253, 7
        %v1255 = vsub.s32 1, %v1254
        %v1256 = vrot.slane %v1247, %v1255
        %v1257 = vlaneseq
        %v1258 = vshrl.u32 %v1257, 7
        %v1259 = vsub.s32 2, %v1258
        %v1260 = vrot.slane %v1247, %v1259
        %v1261 = vlaneseq
        %v1262 = vshrl.u32 %v1261, 7
        %v1263 = vsub.s32 3, %v1262
        %v1264 = vrot.slane %v1247, %v1263
        %v1269 = vmul.f32 %v1245, %v1252
        %v1270 = vmul.f32 %v1244, %v1256
        %v1271 = vmul.f32 %v1243, %v1260
        %v1272 = vmul.f32 %v1246, %v1264
        %1273 = vst [vmem:[#allocation2 + $0x220] sm:$0xff] %v1269
        %1274 = vst [vmem:[#allocation2 + $0x228] sm:$0xff] %v1270
        %1275 = vst [vmem:[#allocation2 + $0x230] sm:$0xff] %v1271
        %1276 = vst [vmem:[#allocation2 + $0x238] sm:$0xff] %v1272
        %v1277 = vld [vmem:[%s2] sm:$0xff]
        %v1278 = vld [vmem:[%s2 + $0x8] sm:$0xff]
        %v1279 = vld [vmem:[#allocation2] sm:$0xff]
        %v1280 = vld [vmem:[#allocation2 + $0x8] sm:$0xff]
        %v1281 = vld [vmem:[#allocation2 + $0x10] sm:$0xff]
        %v1282 = vld [vmem:[#allocation2 + $0x18] sm:$0xff]
        %v1283 = vld [vmem:[#allocation2 + $0x20] sm:$0xff]
        %v1284 = vld [vmem:[#allocation2 + $0x28] sm:$0xff]
        %v1285 = vld [vmem:[#allocation2 + $0x30] sm:$0xff]
        %v1286 = vld [vmem:[#allocation2 + $0x38] sm:$0xff]
        %v1287 = vld [vmem:[#allocation2 + $0x40] sm:$0xff]
        %v1288 = vld [vmem:[#allocation2 + $0x48] sm:$0xff]
        %v1289 = vld [vmem:[#allocation2 + $0x50] sm:$0xff]
        %v1290 = vld [vmem:[#allocation2 + $0x58] sm:$0xff]
        %v1291 = vld [vmem:[#allocation2 + $0x60] sm:$0xff]
        %v1292 = vld [vmem:[#allocation2 + $0x68] sm:$0xff]
        %v1293 = vld [vmem:[#allocation2 + $0x70] sm:$0xff]
        %v1294 = vld [vmem:[#allocation2 + $0x78] sm:$0xff]
        %v1295 = vld [vmem:[#allocation2 + $0x80] sm:$0xff]
        %v1296 = vld [vmem:[#allocation2 + $0x88] sm:$0xff]
        %v1297 = vld [vmem:[#allocation2 + $0x90] sm:$0xff]
        %v1298 = vld [vmem:[#allocation2 + $0x98] sm:$0xff]
        %v1299 = vld [vmem:[#allocation2 + $0xa0] sm:$0xff]
        %v1300 = vld [vmem:[#allocation2 + $0xa8] sm:$0xff]
        %v1301 = vld [vmem:[#allocation2 + $0xb0] sm:$0xff]
        %v1302 = vld [vmem:[#allocation2 + $0xb8] sm:$0xff]
        %v1303 = vld [vmem:[#allocation2 + $0xc0] sm:$0xff]
        %v1304 = vld [vmem:[#allocation2 + $0xc8] sm:$0xff]
        %v1305 = vld [vmem:[#allocation2 + $0xd0] sm:$0xff]
        %v1306 = vld [vmem:[#allocation2 + $0xd8] sm:$0xff]
        %v1307 = vld [vmem:[#allocation2 + $0xe0] sm:$0xff]
        %v1308 = vld [vmem:[#allocation2 + $0xe8] sm:$0xff]
        %v1309 = vld [vmem:[#allocation2 + $0xf0] sm:$0xff]
        %v1310 = vld [vmem:[#allocation2 + $0xf8] sm:$0xff]
        %v1311 = vld [vmem:[#allocation2 + $0x100] sm:$0xff]
        %v1312 = vld [vmem:[#allocation2 + $0x108] sm:$0xff]
        %v1313 = vld [vmem:[#allocation2 + $0x110] sm:$0xff]
        %v1314 = vld [vmem:[#allocation2 + $0x118] sm:$0xff]
        %v1315 = vld [vmem:[#allocation2 + $0x120] sm:$0xff]
        %v1316 = vld [vmem:[#allocation2 + $0x128] sm:$0xff]
        %v1317 = vld [vmem:[#allocation2 + $0x130] sm:$0xff]
        %v1318 = vld [vmem:[#allocation2 + $0x138] sm:$0xff]
        %v1319 = vld [vmem:[#allocation2 + $0x140] sm:$0xff]
        %v1320 = vld [vmem:[#allocation2 + $0x148] sm:$0xff]
        %v1321 = vld [vmem:[#allocation2 + $0x150] sm:$0xff]
        %v1322 = vld [vmem:[#allocation2 + $0x158] sm:$0xff]
        %v1323 = vld [vmem:[#allocation2 + $0x160] sm:$0xff]
        %v1324 = vld [vmem:[#allocation2 + $0x168] sm:$0xff]
        %v1325 = vld [vmem:[#allocation2 + $0x170] sm:$0xff]
        %v1326 = vld [vmem:[#allocation2 + $0x178] sm:$0xff]
        %v1327 = vld [vmem:[#allocation2 + $0x180] sm:$0xff]
        %v1328 = vld [vmem:[#allocation2 + $0x188] sm:$0xff]
        %v1329 = vld [vmem:[#allocation2 + $0x190] sm:$0xff]
        %v1330 = vld [vmem:[#allocation2 + $0x198] sm:$0xff]
        %v1331 = vld [vmem:[#allocation2 + $0x1a0] sm:$0xff]
        %v1332 = vld [vmem:[#allocation2 + $0x1a8] sm:$0xff]
        %v1333 = vld [vmem:[#allocation2 + $0x1b0] sm:$0xff]
        %v1334 = vld [vmem:[#allocation2 + $0x1b8] sm:$0xff]
        %v1335 = vld [vmem:[#allocation2 + $0x1c0] sm:$0xff]
        %v1336 = vld [vmem:[#allocation2 + $0x1c8] sm:$0xff]
        %v1337 = vld [vmem:[#allocation2 + $0x1d0] sm:$0xff]
        %v1338 = vld [vmem:[#allocation2 + $0x1d8] sm:$0xff]
        %v1339 = vld [vmem:[#allocation2 + $0x1e0] sm:$0xff]
        %v1340 = vld [vmem:[#allocation2 + $0x1e8] sm:$0xff]
        %v1341 = vld [vmem:[#allocation2 + $0x1f0] sm:$0xff]
        %v1342 = vld [vmem:[#allocation2 + $0x1f8] sm:$0xff]
        %v1343 = vld [vmem:[#allocation2 + $0x200] sm:$0xff]
        %v1344 = vld [vmem:[#allocation2 + $0x208] sm:$0xff]
        %v1345 = vld [vmem:[#allocation2 + $0x210] sm:$0xff]
        %v1346 = vld [vmem:[#allocation2 + $0x218] sm:$0xff]
        %v1347 = vld [vmem:[#allocation2 + $0x220] sm:$0xff]
        %v1348 = vld [vmem:[#allocation2 + $0x228] sm:$0xff]
        %v1349 = vld [vmem:[#allocation2 + $0x230] sm:$0xff]
        %v1350 = vld [vmem:[#allocation2 + $0x238] sm:$0xff]
        %vm1351 = vcmask 130048
        %v1353 = vsel %vm1351, %v1278, 0
        %1355 = vmatprep.subr.mxu0 %v1280
        %1356 = vmatpush1.msra.mxu0 %v1279
        %1357 = vmatprep.subr.mxu0 %v1284
        %1358 = vmatpush1.msra.mxu0 %v1283
        %1359 = vmatprep.subr.mxu0 %v1288
        %1360 = vmatpush1.msra.mxu0 %v1287
        %1361 = vmatprep.subr.mxu0 %v1292
        %1362 = vmatpush1.msra.mxu0 %v1291
        %1363 = vmatprep.subr.mxu0 %v1296
        %1364 = vmatpush1.msra.mxu0 %v1295
        %1365 = vmatprep.subr.mxu0 %v1300
        %1366 = vmatpush1.msra.mxu0 %v1299
        %1367 = vmatprep.subr.mxu0 %v1304
        %1368 = vmatpush1.msra.mxu0 %v1303
        %1369 = vmatprep.subr.mxu0 %v1308
        %1370 = vmatpush1.msra.mxu0 %v1307
        %1371 = vmatprep.subr.mxu0 %v1312
        %1372 = vmatpush1.msra.mxu0 %v1311
        %1373 = vmatprep.subr.mxu0 %v1316
        %1374 = vmatpush1.msra.mxu0 %v1315
        %1375 = vmatprep.subr.mxu0 %v1320
        %1376 = vmatpush1.msra.mxu0 %v1319
        %1377 = vmatprep.subr.mxu0 %v1324
        %1378 = vmatpush1.msra.mxu0 %v1323
        %1379 = vmatprep.subr.mxu0 %v1328
        %1380 = vmatpush1.msra.mxu0 %v1327
        %1381 = vmatprep.subr.mxu0 %v1332
        %1382 = vmatpush1.msra.mxu0 %v1331
        %1383 = vmatprep.subr.mxu0 %v1336
        %1384 = vmatpush1.msra.mxu0 %v1335
        %1385 = vmatprep.subr.mxu0 %v1340
        %1386 = vmatpush1.msra.mxu0 %v1339
        %1387 = vmatprep.subr.mxu0 %v1344
        %1388 = vmatpush1.msra.mxu0 %v1343
        %1389 = vmatprep.subr.mxu0 %v1348
        %1390 = vmatpush1.msra.mxu0 %v1347
        %1391 = vmatprep.subr.mxu0 0.0
        %1392 = vmatpush1.msra.mxu0 0.0
        %1393 = vmatprep.subr.mxu0 0.0
        %1394 = vmatpush1.msra.mxu0 0.0
        %1395 = vmatprep.subr.mxu0 0.0
        %1396 = vmatpush1.msra.mxu0 0.0
        %1397 = vmatprep.subr.mxu0 0.0
        %1398 = vmatpush1.msra.mxu0 0.0
        %1399 = vmatprep.subr.mxu0 0.0
        %1400 = vmatpush1.msra.mxu0 0.0
        %1401 = vmatprep.subr.mxu0 0.0
        %1402 = vmatpush1.msra.mxu0 0.0
        %1403 = vmatprep.subr.mxu0 0.0
        %1404 = vmatpush1.msra.mxu0 0.0
        %1405 = vmatprep.subr.mxu0 0.0
        %1406 = vmatpush1.msra.mxu0 0.0
        %1407 = vmatprep.subr.mxu0 0.0
        %1408 = vmatpush1.msra.mxu0 0.0
        %1409 = vmatprep.subr.mxu0 0.0
        %1410 = vmatpush1.msra.mxu0 0.0
        %1411 = vmatprep.subr.mxu0 0.0
        %1412 = vmatpush1.msra.mxu0 0.0
        %1413 = vmatprep.subr.mxu0 0.0
        %1414 = vmatpush1.msra.mxu0 0.0
        %1415 = vmatprep.subr.mxu0 0.0
        %1416 = vmatpush1.msra.mxu0 0.0
        %1417 = vmatprep.subr.mxu0 0.0
        %1418 = vmatpush1.msra.mxu0 0.0
        %1419 = vmatprep.mubr.f32.mxu0 %v1353
        %1420 = vmatmul.mubr.f32.gmra.mrb[0].mxu0 %v1277
        %v1421 = vpop.f32.mrb[0].mxu0
        %v1422 = vadd.f32 0.0, %v1421
        %v1423 = vpop.f32.mrb[0].mxu0
        %v1424 = vadd.f32 0.0, %v1423
        %1425 = vdwg.mxu0
        %1426 = vmatprep.subr.mxu0 %v1282
        %1427 = vmatpush1.msra.mxu0 %v1281
        %1428 = vmatprep.subr.mxu0 %v1286
        %1429 = vmatpush1.msra.mxu0 %v1285
        %1430 = vmatprep.subr.mxu0 %v1290
        %1431 = vmatpush1.msra.mxu0 %v1289
        %1432 = vmatprep.subr.mxu0 %v1294
        %1433 = vmatpush1.msra.mxu0 %v1293
        %1434 = vmatprep.subr.mxu0 %v1298
        %1435 = vmatpush1.msra.mxu0 %v1297
        %1436 = vmatprep.subr.mxu0 %v1302
        %1437 = vmatpush1.msra.mxu0 %v1301
        %1438 = vmatprep.subr.mxu0 %v1306
        %1439 = vmatpush1.msra.mxu0 %v1305
        %1440 = vmatprep.subr.mxu0 %v1310
        %1441 = vmatpush1.msra.mxu0 %v1309
        %1442 = vmatprep.subr.mxu0 %v1314
        %1443 = vmatpush1.msra.mxu0 %v1313
        %1444 = vmatprep.subr.mxu0 %v1318
        %1445 = vmatpush1.msra.mxu0 %v1317
        %1446 = vmatprep.subr.mxu0 %v1322
        %1447 = vmatpush1.msra.mxu0 %v1321
        %1448 = vmatprep.subr.mxu0 %v1326
        %1449 = vmatpush1.msra.mxu0 %v1325
        %1450 = vmatprep.subr.mxu0 %v1330
        %1451 = vmatpush1.msra.mxu0 %v1329
        %1452 = vmatprep.subr.mxu0 %v1334
        %1453 = vmatpush1.msra.mxu0 %v1333
        %1454 = vmatprep.subr.mxu0 %v1338
        %1455 = vmatpush1.msra.mxu0 %v1337
        %1456 = vmatprep.subr.mxu0 %v1342
        %1457 = vmatpush1.msra.mxu0 %v1341
        %1458 = vmatprep.subr.mxu0 %v1346
        %1459 = vmatpush1.msra.mxu0 %v1345
        %1460 = vmatprep.subr.mxu0 %v1350
        %1461 = vmatpush1.msra.mxu0 %v1349
        %1462 = vmatprep.subr.mxu0 0.0
        %1463 = vmatpush1.msra.mxu0 0.0
        %1464 = vmatprep.subr.mxu0 0.0
        %1465 = vmatpush1.msra.mxu0 0.0
        %1466 = vmatprep.subr.mxu0 0.0
        %1467 = vmatpush1.msra.mxu0 0.0
        %1468 = vmatprep.subr.mxu0 0.0
        %1469 = vmatpush1.msra.mxu0 0.0
        %1470 = vmatprep.subr.mxu0 0.0
        %1471 = vmatpush1.msra.mxu0 0.0
        %1472 = vmatprep.subr.mxu0 0.0
        %1473 = vmatpush1.msra.mxu0 0.0
        %1474 = vmatprep.subr.mxu0 0.0
        %1475 = vmatpush1.msra.mxu0 0.0
        %1476 = vmatprep.subr.mxu0 0.0
        %1477 = vmatpush1.msra.mxu0 0.0
        %1478 = vmatprep.subr.mxu0 0.0
        %1479 = vmatpush1.msra.mxu0 0.0
        %1480 = vmatprep.subr.mxu0 0.0
        %1481 = vmatpush1.msra.mxu0 0.0
        %1482 = vmatprep.subr.mxu0 0.0
        %1483 = vmatpush1.msra.mxu0 0.0
        %1484 = vmatprep.subr.mxu0 0.0
        %1485 = vmatpush1.msra.mxu0 0.0
        %1486 = vmatprep.subr.mxu0 0.0
        %1487 = vmatpush1.msra.mxu0 0.0
        %1488 = vmatprep.subr.mxu0 0.0
        %1489 = vmatpush1.msra.mxu0 0.0
        %1490 = vmatprep.mubr.f32.mxu0 %v1353
        %1491 = vmatmul.mubr.f32.gmra.mrb[0].mxu0 %v1277
        %v1492 = vpop.f32.mrb[0].mxu0
        %v1493 = vadd.f32 0.0, %v1492
        %v1494 = vpop.f32.mrb[0].mxu0
        %v1495 = vadd.f32 0.0, %v1494
        %1496 = vdwg.mxu0
        %v1497 = vadd.f32 %v1422, %v1424
        %1498 = vadd.xlane.f32.xlu0 %v1497
        %v1499 = vpop.xlane.xlu0 %1498
        %v1500 = vmul.f32 %v1499, 0.00390625
        %v1501 = vmul.f32 %v1422, %v1422
        %v1502 = vmul.f32 %v1424, %v1424
        %v1503 = vadd.f32 %v1501, %v1502
        %1504 = vadd.xlane.f32.xlu0 %v1503
        %v1505 = vpop.xlane.xlu0 %1504
        %v1506 = vmul.f32 %v1505, 0.00390625
        %v1507 = vmul.f32 %v1500, %v1500
        %v1508 = vsub.f32 %v1506, %v1507
        %v1509 = vmax.f32 %v1508, 0.0
        %v1510 = vsub.f32 %v1422, %v1500
        %v1511 = vsub.f32 %v1424, %v1500
        %v1512 = vadd.f32 %v1509, 1e-05
        %v1513 = vrsqrt.pop %v1512
        %v1514 = vmul.f32 %v1510, %v1513
        %v1515 = vmul.f32 %v1511, %v1513
        %v1516 = vmul.f32 %v1514, 0.2
        %v1517 = vmul.f32 %v1515, 0.2
        %v1518 = vmax.f32 %v1514, %v1516
        %v1519 = vmax.f32 %v1515, %v1517
        %v1520 = vadd.f32 %v1493, %v1495
        %1521 = vadd.xlane.f32.xlu0 %v1520
        %v1522 = vpop.xlane.xlu0 %1521
        %v1523 = vmul.f32 %v1522, 0.00390625
        %v1524 = vmul.f32 %v1493, %v1493
        %v1525 = vmul.f32 %v1495, %v1495
        %v1526 = vadd.f32 %v1524, %v1525
        %1527 = vadd.xlane.f32.xlu0 %v1526
        %v1528 = vpop.xlane.xlu0 %1527
        %v1529 = vmul.f32 %v1528, 0.00390625
        %v1530 = vmul.f32 %v1523, %v1523
        %v1531 = vsub.f32 %v1529, %v1530
        %v1532 = vmax.f32 %v1531, 0.0
        %v1533 = vsub.f32 %v1493, %v1523
        %v1534 = vsub.f32 %v1495, %v1523
        %v1535 = vadd.f32 %v1532, 1e-05
        %v1536 = vrsqrt.pop %v1535
        %v1537 = vmul.f32 %v1533, %v1536
        %v1538 = vmul.f32 %v1534, %v1536
        %v1539 = vmul.f32 %v1537, 0.2
        %v1540 = vmul.f32 %v1538, 0.2
        %v1541 = vmax.f32 %v1537, %v1539
        %v1542 = vmax.f32 %v1538, %v1540
        %1543 = vrot.lane.b32.xlu0 %v1518, 17
        %v1544 = vpop.permute.xlu0 %1543
        %1545 = vrot.lane.b32.xlu0 %v1519, 17
        %v1546 = vpop.permute.xlu0 %1545
        %1547 = vrot.lane.b32.xlu0 %v1541, 17
        %v1548 = vpop.permute.xlu0 %1547
        %1549 = vrot.lane.b32.xlu0 %v1542, 17
        %v1550 = vpop.permute.xlu0 %1549
        %v1551 = vsel %vm361, %v1548, %v1550
        %v1552 = vsel %vm361, %v1546, %v1548
        %v1553 = vsel %vm361, %v1544, %v1546
        %v1554 = vsel %vm361, %v1550, %v1544
        %v1555 = vld [vmem:[#allocation11] ss:$8 sm:$0xf]
        %v1557 = vlaneseq
        %v1558 = vshrl.u32 %v1557, 7
        %v1559 = vsub.s32 0, %v1558
        %v1560 = vrot.slane %v1555, %v1559
        %v1561 = vlaneseq
        %v1562 = vshrl.u32 %v1561, 7
        %v1563 = vsub.s32 1, %v1562
        %v1564 = vrot.slane %v1555, %v1563
        %v1565 = vlaneseq
        %v1566 = vshrl.u32 %v1565, 7
        %v1567 = vsub.s32 2, %v1566
        %v1568 = vrot.slane %v1555, %v1567
        %v1569 = vlaneseq
        %v1570 = vshrl.u32 %v1569, 7
        %v1571 = vsub.s32 3, %v1570
        %v1572 = vrot.slane %v1555, %v1571
        %v1577 = vmul.f32 %v1554, %v1560
        %v1578 = vmul.f32 %v1553, %v1564
        %v1579 = vmul.f32 %v1552, %v1568
        %v1580 = vmul.f32 %v1551, %v1572
        %1581 = vst [vmem:[#allocation2 + $0x240] sm:$0xff] %v1577
        %1582 = vst [vmem:[#allocation2 + $0x248] sm:$0xff] %v1578
        %1583 = vst [vmem:[#allocation2 + $0x250] sm:$0xff] %v1579
        %1584 = vst [vmem:[#allocation2 + $0x258] sm:$0xff] %v1580
        %1585 = vrot.lane.b32.xlu0 %v1518, 16
        %v1586 = vpop.permute.xlu0 %1585
        %1587 = vrot.lane.b32.xlu0 %v1519, 16
        %v1588 = vpop.permute.xlu0 %1587
        %1589 = vrot.lane.b32.xlu0 %v1541, 16
        %v1590 = vpop.permute.xlu0 %1589
        %1591 = vrot.lane.b32.xlu0 %v1542, 16
        %v1592 = vpop.permute.xlu0 %1591
        %v1593 = vsel %vm404, %v1590, %v1592
        %v1594 = vsel %vm404, %v1588, %v1590
        %v1595 = vsel %vm404, %v1586, %v1588
        %v1596 = vsel %vm404, %v1592, %v1586
        %v1597 = vld [vmem:[%s409] ss:$8 sm:$0xf]
        %v1599 = vlaneseq
        %v1600 = vshrl.u32 %v1599, 7
        %v1601 = vsub.s32 0, %v1600
        %v1602 = vrot.slane %v1597, %v1601
        %v1603 = vlaneseq
        %v1604 = vshrl.u32 %v1603, 7
        %v1605 = vsub.s32 1, %v1604
        %v1606 = vrot.slane %v1597, %v1605
        %v1607 = vlaneseq
        %v1608 = vshrl.u32 %v1607, 7
        %v1609 = vsub.s32 2, %v1608
        %v1610 = vrot.slane %v1597, %v1609
        %v1611 = vlaneseq
        %v1612 = vshrl.u32 %v1611, 7
        %v1613 = vsub.s32 3, %v1612
        %v1614 = vrot.slane %v1597, %v1613
        %v1619 = vmul.f32 %v1596, %v1602
        %v1620 = vmul.f32 %v1595, %v1606
        %v1621 = vmul.f32 %v1594, %v1610
        %v1622 = vmul.f32 %v1593, %v1614
        %1623 = vst [vmem:[#allocation2 + $0x260] sm:$0xff] %v1619
        %1624 = vst [vmem:[#allocation2 + $0x268] sm:$0xff] %v1620
        %1625 = vst [vmem:[#allocation2 + $0x270] sm:$0xff] %v1621
        %1626 = vst [vmem:[#allocation2 + $0x278] sm:$0xff] %v1622
        %1627 = vrot.lane.b32.xlu0 %v1518, 15
        %v1628 = vpop.permute.xlu0 %1627
        %1629 = vrot.lane.b32.xlu0 %v1519, 15
        %v1630 = vpop.permute.xlu0 %1629
        %1631 = vrot.lane.b32.xlu0 %v1541, 15
        %v1632 = vpop.permute.xlu0 %1631
        %1633 = vrot.lane.b32.xlu0 %v1542, 15
        %v1634 = vpop.permute.xlu0 %1633
        %v1635 = vsel %vm448, %v1632, %v1634
        %v1636 = vsel %vm448, %v1630, %v1632
        %v1637 = vsel %vm448, %v1628, %v1630
        %v1638 = vsel %vm448, %v1634, %v1628
        %v1639 = vld [vmem:[%s453] ss:$8 sm:$0xf]
        %v1641 = vlaneseq
        %v1642 = vshrl.u32 %v1641, 7
        %v1643 = vsub.s32 0, %v1642
        %v1644 = vrot.slane %v1639, %v1643
        %v1645 = vlaneseq
        %v1646 = vshrl.u32 %v1645, 7
        %v1647 = vsub.s32 1, %v1646
        %v1648 = vrot.slane %v1639, %v1647
        %v1649 = vlaneseq
        %v1650 = vshrl.u32 %v1649, 7
        %v1651 = vsub.s32 2, %v1650
        %v1652 = vrot.slane %v1639, %v1651
        %v1653 = vlaneseq
        %v1654 = vshrl.u32 %v1653, 7
        %v1655 = vsub.s32 3, %v1654
        %v1656 = vrot.slane %v1639, %v1655
        %v1661 = vmul.f32 %v1638, %v1644
        %v1662 = vmul.f32 %v1637, %v1648
        %v1663 = vmul.f32 %v1636, %v1652
        %v1664 = vmul.f32 %v1635, %v1656
        %1665 = vst [vmem:[#allocation2 + $0x280] sm:$0xff] %v1661
        %1666 = vst [vmem:[#allocation2 + $0x288] sm:$0xff] %v1662
        %1667 = vst [vmem:[#allocation2 + $0x290] sm:$0xff] %v1663
        %1668 = vst [vmem:[#allocation2 + $0x298] sm:$0xff] %v1664
        %1669 = vrot.lane.b32.xlu0 %v1518, 1
        %v1670 = vpop.permute.xlu0 %1669
        %1671 = vrot.lane.b32.xlu0 %v1519, 1
        %v1672 = vpop.permute.xlu0 %1671
        %1673 = vrot.lane.b32.xlu0 %v1541, 1
        %v1674 = vpop.permute.xlu0 %1673
        %1675 = vrot.lane.b32.xlu0 %v1542, 1
        %v1676 = vpop.permute.xlu0 %1675
        %v1677 = vsel %vm492, %v1674, %v1676
        %v1678 = vsel %vm492, %v1672, %v1674
        %v1679 = vsel %vm492, %v1670, %v1672
        %v1680 = vsel %vm492, %v1676, %v1670
        %v1681 = vld [vmem:[%s497] ss:$8 sm:$0xf]
        %v1683 = vlaneseq
        %v1684 = vshrl.u32 %v1683, 7
        %v1685 = vsub.s32 0, %v1684
        %v1686 = vrot.slane %v1681, %v1685
        %v1687 = vlaneseq
        %v1688 = vshrl.u32 %v1687, 7
        %v1689 = vsub.s32 1, %v1688
        %v1690 = vrot.slane %v1681, %v1689
        %v1691 = vlaneseq
        %v1692 = vshrl.u32 %v1691, 7
        %v1693 = vsub.s32 2, %v1692
        %v1694 = vrot.slane %v1681, %v1693
        %v1695 = vlaneseq
        %v1696 = vshrl.u32 %v1695, 7
        %v1697 = vsub.s32 3, %v1696
        %v1698 = vrot.slane %v1681, %v1697
        %v1703 = vmul.f32 %v1680, %v1686
        %v1704 = vmul.f32 %v1679, %v1690
        %v1705 = vmul.f32 %v1678, %v1694
        %v1706 = vmul.f32 %v1677, %v1698
        %1707 = vst [vmem:[#allocation2 + $0x2a0] sm:$0xff] %v1703
        %1708 = vst [vmem:[#allocation2 + $0x2a8] sm:$0xff] %v1704
        %1709 = vst [vmem:[#allocation2 + $0x2b0] sm:$0xff] %v1705
        %1710 = vst [vmem:[#allocation2 + $0x2b8] sm:$0xff] %v1706
        %1711 = vst [vmem:[#allocation2 + $0x2c0] sm:$0xff] %v1518
        %1712 = vst [vmem:[#allocation2 + $0x2c8] sm:$0xff] %v1519
        %1713 = vst [vmem:[#allocation2 + $0x2d0] sm:$0xff] %v1541
        %1714 = vst [vmem:[#allocation2 + $0x2d8] sm:$0xff] %v1542
        %1715 = vrot.lane.b32.xlu0 %v1518, 127
        %v1716 = vpop.permute.xlu0 %1715
        %1717 = vrot.lane.b32.xlu0 %v1519, 127
        %v1718 = vpop.permute.xlu0 %1717
        %1719 = vrot.lane.b32.xlu0 %v1541, 127
        %v1720 = vpop.permute.xlu0 %1719
        %1721 = vrot.lane.b32.xlu0 %v1542, 127
        %v1722 = vpop.permute.xlu0 %1721
        %v1723 = vsel %vm540, %v1720, %v1722
        %v1724 = vsel %vm540, %v1718, %v1720
        %v1725 = vsel %vm540, %v1716, %v1718
        %v1726 = vsel %vm540, %v1722, %v1716
        %v1727 = vld [vmem:[%s545] ss:$8 sm:$0xf]
        %v1729 = vlaneseq
        %v1730 = vshrl.u32 %v1729, 7
        %v1731 = vsub.s32 0, %v1730
        %v1732 = vrot.slane %v1727, %v1731
        %v1733 = vlaneseq
        %v1734 = vshrl.u32 %v1733, 7
        %v1735 = vsub.s32 1, %v1734
        %v1736 = vrot.slane %v1727, %v1735
        %v1737 = vlaneseq
        %v1738 = vshrl.u32 %v1737, 7
        %v1739 = vsub.s32 2, %v1738
        %v1740 = vrot.slane %v1727, %v1739
        %v1741 = vlaneseq
        %v1742 = vshrl.u32 %v1741, 7
        %v1743 = vsub.s32 3, %v1742
        %v1744 = vrot.slane %v1727, %v1743
        %v1749 = vmul.f32 %v1725, %v1732
        %v1750 = vmul.f32 %v1724, %v1736
        %v1751 = vmul.f32 %v1723, %v1740
        %v1752 = vmul.f32 %v1726, %v1744
        %1753 = vst [vmem:[#allocation2 + $0x2e0] sm:$0xff] %v1749
        %1754 = vst [vmem:[#allocation2 + $0x2e8] sm:$0xff] %v1750
        %1755 = vst [vmem:[#allocation2 + $0x2f0] sm:$0xff] %v1751
        %1756 = vst [vmem:[#allocation2 + $0x2f8] sm:$0xff] %v1752
        %1757 = vrot.lane.b32.xlu0 %v1518, 113
        %v1758 = vpop.permute.xlu0 %1757
        %1759 = vrot.lane.b32.xlu0 %v1519, 113
        %v1760 = vpop.permute.xlu0 %1759
        %1761 = vrot.lane.b32.xlu0 %v1541, 113
        %v1762 = vpop.permute.xlu0 %1761
        %1763 = vrot.lane.b32.xlu0 %v1542, 113
        %v1764 = vpop.permute.xlu0 %1763
        %v1765 = vsel %vm584, %v1762, %v1764
        %v1766 = vsel %vm584, %v1760, %v1762
        %v1767 = vsel %vm584, %v1758, %v1760
        %v1768 = vsel %vm584, %v1764, %v1758
        %v1769 = vld [vmem:[%s589] ss:$8 sm:$0xf]
        %v1771 = vlaneseq
        %v1772 = vshrl.u32 %v1771, 7
        %v1773 = vsub.s32 0, %v1772
        %v1774 = vrot.slane %v1769, %v1773
        %v1775 = vlaneseq
        %v1776 = vshrl.u32 %v1775, 7
        %v1777 = vsub.s32 1, %v1776
        %v1778 = vrot.slane %v1769, %v1777
        %v1779 = vlaneseq
        %v1780 = vshrl.u32 %v1779, 7
        %v1781 = vsub.s32 2, %v1780
        %v1782 = vrot.slane %v1769, %v1781
        %v1783 = vlaneseq
        %v1784 = vshrl.u32 %v1783, 7
        %v1785 = vsub.s32 3, %v1784
        %v1786 = vrot.slane %v1769, %v1785
        %v1791 = vmul.f32 %v1767, %v1774
        %v1792 = vmul.f32 %v1766, %v1778
        %v1793 = vmul.f32 %v1765, %v1782
        %v1794 = vmul.f32 %v1768, %v1786
        %1795 = vst [vmem:[#allocation2 + $0x300] sm:$0xff] %v1791
        %1796 = vst [vmem:[#allocation2 + $0x308] sm:$0xff] %v1792
        %1797 = vst [vmem:[#allocation2 + $0x310] sm:$0xff] %v1793
        %1798 = vst [vmem:[#allocation2 + $0x318] sm:$0xff] %v1794
        %1799 = vrot.lane.b32.xlu0 %v1518, 112
        %v1800 = vpop.permute.xlu0 %1799
        %1801 = vrot.lane.b32.xlu0 %v1519, 112
        %v1802 = vpop.permute.xlu0 %1801
        %1803 = vrot.lane.b32.xlu0 %v1541, 112
        %v1804 = vpop.permute.xlu0 %1803
        %1805 = vrot.lane.b32.xlu0 %v1542, 112
        %v1806 = vpop.permute.xlu0 %1805
        %v1807 = vsel %vm628, %v1804, %v1806
        %v1808 = vsel %vm628, %v1802, %v1804
        %v1809 = vsel %vm628, %v1800, %v1802
        %v1810 = vsel %vm628, %v1806, %v1800
        %v1811 = vld [vmem:[%s633] ss:$8 sm:$0xf]
        %v1813 = vlaneseq
        %v1814 = vshrl.u32 %v1813, 7
        %v1815 = vsub.s32 0, %v1814
        %v1816 = vrot.slane %v1811, %v1815
        %v1817 = vlaneseq
        %v1818 = vshrl.u32 %v1817, 7
        %v1819 = vsub.s32 1, %v1818
        %v1820 = vrot.slane %v1811, %v1819
        %v1821 = vlaneseq
        %v1822 = vshrl.u32 %v1821, 7
        %v1823 = vsub.s32 2, %v1822
        %v1824 = vrot.slane %v1811, %v1823
        %v1825 = vlaneseq
        %v1826 = vshrl.u32 %v1825, 7
        %v1827 = vsub.s32 3, %v1826
        %v1828 = vrot.slane %v1811, %v1827
        %v1833 = vmul.f32 %v1809, %v1816
        %v1834 = vmul.f32 %v1808, %v1820
        %v1835 = vmul.f32 %v1807, %v1824
        %v1836 = vmul.f32 %v1810, %v1828
        %1837 = vst [vmem:[#allocation2 + $0x320] sm:$0xff] %v1833
        %1838 = vst [vmem:[#allocation2 + $0x328] sm:$0xff] %v1834
        %1839 = vst [vmem:[#allocation2 + $0x330] sm:$0xff] %v1835
        %1840 = vst [vmem:[#allocation2 + $0x338] sm:$0xff] %v1836
        %1841 = vrot.lane.b32.xlu0 %v1518, 111
        %v1842 = vpop.permute.xlu0 %1841
        %1843 = vrot.lane.b32.xlu0 %v1519, 111
        %v1844 = vpop.permute.xlu0 %1843
        %1845 = vrot.lane.b32.xlu0 %v1541, 111
        %v1846 = vpop.permute.xlu0 %1845
        %1847 = vrot.lane.b32.xlu0 %v1542, 111
        %v1848 = vpop.permute.xlu0 %1847
        %v1849 = vsel %vm672, %v1846, %v1848
        %v1850 = vsel %vm672, %v1844, %v1846
        %v1851 = vsel %vm672, %v1842, %v1844
        %v1852 = vsel %vm672, %v1848, %v1842
        %v1853 = vld [vmem:[%s677] ss:$8 sm:$0xf]
        %v1855 = vlaneseq
        %v1856 = vshrl.u32 %v1855, 7
        %v1857 = vsub.s32 0, %v1856
        %v1858 = vrot.slane %v1853, %v1857
        %v1859 = vlaneseq
        %v1860 = vshrl.u32 %v1859, 7
        %v1861 = vsub.s32 1, %v1860
        %v1862 = vrot.slane %v1853, %v1861
        %v1863 = vlaneseq
        %v1864 = vshrl.u32 %v1863, 7
        %v1865 = vsub.s32 2, %v1864
        %v1866 = vrot.slane %v1853, %v1865
        %v1867 = vlaneseq
        %v1868 = vshrl.u32 %v1867, 7
        %v1869 = vsub.s32 3, %v1868
        %v1870 = vrot.slane %v1853, %v1869
        %v1875 = vmul.f32 %v1851, %v1858
        %v1876 = vmul.f32 %v1850, %v1862
        %v1877 = vmul.f32 %v1849, %v1866
        %v1878 = vmul.f32 %v1852, %v1870
        %1879 = vst [vmem:[#allocation2 + $0x340] sm:$0xff] %v1875
        %1880 = vst [vmem:[#allocation2 + $0x348] sm:$0xff] %v1876
        %1881 = vst [vmem:[#allocation2 + $0x350] sm:$0xff] %v1877
        %1882 = vst [vmem:[#allocation2 + $0x358] sm:$0xff] %v1878
        %v1883 = vld [vmem:[#allocation8] sm:$0xff]
        %v1884 = vld [vmem:[#allocation8 + $0x8] sm:$0xff]
        %v1885 = vld [vmem:[#allocation2] sm:$0xff]
        %v1886 = vld [vmem:[#allocation2 + $0x8] sm:$0xff]
        %v1887 = vld [vmem:[#allocation2 + $0x10] sm:$0xff]
        %v1888 = vld [vmem:[#allocation2 + $0x18] sm:$0xff]
        %v1889 = vld [vmem:[#allocation2 + $0x20] sm:$0xff]
        %v1890 = vld [vmem:[#allocation2 + $0x28] sm:$0xff]
        %v1891 = vld [vmem:[#allocation2 + $0x30] sm:$0xff]
        %v1892 = vld [vmem:[#allocation2 + $0x38] sm:$0xff]
        %v1893 = vld [vmem:[#allocation2 + $0x40] sm:$0xff]
        %v1894 = vld [vmem:[#allocation2 + $0x48] sm:$0xff]
        %v1895 = vld [vmem:[#allocation2 + $0x50] sm:$0xff]
        %v1896 = vld [vmem:[#allocation2 + $0x58] sm:$0xff]
        %v1897 = vld [vmem:[#allocation2 + $0x60] sm:$0xff]
        %v1898 = vld [vmem:[#allocation2 + $0x68] sm:$0xff]
        %v1899 = vld [vmem:[#allocation2 + $0x70] sm:$0xff]
        %v1900 = vld [vmem:[#allocation2 + $0x78] sm:$0xff]
        %v1901 = vld [vmem:[#allocation2 + $0x80] sm:$0xff]
        %v1902 = vld [vmem:[#allocation2 + $0x88] sm:$0xff]
        %v1903 = vld [vmem:[#allocation2 + $0x90] sm:$0xff]
        %v1904 = vld [vmem:[#allocation2 + $0x98] sm:$0xff]
        %v1905 = vld [vmem:[#allocation2 + $0xa0] sm:$0xff]
        %v1906 = vld [vmem:[#allocation2 + $0xa8] sm:$0xff]
        %v1907 = vld [vmem:[#allocation2 + $0xb0] sm:$0xff]
        %v1908 = vld [vmem:[#allocation2 + $0xb8] sm:$0xff]
        %v1909 = vld [vmem:[#allocation2 + $0xc0] sm:$0xff]
        %v1910 = vld [vmem:[#allocation2 + $0xc8] sm:$0xff]
        %v1911 = vld [vmem:[#allocation2 + $0xd0] sm:$0xff]
        %v1912 = vld [vmem:[#allocation2 + $0xd8] sm:$0xff]
        %v1913 = vld [vmem:[#allocation2 + $0xe0] sm:$0xff]
        %v1914 = vld [vmem:[#allocation2 + $0xe8] sm:$0xff]
        %v1915 = vld [vmem:[#allocation2 + $0xf0] sm:$0xff]
        %v1916 = vld [vmem:[#allocation2 + $0xf8] sm:$0xff]
        %v1917 = vld [vmem:[#allocation2 + $0x100] sm:$0xff]
        %v1918 = vld [vmem:[#allocation2 + $0x108] sm:$0xff]
        %v1919 = vld [vmem:[#allocation2 + $0x110] sm:$0xff]
        %v1920 = vld [vmem:[#allocation2 + $0x118] sm:$0xff]
        %v1921 = vld [vmem:[#allocation2 + $0x120] sm:$0xff]
        %v1922 = vld [vmem:[#allocation2 + $0x128] sm:$0xff]
        %v1923 = vld [vmem:[#allocation2 + $0x130] sm:$0xff]
        %v1924 = vld [vmem:[#allocation2 + $0x138] sm:$0xff]
        %v1925 = vld [vmem:[#allocation2 + $0x140] sm:$0xff]
        %v1926 = vld [vmem:[#allocation2 + $0x148] sm:$0xff]
        %v1927 = vld [vmem:[#allocation2 + $0x150] sm:$0xff]
        %v1928 = vld [vmem:[#allocation2 + $0x158] sm:$0xff]
        %v1929 = vld [vmem:[#allocation2 + $0x160] sm:$0xff]
        %v1930 = vld [vmem:[#allocation2 + $0x168] sm:$0xff]
        %v1931 = vld [vmem:[#allocation2 + $0x170] sm:$0xff]
        %v1932 = vld [vmem:[#allocation2 + $0x178] sm:$0xff]
        %v1933 = vld [vmem:[#allocation2 + $0x180] sm:$0xff]
        %v1934 = vld [vmem:[#allocation2 + $0x188] sm:$0xff]
        %v1935 = vld [vmem:[#allocation2 + $0x190] sm:$0xff]
        %v1936 = vld [vmem:[#allocation2 + $0x198] sm:$0xff]
        %v1937 = vld [vmem:[#allocation2 + $0x1a0] sm:$0xff]
        %v1938 = vld [vmem:[#allocation2 + $0x1a8] sm:$0xff]
        %v1939 = vld [vmem:[#allocation2 + $0x1b0] sm:$0xff]
        %v1940 = vld [vmem:[#allocation2 + $0x1b8] sm:$0xff]
        %v1941 = vld [vmem:[#allocation2 + $0x1c0] sm:$0xff]
        %v1942 = vld [vmem:[#allocation2 + $0x1c8] sm:$0xff]
        %v1943 = vld [vmem:[#allocation2 + $0x1d0] sm:$0xff]
        %v1944 = vld [vmem:[#allocation2 + $0x1d8] sm:$0xff]
        %v1945 = vld [vmem:[#allocation2 + $0x1e0] sm:$0xff]
        %v1946 = vld [vmem:[#allocation2 + $0x1e8] sm:$0xff]
        %v1947 = vld [vmem:[#allocation2 + $0x1f0] sm:$0xff]
        %v1948 = vld [vmem:[#allocation2 + $0x1f8] sm:$0xff]
        %v1949 = vld [vmem:[#allocation2 + $0x200] sm:$0xff]
        %v1950 = vld [vmem:[#allocation2 + $0x208] sm:$0xff]
        %v1951 = vld [vmem:[#allocation2 + $0x210] sm:$0xff]
        %v1952 = vld [vmem:[#allocation2 + $0x218] sm:$0xff]
        %v1953 = vld [vmem:[#allocation2 + $0x220] sm:$0xff]
        %v1954 = vld [vmem:[#allocation2 + $0x228] sm:$0xff]
        %v1955 = vld [vmem:[#allocation2 + $0x230] sm:$0xff]
        %v1956 = vld [vmem:[#allocation2 + $0x238] sm:$0xff]
        %v1957 = vld [vmem:[#allocation2 + $0x240] sm:$0xff]
        %v1958 = vld [vmem:[#allocation2 + $0x248] sm:$0xff]
        %v1959 = vld [vmem:[#allocation2 + $0x250] sm:$0xff]
        %v1960 = vld [vmem:[#allocation2 + $0x258] sm:$0xff]
        %v1961 = vld [vmem:[#allocation2 + $0x260] sm:$0xff]
        %v1962 = vld [vmem:[#allocation2 + $0x268] sm:$0xff]
        %v1963 = vld [vmem:[#allocation2 + $0x270] sm:$0xff]
        %v1964 = vld [vmem:[#allocation2 + $0x278] sm:$0xff]
        %v1965 = vld [vmem:[#allocation2 + $0x280] sm:$0xff]
        %v1966 = vld [vmem:[#allocation2 + $0x288] sm:$0xff]
        %v1967 = vld [vmem:[#allocation2 + $0x290] sm:$0xff]
        %v1968 = vld [vmem:[#allocation2 + $0x298] sm:$0xff]
        %v1969 = vld [vmem:[#allocation2 + $0x2a0] sm:$0xff]
        %v1970 = vld [vmem:[#allocation2 + $0x2a8] sm:$0xff]
        %v1971 = vld [vmem:[#allocation2 + $0x2b0] sm:$0xff]
        %v1972 = vld [vmem:[#allocation2 + $0x2b8] sm:$0xff]
        %v1973 = vld [vmem:[#allocation2 + $0x2c0] sm:$0xff]
        %v1974 = vld [vmem:[#allocation2 + $0x2c8] sm:$0xff]
        %v1975 = vld [vmem:[#allocation2 + $0x2d0] sm:$0xff]
        %v1976 = vld [vmem:[#allocation2 + $0x2d8] sm:$0xff]
        %v1977 = vld [vmem:[#allocation2 + $0x2e0] sm:$0xff]
        %v1978 = vld [vmem:[#allocation2 + $0x2e8] sm:$0xff]
        %v1979 = vld [vmem:[#allocation2 + $0x2f0] sm:$0xff]
        %v1980 = vld [vmem:[#allocation2 + $0x2f8] sm:$0xff]
        %v1981 = vld [vmem:[#allocation2 + $0x300] sm:$0xff]
        %v1982 = vld [vmem:[#allocation2 + $0x308] sm:$0xff]
        %v1983 = vld [vmem:[#allocation2 + $0x310] sm:$0xff]
        %v1984 = vld [vmem:[#allocation2 + $0x318] sm:$0xff]
        %v1985 = vld [vmem:[#allocation2 + $0x320] sm:$0xff]
        %v1986 = vld [vmem:[#allocation2 + $0x328] sm:$0xff]
        %v1987 = vld [vmem:[#allocation2 + $0x330] sm:$0xff]
        %v1988 = vld [vmem:[#allocation2 + $0x338] sm:$0xff]
        %v1989 = vld [vmem:[#allocation2 + $0x340] sm:$0xff]
        %v1990 = vld [vmem:[#allocation2 + $0x348] sm:$0xff]
        %v1991 = vld [vmem:[#allocation2 + $0x350] sm:$0xff]
        %v1992 = vld [vmem:[#allocation2 + $0x358] sm:$0xff]
        %vm1993 = vcmask 719872
        %v1995 = vsel %vm1993, %v1884, 0
        %1997 = vmatprep.subr.mxu0 %v1886
        %1998 = vmatpush1.msra.mxu0 %v1885
        %1999 = vmatprep.subr.mxu0 %v1890
        %2000 = vmatpush1.msra.mxu0 %v1889
        %2001 = vmatprep.subr.mxu0 %v1894
        %2002 = vmatpush1.msra.mxu0 %v1893
        %2003 = vmatprep.subr.mxu0 %v1898
        %2004 = vmatpush1.msra.mxu0 %v1897
        %2005 = vmatprep.subr.mxu0 %v1902
        %2006 = vmatpush1.msra.mxu0 %v1901
        %2007 = vmatprep.subr.mxu0 %v1906
        %2008 = vmatpush1.msra.mxu0 %v1905
        %2009 = vmatprep.subr.mxu0 %v1910
        %2010 = vmatpush1.msra.mxu0 %v1909
        %2011 = vmatprep.subr.mxu0 %v1914
        %2012 = vmatpush1.msra.mxu0 %v1913
        %2013 = vmatprep.subr.mxu0 %v1918
        %2014 = vmatpush1.msra.mxu0 %v1917
        %2015 = vmatprep.subr.mxu0 %v1922
        %2016 = vmatpush1.msra.mxu0 %v1921
        %2017 = vmatprep.subr.mxu0 %v1926
        %2018 = vmatpush1.msra.mxu0 %v1925
        %2019 = vmatprep.subr.mxu0 %v1930
        %2020 = vmatpush1.msra.mxu0 %v1929
        %2021 = vmatprep.subr.mxu0 %v1934
        %2022 = vmatpush1.msra.mxu0 %v1933
        %2023 = vmatprep.subr.mxu0 %v1938
        %2024 = vmatpush1.msra.mxu0 %v1937
        %2025 = vmatprep.subr.mxu0 %v1942
        %2026 = vmatpush1.msra.mxu0 %v1941
        %2027 = vmatprep.subr.mxu0 %v1946
        %2028 = vmatpush1.msra.mxu0 %v1945
        %2029 = vmatprep.subr.mxu0 %v1950
        %2030 = vmatpush1.msra.mxu0 %v1949
        %2031 = vmatprep.subr.mxu0 %v1954
        %2032 = vmatpush1.msra.mxu0 %v1953
        %2033 = vmatprep.subr.mxu0 %v1958
        %2034 = vmatpush1.msra.mxu0 %v1957
        %2035 = vmatprep.subr.mxu0 %v1962
        %2036 = vmatpush1.msra.mxu0 %v1961
        %2037 = vmatprep.subr.mxu0 %v1966
        %2038 = vmatpush1.msra.mxu0 %v1965
        %2039 = vmatprep.subr.mxu0 %v1970
        %2040 = vmatpush1.msra.mxu0 %v1969
        %2041 = vmatprep.subr.mxu0 %v1974
        %2042 = vmatpush1.msra.mxu0 %v1973
        %2043 = vmatprep.subr.mxu0 %v1978
        %2044 = vmatpush1.msra.mxu0 %v1977
        %2045 = vmatprep.subr.mxu0 %v1982
        %2046 = vmatpush1.msra.mxu0 %v1981
        %2047 = vmatprep.subr.mxu0 %v1986
        %2048 = vmatpush1.msra.mxu0 %v1985
        %2049 = vmatprep.subr.mxu0 %v1990
        %2050 = vmatpush1.msra.mxu0 %v1989
        %2051 = vmatprep.subr.mxu0 0.0
        %2052 = vmatpush1.msra.mxu0 0.0
        %2053 = vmatprep.subr.mxu0 0.0
        %2054 = vmatpush1.msra.mxu0 0.0
        %2055 = vmatprep.subr.mxu0 0.0
        %2056 = vmatpush1.msra.mxu0 0.0
        %2057 = vmatprep.subr.mxu0 0.0
        %2058 = vmatpush1.msra.mxu0 0.0
        %2059 = vmatprep.subr.mxu0 0.0
        %2060 = vmatpush1.msra.mxu0 0.0
        %2061 = vmatprep.mubr.f32.mxu0 %v1995
        %2062 = vmatmul.mubr.f32.gmra.mrb[0].mxu0 %v1883
        %v2063 = vpop.f32.mrb[0].mxu0
        %v2064 = vadd.f32 0.0, %v2063
        %v2065 = vpop.f32.mrb[0].mxu0
        %v2066 = vadd.f32 0.0, %v2065
        %2067 = vdwg.mxu0
        %2068 = vmatprep.subr.mxu0 %v1888
        %2069 = vmatpush1.msra.mxu0 %v1887
        %2070 = vmatprep.subr.mxu0 %v1892
        %2071 = vmatpush1.msra.mxu0 %v1891
        %2072 = vmatprep.subr.mxu0 %v1896
        %2073 = vmatpush1.msra.mxu0 %v1895
        %2074 = vmatprep.subr.mxu0 %v1900
        %2075 = vmatpush1.msra.mxu0 %v1899
        %2076 = vmatprep.subr.mxu0 %v1904
        %2077 = vmatpush1.msra.mxu0 %v1903
        %2078 = vmatprep.subr.mxu0 %v1908
        %2079 = vmatpush1.msra.mxu0 %v1907
        %2080 = vmatprep.subr.mxu0 %v1912
        %2081 = vmatpush1.msra.mxu0 %v1911
        %2082 = vmatprep.subr.mxu0 %v1916
        %2083 = vmatpush1.msra.mxu0 %v1915
        %2084 = vmatprep.subr.mxu0 %v1920
        %2085 = vmatpush1.msra.mxu0 %v1919
        %2086 = vmatprep.subr.mxu0 %v1924
        %2087 = vmatpush1.msra.mxu0 %v1923
        %2088 = vmatprep.subr.mxu0 %v1928
        %2089 = vmatpush1.msra.mxu0 %v1927
        %2090 = vmatprep.subr.mxu0 %v1932
        %2091 = vmatpush1.msra.mxu0 %v1931
        %2092 = vmatprep.subr.mxu0 %v1936
        %2093 = vmatpush1.msra.mxu0 %v1935
        %2094 = vmatprep.subr.mxu0 %v1940
        %2095 = vmatpush1.msra.mxu0 %v1939
        %2096 = vmatprep.subr.mxu0 %v1944
        %2097 = vmatpush1.msra.mxu0 %v1943
        %2098 = vmatprep.subr.mxu0 %v1948
        %2099 = vmatpush1.msra.mxu0 %v1947
        %2100 = vmatprep.subr.mxu0 %v1952
        %2101 = vmatpush1.msra.mxu0 %v1951
        %2102 = vmatprep.subr.mxu0 %v1956
        %2103 = vmatpush1.msra.mxu0 %v1955
        %2104 = vmatprep.subr.mxu0 %v1960
        %2105 = vmatpush1.msra.mxu0 %v1959
        %2106 = vmatprep.subr.mxu0 %v1964
        %2107 = vmatpush1.msra.mxu0 %v1963
        %2108 = vmatprep.subr.mxu0 %v1968
        %2109 = vmatpush1.msra.mxu0 %v1967
        %2110 = vmatprep.subr.mxu0 %v1972
        %2111 = vmatpush1.msra.mxu0 %v1971
        %2112 = vmatprep.subr.mxu0 %v1976
        %2113 = vmatpush1.msra.mxu0 %v1975
        %2114 = vmatprep.subr.mxu0 %v1980
        %2115 = vmatpush1.msra.mxu0 %v1979
        %2116 = vmatprep.subr.mxu0 %v1984
        %2117 = vmatpush1.msra.mxu0 %v1983
        %2118 = vmatprep.subr.mxu0 %v1988
        %2119 = vmatpush1.msra.mxu0 %v1987
        %2120 = vmatprep.subr.mxu0 %v1992
        %2121 = vmatpush1.msra.mxu0 %v1991
        %2122 = vmatprep.subr.mxu0 0.0
        %2123 = vmatpush1.msra.mxu0 0.0
        %2124 = vmatprep.subr.mxu0 0.0
        %2125 = vmatpush1.msra.mxu0 0.0
        %2126 = vmatprep.subr.mxu0 0.0
        %2127 = vmatpush1.msra.mxu0 0.0
        %2128 = vmatprep.subr.mxu0 0.0
        %2129 = vmatpush1.msra.mxu0 0.0
        %2130 = vmatprep.subr.mxu0 0.0
        %2131 = vmatpush1.msra.mxu0 0.0
        %2132 = vmatprep.mubr.f32.mxu0 %v1995
        %2133 = vmatmul.mubr.f32.gmra.mrb[0].mxu0 %v1883
        %v2134 = vpop.f32.mrb[0].mxu0
        %v2135 = vadd.f32 0.0, %v2134
        %v2136 = vpop.f32.mrb[0].mxu0
        %v2137 = vadd.f32 0.0, %v2136
        %2138 = vdwg.mxu0
        %v2139 = vadd.f32 %v2064, %v2066
        %2140 = vadd.xlane.f32.xlu0 %v2139
        %v2141 = vpop.xlane.xlu0 %2140
        %v2142 = vmul.f32 %v2141, 0.00390625
        %v2143 = vmul.f32 %v2064, %v2064
        %v2144 = vmul.f32 %v2066, %v2066
        %v2145 = vadd.f32 %v2143, %v2144
        %2146 = vadd.xlane.f32.xlu0 %v2145
        %v2147 = vpop.xlane.xlu0 %2146
        %v2148 = vmul.f32 %v2147, 0.00390625
        %v2149 = vmul.f32 %v2142, %v2142
        %v2150 = vsub.f32 %v2148, %v2149
        %v2151 = vmax.f32 %v2150, 0.0
        %v2152 = vsub.f32 %v2064, %v2142
        %v2153 = vsub.f32 %v2066, %v2142
        %v2154 = vadd.f32 %v2151, 1e-05
        %v2155 = vrsqrt.pop %v2154
        %v2156 = vmul.f32 %v2152, %v2155
        %v2157 = vmul.f32 %v2153, %v2155
        %v2158 = vmul.f32 %v2156, 0.2
        %v2159 = vmul.f32 %v2157, 0.2
        %v2160 = vmax.f32 %v2156, %v2158
        %v2161 = vmax.f32 %v2157, %v2159
        %v2162 = vadd.f32 %v2135, %v2137
        %2163 = vadd.xlane.f32.xlu0 %v2162
        %v2164 = vpop.xlane.xlu0 %2163
        %v2165 = vmul.f32 %v2164, 0.00390625
        %v2166 = vmul.f32 %v2135, %v2135
        %v2167 = vmul.f32 %v2137, %v2137
        %v2168 = vadd.f32 %v2166, %v2167
        %2169 = vadd.xlane.f32.xlu0 %v2168
        %v2170 = vpop.xlane.xlu0 %2169
        %v2171 = vmul.f32 %v2170, 0.00390625
        %v2172 = vmul.f32 %v2165, %v2165
        %v2173 = vsub.f32 %v2171, %v2172
        %v2174 = vmax.f32 %v2173, 0.0
        %v2175 = vsub.f32 %v2135, %v2165
        %v2176 = vsub.f32 %v2137, %v2165
        %v2177 = vadd.f32 %v2174, 1e-05
        %v2178 = vrsqrt.pop %v2177
        %v2179 = vmul.f32 %v2175, %v2178
        %v2180 = vmul.f32 %v2176, %v2178
        %v2181 = vmul.f32 %v2179, 0.2
        %v2182 = vmul.f32 %v2180, 0.2
        %v2183 = vmax.f32 %v2179, %v2181
        %v2184 = vmax.f32 %v2180, %v2182
        %2185 = vst [vmem:[#allocation2 + $0x360] sm:$0xff] %v2160
        %2186 = vst [vmem:[#allocation2 + $0x368] sm:$0xff] %v2161
        %2187 = vst [vmem:[#allocation2 + $0x370] sm:$0xff] %v2183
        %2188 = vst [vmem:[#allocation2 + $0x378] sm:$0xff] %v2184
        %v2189 = vld [vmem:[#allocation9] sm:$0xff]
        %v2190 = vld [vmem:[#allocation9 + $0x8] sm:$0xff]
        %v2191 = vld [vmem:[#allocation2] sm:$0xff]
        %v2192 = vld [vmem:[#allocation2 + $0x8] sm:$0xff]
        %v2193 = vld [vmem:[#allocation2 + $0x10] sm:$0xff]
        %v2194 = vld [vmem:[#allocation2 + $0x18] sm:$0xff]
        %v2195 = vld [vmem:[#allocation2 + $0x20] sm:$0xff]
        %v2196 = vld [vmem:[#allocation2 + $0x28] sm:$0xff]
        %v2197 = vld [vmem:[#allocation2 + $0x30] sm:$0xff]
        %v2198 = vld [vmem:[#allocation2 + $0x38] sm:$0xff]
        %v2199 = vld [vmem:[#allocation2 + $0x40] sm:$0xff]
        %v2200 = vld [vmem:[#allocation2 + $0x48] sm:$0xff]
        %v2201 = vld [vmem:[#allocation2 + $0x50] sm:$0xff]
        %v2202 = vld [vmem:[#allocation2 + $0x58] sm:$0xff]
        %v2203 = vld [vmem:[#allocation2 + $0x60] sm:$0xff]
        %v2204 = vld [vmem:[#allocation2 + $0x68] sm:$0xff]
        %v2205 = vld [vmem:[#allocation2 + $0x70] sm:$0xff]
        %v2206 = vld [vmem:[#allocation2 + $0x78] sm:$0xff]
        %v2207 = vld [vmem:[#allocation2 + $0x80] sm:$0xff]
        %v2208 = vld [vmem:[#allocation2 + $0x88] sm:$0xff]
        %v2209 = vld [vmem:[#allocation2 + $0x90] sm:$0xff]
        %v2210 = vld [vmem:[#allocation2 + $0x98] sm:$0xff]
        %v2211 = vld [vmem:[#allocation2 + $0xa0] sm:$0xff]
        %v2212 = vld [vmem:[#allocation2 + $0xa8] sm:$0xff]
        %v2213 = vld [vmem:[#allocation2 + $0xb0] sm:$0xff]
        %v2214 = vld [vmem:[#allocation2 + $0xb8] sm:$0xff]
        %v2215 = vld [vmem:[#allocation2 + $0xc0] sm:$0xff]
        %v2216 = vld [vmem:[#allocation2 + $0xc8] sm:$0xff]
        %v2217 = vld [vmem:[#allocation2 + $0xd0] sm:$0xff]
        %v2218 = vld [vmem:[#allocation2 + $0xd8] sm:$0xff]
        %v2219 = vld [vmem:[#allocation2 + $0xe0] sm:$0xff]
        %v2220 = vld [vmem:[#allocation2 + $0xe8] sm:$0xff]
        %v2221 = vld [vmem:[#allocation2 + $0xf0] sm:$0xff]
        %v2222 = vld [vmem:[#allocation2 + $0xf8] sm:$0xff]
        %v2223 = vld [vmem:[#allocation2 + $0x100] sm:$0xff]
        %v2224 = vld [vmem:[#allocation2 + $0x108] sm:$0xff]
        %v2225 = vld [vmem:[#allocation2 + $0x110] sm:$0xff]
        %v2226 = vld [vmem:[#allocation2 + $0x118] sm:$0xff]
        %v2227 = vld [vmem:[#allocation2 + $0x120] sm:$0xff]
        %v2228 = vld [vmem:[#allocation2 + $0x128] sm:$0xff]
        %v2229 = vld [vmem:[#allocation2 + $0x130] sm:$0xff]
        %v2230 = vld [vmem:[#allocation2 + $0x138] sm:$0xff]
        %v2231 = vld [vmem:[#allocation2 + $0x140] sm:$0xff]
        %v2232 = vld [vmem:[#allocation2 + $0x148] sm:$0xff]
        %v2233 = vld [vmem:[#allocation2 + $0x150] sm:$0xff]
        %v2234 = vld [vmem:[#allocation2 + $0x158] sm:$0xff]
        %v2235 = vld [vmem:[#allocation2 + $0x160] sm:$0xff]
        %v2236 = vld [vmem:[#allocation2 + $0x168] sm:$0xff]
        %v2237 = vld [vmem:[#allocation2 + $0x170] sm:$0xff]
        %v2238 = vld [vmem:[#allocation2 + $0x178] sm:$0xff]
        %v2239 = vld [vmem:[#allocation2 + $0x180] sm:$0xff]
        %v2240 = vld [vmem:[#allocation2 + $0x188] sm:$0xff]
        %v2241 = vld [vmem:[#allocation2 + $0x190] sm:$0xff]
        %v2242 = vld [vmem:[#allocation2 + $0x198] sm:$0xff]
        %v2243 = vld [vmem:[#allocation2 + $0x1a0] sm:$0xff]
        %v2244 = vld [vmem:[#allocation2 + $0x1a8] sm:$0xff]
        %v2245 = vld [vmem:[#allocation2 + $0x1b0] sm:$0xff]
        %v2246 = vld [vmem:[#allocation2 + $0x1b8] sm:$0xff]
        %v2247 = vld [vmem:[#allocation2 + $0x1c0] sm:$0xff]
        %v2248 = vld [vmem:[#allocation2 + $0x1c8] sm:$0xff]
        %v2249 = vld [vmem:[#allocation2 + $0x1d0] sm:$0xff]
        %v2250 = vld [vmem:[#allocation2 + $0x1d8] sm:$0xff]
        %v2251 = vld [vmem:[#allocation2 + $0x1e0] sm:$0xff]
        %v2252 = vld [vmem:[#allocation2 + $0x1e8] sm:$0xff]
        %v2253 = vld [vmem:[#allocation2 + $0x1f0] sm:$0xff]
        %v2254 = vld [vmem:[#allocation2 + $0x1f8] sm:$0xff]
        %v2255 = vld [vmem:[#allocation2 + $0x200] sm:$0xff]
        %v2256 = vld [vmem:[#allocation2 + $0x208] sm:$0xff]
        %v2257 = vld [vmem:[#allocation2 + $0x210] sm:$0xff]
        %v2258 = vld [vmem:[#allocation2 + $0x218] sm:$0xff]
        %v2259 = vld [vmem:[#allocation2 + $0x220] sm:$0xff]
        %v2260 = vld [vmem:[#allocation2 + $0x228] sm:$0xff]
        %v2261 = vld [vmem:[#allocation2 + $0x230] sm:$0xff]
        %v2262 = vld [vmem:[#allocation2 + $0x238] sm:$0xff]
        %v2263 = vld [vmem:[#allocation2 + $0x240] sm:$0xff]
        %v2264 = vld [vmem:[#allocation2 + $0x248] sm:$0xff]
        %v2265 = vld [vmem:[#allocation2 + $0x250] sm:$0xff]
        %v2266 = vld [vmem:[#allocation2 + $0x258] sm:$0xff]
        %v2267 = vld [vmem:[#allocation2 + $0x260] sm:$0xff]
        %v2268 = vld [vmem:[#allocation2 + $0x268] sm:$0xff]
        %v2269 = vld [vmem:[#allocation2 + $0x270] sm:$0xff]
        %v2270 = vld [vmem:[#allocation2 + $0x278] sm:$0xff]
        %v2271 = vld [vmem:[#allocation2 + $0x280] sm:$0xff]
        %v2272 = vld [vmem:[#allocation2 + $0x288] sm:$0xff]
        %v2273 = vld [vmem:[#allocation2 + $0x290] sm:$0xff]
        %v2274 = vld [vmem:[#allocation2 + $0x298] sm:$0xff]
        %v2275 = vld [vmem:[#allocation2 + $0x2a0] sm:$0xff]
        %v2276 = vld [vmem:[#allocation2 + $0x2a8] sm:$0xff]
        %v2277 = vld [vmem:[#allocation2 + $0x2b0] sm:$0xff]
        %v2278 = vld [vmem:[#allocation2 + $0x2b8] sm:$0xff]
        %v2279 = vld [vmem:[#allocation2 + $0x2c0] sm:$0xff]
        %v2280 = vld [vmem:[#allocation2 + $0x2c8] sm:$0xff]
        %v2281 = vld [vmem:[#allocation2 + $0x2d0] sm:$0xff]
        %v2282 = vld [vmem:[#allocation2 + $0x2d8] sm:$0xff]
        %v2283 = vld [vmem:[#allocation2 + $0x2e0] sm:$0xff]
        %v2284 = vld [vmem:[#allocation2 + $0x2e8] sm:$0xff]
        %v2285 = vld [vmem:[#allocation2 + $0x2f0] sm:$0xff]
        %v2286 = vld [vmem:[#allocation2 + $0x2f8] sm:$0xff]
        %v2287 = vld [vmem:[#allocation2 + $0x300] sm:$0xff]
        %v2288 = vld [vmem:[#allocation2 + $0x308] sm:$0xff]
        %v2289 = vld [vmem:[#allocation2 + $0x310] sm:$0xff]
        %v2290 = vld [vmem:[#allocation2 + $0x318] sm:$0xff]
        %v2291 = vld [vmem:[#allocation2 + $0x320] sm:$0xff]
        %v2292 = vld [vmem:[#allocation2 + $0x328] sm:$0xff]
        %v2293 = vld [vmem:[#allocation2 + $0x330] sm:$0xff]
        %v2294 = vld [vmem:[#allocation2 + $0x338] sm:$0xff]
        %v2295 = vld [vmem:[#allocation2 + $0x340] sm:$0xff]
        %v2296 = vld [vmem:[#allocation2 + $0x348] sm:$0xff]
        %v2297 = vld [vmem:[#allocation2 + $0x350] sm:$0xff]
        %v2298 = vld [vmem:[#allocation2 + $0x358] sm:$0xff]
        %v2299 = vld [vmem:[#allocation2 + $0x360] sm:$0xff]
        %v2300 = vld [vmem:[#allocation2 + $0x368] sm:$0xff]
        %v2301 = vld [vmem:[#allocation2 + $0x370] sm:$0xff]
        %v2302 = vld [vmem:[#allocation2 + $0x378] sm:$0xff]
        %v2303 = vld [vmem:[%s5] sm:$0xff]
        %2305 = vset.pattern.permute.xlu0 0
        %2306 = vperm.xlu0 %2305, %v2303
        %v2307 = vpop.permute.xlu0 %2306
        %vm2309 = vcmask 785408
        %v2311 = vsel %vm2309, %v2190, 0
        %2313 = vmatprep.subr.mxu0 %v2192
        %2314 = vmatpush1.msra.mxu0 %v2191
        %2315 = vmatprep.subr.mxu0 %v2196
        %2316 = vmatpush1.msra.mxu0 %v2195
        %2317 = vmatprep.subr.mxu0 %v2200
        %2318 = vmatpush1.msra.mxu0 %v2199
        %2319 = vmatprep.subr.mxu0 %v2204
        %2320 = vmatpush1.msra.mxu0 %v2203
        %2321 = vmatprep.subr.mxu0 %v2208
        %2322 = vmatpush1.msra.mxu0 %v2207
        %2323 = vmatprep.subr.mxu0 %v2212
        %2324 = vmatpush1.msra.mxu0 %v2211
        %2325 = vmatprep.subr.mxu0 %v2216
        %2326 = vmatpush1.msra.mxu0 %v2215
        %2327 = vmatprep.subr.mxu0 %v2220
        %2328 = vmatpush1.msra.mxu0 %v2219
        %2329 = vmatprep.subr.mxu0 %v2224
        %2330 = vmatpush1.msra.mxu0 %v2223
        %2331 = vmatprep.subr.mxu0 %v2228
        %2332 = vmatpush1.msra.mxu0 %v2227
        %2333 = vmatprep.subr.mxu0 %v2232
        %2334 = vmatpush1.msra.mxu0 %v2231
        %2335 = vmatprep.subr.mxu0 %v2236
        %2336 = vmatpush1.msra.mxu0 %v2235
        %2337 = vmatprep.subr.mxu0 %v2240
        %2338 = vmatpush1.msra.mxu0 %v2239
        %2339 = vmatprep.subr.mxu0 %v2244
        %2340 = vmatpush1.msra.mxu0 %v2243
        %2341 = vmatprep.subr.mxu0 %v2248
        %2342 = vmatpush1.msra.mxu0 %v2247
        %2343 = vmatprep.subr.mxu0 %v2252
        %2344 = vmatpush1.msra.mxu0 %v2251
        %2345 = vmatprep.subr.mxu0 %v2256
        %2346 = vmatpush1.msra.mxu0 %v2255
        %2347 = vmatprep.subr.mxu0 %v2260
        %2348 = vmatpush1.msra.mxu0 %v2259
        %2349 = vmatprep.subr.mxu0 %v2264
        %2350 = vmatpush1.msra.mxu0 %v2263
        %2351 = vmatprep.subr.mxu0 %v2268
        %2352 = vmatpush1.msra.mxu0 %v2267
        %2353 = vmatprep.subr.mxu0 %v2272
        %2354 = vmatpush1.msra.mxu0 %v2271
        %2355 = vmatprep.subr.mxu0 %v2276
        %2356 = vmatpush1.msra.mxu0 %v2275
        %2357 = vmatprep.subr.mxu0 %v2280
        %2358 = vmatpush1.msra.mxu0 %v2279
        %2359 = vmatprep.subr.mxu0 %v2284
        %2360 = vmatpush1.msra.mxu0 %v2283
        %2361 = vmatprep.subr.mxu0 %v2288
        %2362 = vmatpush1.msra.mxu0 %v2287
        %2363 = vmatprep.subr.mxu0 %v2292
        %2364 = vmatpush1.msra.mxu0 %v2291
        %2365 = vmatprep.subr.mxu0 %v2296
        %2366 = vmatpush1.msra.mxu0 %v2295
        %2367 = vmatprep.subr.mxu0 %v2300
        %2368 = vmatpush1.msra.mxu0 %v2299
        %2369 = vmatprep.subr.mxu0 0.0
        %2370 = vmatpush1.msra.mxu0 0.0
        %2371 = vmatprep.subr.mxu0 0.0
        %2372 = vmatpush1.msra.mxu0 0.0
        %2373 = vmatprep.subr.mxu0 0.0
        %2374 = vmatpush1.msra.mxu0 0.0
        %2375 = vmatprep.subr.mxu0 0.0
        %2376 = vmatpush1.msra.mxu0 0.0
        %2377 = vmatprep.mubr.f32.mxu0 %v2311
        %2378 = vmatmul.mubr.f32.gmra.mrb[0].mxu0 %v2189
        %v2379 = vpop.f32.mrb[0].mxu0
        %v2380 = vadd.f32 %v2307, %v2379
        %v2381 = vpop.f32.mrb[0].mxu0
        %v2382 = vadd.f32 %v2307, %v2381
        %2383 = vdwg.mxu0
        %2384 = vmatprep.subr.mxu0 %v2194
        %2385 = vmatpush1.msra.mxu0 %v2193
        %2386 = vmatprep.subr.mxu0 %v2198
        %2387 = vmatpush1.msra.mxu0 %v2197
        %2388 = vmatprep.subr.mxu0 %v2202
        %2389 = vmatpush1.msra.mxu0 %v2201
        %2390 = vmatprep.subr.mxu0 %v2206
        %2391 = vmatpush1.msra.mxu0 %v2205
        %2392 = vmatprep.subr.mxu0 %v2210
        %2393 = vmatpush1.msra.mxu0 %v2209
        %2394 = vmatprep.subr.mxu0 %v2214
        %2395 = vmatpush1.msra.mxu0 %v2213
        %2396 = vmatprep.subr.mxu0 %v2218
        %2397 = vmatpush1.msra.mxu0 %v2217
        %2398 = vmatprep.subr.mxu0 %v2222
        %2399 = vmatpush1.msra.mxu0 %v2221
        %2400 = vmatprep.subr.mxu0 %v2226
        %2401 = vmatpush1.msra.mxu0 %v2225
        %2402 = vmatprep.subr.mxu0 %v2230
        %2403 = vmatpush1.msra.mxu0 %v2229
        %2404 = vmatprep.subr.mxu0 %v2234
        %2405 = vmatpush1.msra.mxu0 %v2233
        %2406 = vmatprep.subr.mxu0 %v2238
        %2407 = vmatpush1.msra.mxu0 %v2237
        %2408 = vmatprep.subr.mxu0 %v2242
        %2409 = vmatpush1.msra.mxu0 %v2241
        %2410 = vmatprep.subr.mxu0 %v2246
        %2411 = vmatpush1.msra.mxu0 %v2245
        %2412 = vmatprep.subr.mxu0 %v2250
        %2413 = vmatpush1.msra.mxu0 %v2249
        %2414 = vmatprep.subr.mxu0 %v2254
        %2415 = vmatpush1.msra.mxu0 %v2253
        %2416 = vmatprep.subr.mxu0 %v2258
        %2417 = vmatpush1.msra.mxu0 %v2257
        %2418 = vmatprep.subr.mxu0 %v2262
        %2419 = vmatpush1.msra.mxu0 %v2261
        %2420 = vmatprep.subr.mxu0 %v2266
        %2421 = vmatpush1.msra.mxu0 %v2265
        %2422 = vmatprep.subr.mxu0 %v2270
        %2423 = vmatpush1.msra.mxu0 %v2269
        %2424 = vmatprep.subr.mxu0 %v2274
        %2425 = vmatpush1.msra.mxu0 %v2273
        %2426 = vmatprep.subr.mxu0 %v2278
        %2427 = vmatpush1.msra.mxu0 %v2277
        %2428 = vmatprep.subr.mxu0 %v2282
        %2429 = vmatpush1.msra.mxu0 %v2281
        %2430 = vmatprep.subr.mxu0 %v2286
        %2431 = vmatpush1.msra.mxu0 %v2285
        %2432 = vmatprep.subr.mxu0 %v2290
        %2433 = vmatpush1.msra.mxu0 %v2289
        %2434 = vmatprep.subr.mxu0 %v2294
        %2435 = vmatpush1.msra.mxu0 %v2293
        %2436 = vmatprep.subr.mxu0 %v2298
        %2437 = vmatpush1.msra.mxu0 %v2297
        %2438 = vmatprep.subr.mxu0 %v2302
        %2439 = vmatpush1.msra.mxu0 %v2301
        %2440 = vmatprep.subr.mxu0 0.0
        %2441 = vmatpush1.msra.mxu0 0.0
        %2442 = vmatprep.subr.mxu0 0.0
        %2443 = vmatpush1.msra.mxu0 0.0
        %2444 = vmatprep.subr.mxu0 0.0
        %2445 = vmatpush1.msra.mxu0 0.0
        %2446 = vmatprep.subr.mxu0 0.0
        %2447 = vmatpush1.msra.mxu0 0.0
        %2448 = vmatprep.mubr.f32.mxu0 %v2311
        %2449 = vmatmul.mubr.f32.gmra.mrb[0].mxu0 %v2189
        %v2450 = vpop.f32.mrb[0].mxu0
        %v2451 = vadd.f32 %v2307, %v2450
        %v2452 = vpop.f32.mrb[0].mxu0
        %v2453 = vadd.f32 %v2307, %v2452
        %2454 = vdwg.mxu0
        %v2455 = vadd.f32 %v2380, %v347
        %v2456 = vadd.f32 %v2382, %v348
        %v2457 = vadd.f32 %v2451, %v349
        %v2458 = vadd.f32 %v2453, %v350
        %2459 = vst [vmem:[%s346] sm:$0xff] %v2455
        %2460 = vst [vmem:[%s346 + $0x8] sm:$0xff] %v2456
        %2461 = vst [vmem:[%s346 + $0x10] sm:$0xff] %v2457
        %2462 = vst [vmem:[%s346 + $0x18] sm:$0xff] %v2458
        %s2463 = sand.u32 %s186, 1
        %s2464 = scalar_lea.sflag [#allocation5], %s2463
        %s2465 = sand.u32 %s186, 1
        %s2466 = smul.addr %s2465, 32
        %s2467 = scalar_lea.vmem [#allocation12], %s2466
        // Predicated region
        $region69: #{tpu_custom_call.1} parent=47 // pred_check
          %p2468 = pneg %p196
        $region70: #{tpu_custom_call.1} parent=47 // pred_check_branch
          %2470 = sbr.rel (%p2468) target = $region72
        $region71: #{tpu_custom_call.1} parent=47 // pred_region
          %s2472 = ssub.s32 512, 512
          %2473 = vsyncadd %s2464, %s2472
          %s2474 = smul.addr %s26, 4
          %s2475 = smul.addr %s2474, 128
          %s2476 = scalar_lea.hbm %s7, %s2475
          %s2478 = sshll.u32 %s2467, 4
          %s2479 = int_to_ptr.vmem [resolvable:$true] %s2478
          %2481 = dma.vmem_to_hbm [thread:$0]  %s2479, 512, %s2476, %s2464
        $region72: #{tpu_custom_call.1} parent=47 // pred_fallthru
          _
      $region48: #{tpu_custom_call.1} parent=5 // pred_fallthru
        _
      %p2482 = scmp.le.s32.totalorder 2, %s21
      // Predicated region
      $region73: #{tpu_custom_call.1} parent=5 // pred_check
        %p2483 = pneg %p2482
      $region74: #{tpu_custom_call.1} parent=5 // pred_check_branch
        %2485 = sbr.rel (%p2483) target = $region76
      $region75: #{tpu_custom_call.1} parent=5 // pred_region
        %s2486 = ssub.s32 %s21, 2
        // Predicated region
        $region77: #{tpu_custom_call.1} parent=75 // pred_check
          %p2487 = pneg %p202
        $region78: #{tpu_custom_call.1} parent=75 // pred_check_branch
          %2489 = sbr.rel (%p2487) target = $region80
        $region79: #{tpu_custom_call.1} parent=75 // pred_region
          %s2490 = sand.u32 %s187, 1
          %s2491 = scalar_lea.sflag [#allocation5], %s2490
          %s2492 = sand.u32 %s187, 1
          %s2493 = smul.addr %s2492, 32
          %s2494 = scalar_lea.vmem [#allocation12], %s2493
          %2495 = dma.done %s2491, 512
        $region80: #{tpu_custom_call.1} parent=75 // pred_fallthru
          _
      $region76: #{tpu_custom_call.1} parent=5 // pred_fallthru
        _
    $region6: #{tpu_custom_call.1} parent=1 // loop_footer
      %s25 = sadd.s32 1, %s21
    $region7: #{tpu_custom_call.1} parent=1 // loop_footer_branch
      %20 = sbr.rel target = $region3
    $region8: #{tpu_custom_call.1} parent=1 // loop_exit
      _
    %2496 = vsyncpa [#allocation4], 1
    %s2497 = scalar_lea.sflag [#allocation4], 1
    %2498 = vsyncpa %s2497, 1
    %2499 = vsyncpa [#allocation7], 1
    %2500 = vsyncpa [#allocation10], 1
    %2501 = vsyncpa [#allocation5], 1
    %s2502 = scalar_lea.sflag [#allocation5], 1
    %2503 = vsyncpa %s2502, 1

</llo_original>
